<compile_context>
chip_gen: v5e
topology: v5e:2x2
jax: 0.10.0
libtpu: 0.0.40
codegen_flags: <defaults>
</compile_context>

<pallas_src>
import numpy as np
import jax
import jax.numpy as jnp
from jax.experimental import pallas as pl
from jax.experimental.pallas import tpu as pltpu

# Small synthetic shapes (in_channels != out_channels so the residual 1x1 conv
# is exercised; out_channels // 8 >= 1 so the attention bottleneck is nonempty).
N, CIN, COUT, H, W = 2, 32, 16, 16, 16
HID = COUT // 8            # = 2
EPS = 1e-5                 # nn.BatchNorm2d default eps
ROWS = N * H               # interleaved rows: row = y*N + n
WCI = W * CIN              # 512 lanes
WCO = W * COUT             # 256 lanes
CNT = float(N * H * W)     # elements per channel for BatchNorm statistics


def decoder_block_kernel(x_ref,
                         w1_ref, gb1_ref,
                         w2_ref, gb2_ref,
                         w3_ref, gb3_ref,
                         wr_ref, br_ref,
                         wa1_ref, ba1_ref, wa2_ref, ba2_ref,
                         pool_ref, expand_ref,
                         out_ref):

    def stack3(v, wc):
        # (ROWS, wc) bf16 -> (ROWS, 3*wc): block ky of row (y, n) holds row
        # (y+ky-1, n), zeros at the image top/bottom.  Pure value op (vreg
        # shifts + lane-aligned concat); all refs stay untouched.
        z = jnp.zeros((N, wc), jnp.bfloat16)
        lo = jnp.concatenate([z, v[:ROWS - N]], axis=0)   # in[y-1]
        hi = jnp.concatenate([v[N:], z], axis=0)          # in[y+1]
        return jnp.concatenate([lo, v, hi], axis=1)

    def bn(y, gb_ref, relu):
        # Train-mode BatchNorm fused to one per-channel scale/shift FMA.
        s1 = jnp.sum(y, axis=0, keepdims=True)            # (1, W*COUT)
        s2 = jnp.sum(y * y, axis=0, keepdims=True)
        stats = jnp.dot(jnp.concatenate([s1, s2], axis=0), pool_ref[...],
                        preferred_element_type=jnp.float32)   # (2, COUT), /CNT in pool
        mean = stats[0:1]
        var = stats[1:2] - mean * mean                     # E[y^2] - E[y]^2 (f32)
        scale = jax.lax.rsqrt(var + EPS) * gb_ref[0:1, :]  # gamma folded in
        shift = gb_ref[1:2, :] - mean * scale
        ss = jnp.dot(jnp.concatenate([scale, shift], axis=0), expand_ref[...],
                     preferred_element_type=jnp.float32)   # (2, W*COUT)
        out = y * ss[0:1] + ss[1:2]
        return jnp.maximum(out, 0.0) if relu else out

    # conv1 -> bn1 -> relu    (conv bias omitted: cancelled by train-mode BN)
    h = bn(jnp.dot(stack3(x_ref[...], WCI), w1_ref[...],
                   preferred_element_type=jnp.float32), gb1_ref, relu=True)

    # conv2 -> bn2 -> relu
    h = bn(jnp.dot(stack3(h.astype(jnp.bfloat16), WCO), w2_ref[...],
                   preferred_element_type=jnp.float32), gb2_ref, relu=True)

    # conv3 -> bn3 (no relu before attention)
    h = bn(jnp.dot(stack3(h.astype(jnp.bfloat16), WCO), w3_ref[...],
                   preferred_element_type=jnp.float32), gb3_ref, relu=False)

    # channel attention: 1x1 conv -> relu -> 1x1 conv -> sigmoid
    a = jnp.dot(h.astype(jnp.bfloat16), wa1_ref[...],
                preferred_element_type=jnp.float32) + ba1_ref[...]   # (ROWS, W*HID)
    a = jnp.maximum(a, 0.0)
    a = jnp.dot(a.astype(jnp.bfloat16), wa2_ref[...],
                preferred_element_type=jnp.float32) + ba2_ref[...]   # (ROWS, W*COUT)
    att = jax.nn.sigmoid(a)

    # residual 1x1 conv, computed last so its f32 vregs have a short live range
    residual = jnp.dot(x_ref[...], wr_ref[...],
                       preferred_element_type=jnp.float32) + br_ref[...]

    # x * att + residual, final relu — full 256-lane unmasked store.
    out_ref[...] = jnp.maximum(h * att + residual, 0.0)


# ---------------------------------------------------------------------------
# Wrapper-side parameter preprocessing (pure layout plumbing, done once).
# ---------------------------------------------------------------------------
def _banded_stacked_weight(w, cin, cout):
    """(3,3,cin,cout) HWIO conv weight -> (3*W*cin, W*cout) K-stacked banded bf16."""
    w = np.asarray(w, np.float32)
    bw = np.zeros((3, W * cin, W * cout), np.float32)
    for xo in range(W):
        for kx in range(3):
            xi = xo + kx - 1
            if 0 <= xi < W:
                bw[:, xi * cin:(xi + 1) * cin,
                   xo * cout:(xo + 1) * cout] = w[:, kx]
    return jnp.asarray(bw.reshape(3 * W * cin, W * cout), jnp.bfloat16)


def _blockdiag(w, cin, cout):
    """(cin,cout) 1x1-conv weight -> (W*cin, W*cout) block-diagonal, bf16."""
    w = np.asarray(w, np.float32)
    bd = np.zeros((W * cin, W * cout), np.float32)
    for x in range(W):
        bd[x * cin:(x + 1) * cin, x * cout:(x + 1) * cout] = w
    return jnp.asarray(bd, jnp.bfloat16)


def _tile_w(v):
    """Per-channel vector -> (1, W*len(v)) f32 row matching the lane packing."""
    return jnp.asarray(np.tile(np.asarray(v, np.float32), W)[None, :])


def _pool_expand():
    """pool: (W*COUT, COUT) lane-group sum with 1/CNT folded; expand = 0/1 pool^T."""
    pool = np.zeros((W * COUT, COUT), np.float32)
    for x in range(W):
        pool[x * COUT:(x + 1) * COUT, :] = np.eye(COUT, dtype=np.float32)
    expand = pool.T.copy()          # exact 0/1, kept f32 (do NOT cast to bf16)
    pool *= 1.0 / CNT
    return jnp.asarray(pool), jnp.asarray(expand)


def decoder_block(x_nchw, params):
    (w1, b1, g1, be1, w2, b2, g2, be2, w3, b3, g3, be3,
     wr, br, wa1, ba1, wa2, ba2) = params
    del b1, b2, b3  # exactly cancelled by train-mode BN mean subtraction

    # NCHW -> image-interleaved lane-dense rows: row = y*N + n, lanes = x*CIN + c.
    x = jnp.transpose(x_nchw, (0, 2, 3, 1)).reshape(N, H, W * CIN)
    x2d = jnp.transpose(x, (1, 0, 2)).reshape(ROWS, W * CIN).astype(jnp.bfloat16)

    pool, expand = _pool_expand()
    gb = lambda g, b: jnp.stack([jnp.asarray(g, jnp.float32),
                                 jnp.asarray(b, jnp.float32)])       # (2, COUT)

    args = (x2d,
            _banded_stacked_weight(w1, CIN, COUT), gb(g1, be1),
            _banded_stacked_weight(w2, COUT, COUT), gb(g2, be2),
            _banded_stacked_weight(w3, COUT, COUT), gb(g3, be3),
            _blockdiag(wr, CIN, COUT), _tile_w(br),
            _blockdiag(wa1, COUT, HID), _tile_w(ba1),
            _blockdiag(wa2, HID, COUT), _tile_w(ba2),
            pool, expand)

    vmem = pl.BlockSpec(memory_space=pltpu.MemorySpace.VMEM)
    out2d = pl.pallas_call(
        decoder_block_kernel,
        out_shape=jax.ShapeDtypeStruct((ROWS, W * COUT), jnp.float32),
        in_specs=[vmem] * len(args),
        out_specs=vmem,
    )(*args)

    # interleaved (H, N, W, COUT) rows -> NCHW (wrapper-side layout plumbing).
    out = out2d.reshape(H, N, W, COUT)
    return jnp.transpose(out, (1, 3, 0, 2))


# ---------------------------------------------------------------------------
# Parameters & pure-JAX reference (mirrors the PyTorch forward, train-mode BN).
# ---------------------------------------------------------------------------
def init_params(key):
    ks = jax.random.split(key, 18)
    nrm = lambda k, shp, s=0.1: jax.random.normal(k, shp, jnp.float32) * s
    w1 = nrm(ks[0], (3, 3, CIN, COUT));   b1 = nrm(ks[1], (COUT,))
    g1 = 1.0 + nrm(ks[2], (COUT,));       be1 = nrm(ks[3], (COUT,))
    w2 = nrm(ks[4], (3, 3, COUT, COUT));  b2 = nrm(ks[5], (COUT,))
    g2 = 1.0 + nrm(ks[6], (COUT,));       be2 = nrm(ks[7], (COUT,))
    w3 = nrm(ks[8], (3, 3, COUT, COUT));  b3 = nrm(ks[9], (COUT,))
    g3 = 1.0 + nrm(ks[10], (COUT,));      be3 = nrm(ks[11], (COUT,))
    wr = nrm(ks[12], (CIN, COUT));        br = nrm(ks[13], (COUT,))
    wa1 = nrm(ks[14], (COUT, HID));       ba1 = nrm(ks[15], (HID,))
    wa2 = nrm(ks[16], (HID, COUT));       ba2 = nrm(ks[17], (COUT,))
    return (w1, b1, g1, be1, w2, b2, g2, be2, w3, b3, g3, be3,
            wr, br, wa1, ba1, wa2, ba2)


def reference(x_nchw, params):
    (w1, b1, g1, be1, w2, b2, g2, be2, w3, b3, g3, be3,
     wr, br, wa1, ba1, wa2, ba2) = params
    x = jnp.transpose(x_nchw, (0, 2, 3, 1)).astype(jnp.float32)

    def conv3x3(h, w, b):
        y = jax.lax.conv_general_dilated(
            h, w, (1, 1), 'SAME', dimension_numbers=('NHWC', 'HWIO', 'NHWC'))
        return y + b.reshape(1, 1, 1, -1)

    def conv1x1(h, w, b):
        return jnp.einsum('nhwc,cd->nhwd', h, w) + b.reshape(1, 1, 1, -1)

    def bn(h, g, be):
        mean = jnp.mean(h, axis=(0, 1, 2), keepdims=True)
        var = jnp.mean((h - mean) ** 2, axis=(0, 1, 2), keepdims=True)
        return ((h - mean) * jax.lax.rsqrt(var + EPS)
                * g.reshape(1, 1, 1, -1) + be.reshape(1, 1, 1, -1))

    res = conv1x1(x, wr, br)
    h = jax.nn.relu(bn(conv3x3(x, w1, b1), g1, be1))
    h = jax.nn.relu(bn(conv3x3(h, w2, b2), g2, be2))
    h = bn(conv3x3(h, w3, b3), g3, be3)
    att = jax.nn.sigmoid(conv1x1(jax.nn.relu(conv1x1(h, wa1, ba1)), wa2, ba2))
    out = jax.nn.relu(h * att + res)
    return jnp.transpose(out, (0, 3, 1, 2))


if __name__ == "__main__":
    key = jax.random.PRNGKey(0)
    kx, kp = jax.random.split(key)
    x = jax.random.normal(kx, (N, CIN, H, W), jnp.float32)        # NCHW input
    params = init_params(kp)

    out = jax.block_until_ready(decoder_block(x, params))

    ref = reference(x, params)
    # bf16 MXU operands (f32 accumulation) -> bf16-level tolerance.
    np.testing.assert_allclose(np.asarray(out), np.asarray(ref),
                               rtol=2e-2, atol=2e-2)
    print("KERNEL_OK")
</pallas_src>

<mosaic_0001>
module attributes {stable_mosaic.version = 11 : i64} {
  func.func @decoder_block_kernel(%arg0: memref<32x512xbf16, #tpu.memory_space<vmem>>, %arg1: memref<1536x256xbf16, #tpu.memory_space<vmem>>, %arg2: memref<2x16xf32, #tpu.memory_space<vmem>>, %arg3: memref<768x256xbf16, #tpu.memory_space<vmem>>, %arg4: memref<2x16xf32, #tpu.memory_space<vmem>>, %arg5: memref<768x256xbf16, #tpu.memory_space<vmem>>, %arg6: memref<2x16xf32, #tpu.memory_space<vmem>>, %arg7: memref<512x256xbf16, #tpu.memory_space<vmem>>, %arg8: memref<1x256xf32, #tpu.memory_space<vmem>>, %arg9: memref<256x32xbf16, #tpu.memory_space<vmem>>, %arg10: memref<1x32xf32, #tpu.memory_space<vmem>>, %arg11: memref<32x256xbf16, #tpu.memory_space<vmem>>, %arg12: memref<1x256xf32, #tpu.memory_space<vmem>>, %arg13: memref<256x16xf32, #tpu.memory_space<vmem>>, %arg14: memref<16x256xf32, #tpu.memory_space<vmem>>, %arg15: memref<32x256xf32, #tpu.memory_space<vmem>>) attributes {dimension_semantics = [], scalar_prefetch = 0 : i64, scratch_operands = 0 : i64, tpu.core_type = #tpu.core_type<tc>} {
    %c0 = arith.constant 0 : index
    %c0_0 = arith.constant 0 : index
    %0 = vector.load %arg0[%c0, %c0_0] : memref<32x512xbf16, #tpu.memory_space<vmem>>, vector<32x512xbf16>
    %cst = arith.constant 0.000000e+00 : bf16
    %1 = vector.broadcast %cst : bf16 to vector<2x512xbf16>
    %2 = vector.extract_strided_slice %0 {offsets = [0, 0], sizes = [30, 512], strides = [1, 1]} : vector<32x512xbf16> to vector<30x512xbf16>
    %3 = tpu.concatenate %1, %2 in 0 : vector<2x512xbf16>, vector<30x512xbf16> -> vector<32x512xbf16>
    %4 = vector.extract_strided_slice %0 {offsets = [2, 0], sizes = [30, 512], strides = [1, 1]} : vector<32x512xbf16> to vector<30x512xbf16>
    %5 = tpu.concatenate %4, %1 in 0 : vector<30x512xbf16>, vector<2x512xbf16> -> vector<32x512xbf16>
    %6 = tpu.concatenate %3, %0, %5 in 1 : vector<32x512xbf16>, vector<32x512xbf16>, vector<32x512xbf16> -> vector<32x1536xbf16>
    %c0_1 = arith.constant 0 : index
    %c0_2 = arith.constant 0 : index
    %7 = vector.load %arg1[%c0_1, %c0_2] : memref<1536x256xbf16, #tpu.memory_space<vmem>>, vector<1536x256xbf16>
    %cst_3 = arith.constant dense<0.000000e+00> : vector<32x256xf32>
    %8 = tpu.matmul %6, %7, %cst_3 {dimension_numbers = #tpu.dot_dimension_numbers<[1], [0], [0], [1], [0, 0, 1, 1], [], []>} : vector<32x1536xbf16>, vector<1536x256xbf16>, vector<32x256xf32> -> vector<32x256xf32>
    %cst_4 = arith.constant dense<0.000000e+00> : vector<256xf32>
    %9 = vector.multi_reduction <add>, %8, %cst_4 [0] : vector<32x256xf32> to vector<256xf32>
    %10 = vector.shape_cast %9 : vector<256xf32> to vector<1x256xf32>
    %11 = arith.mulf %8, %8 : vector<32x256xf32>
    %cst_5 = arith.constant dense<0.000000e+00> : vector<256xf32>
    %12 = vector.multi_reduction <add>, %11, %cst_5 [0] : vector<32x256xf32> to vector<256xf32>
    %13 = vector.shape_cast %12 : vector<256xf32> to vector<1x256xf32>
    %14 = tpu.concatenate %10, %13 in 0 : vector<1x256xf32>, vector<1x256xf32> -> vector<2x256xf32>
    %c0_6 = arith.constant 0 : index
    %c0_7 = arith.constant 0 : index
    %15 = vector.load %arg13[%c0_6, %c0_7] : memref<256x16xf32, #tpu.memory_space<vmem>>, vector<256x16xf32>
    %cst_8 = arith.constant dense<0.000000e+00> : vector<2x16xf32>
    %16 = tpu.matmul %14, %15, %cst_8 {dimension_numbers = #tpu.dot_dimension_numbers<[1], [0], [0], [1], [0, 0, 1, 1], [], []>} : vector<2x256xf32>, vector<256x16xf32>, vector<2x16xf32> -> vector<2x16xf32>
    %17 = vector.extract_strided_slice %16 {offsets = [0, 0], sizes = [1, 16], strides = [1, 1]} : vector<2x16xf32> to vector<1x16xf32>
    %18 = vector.extract_strided_slice %16 {offsets = [1, 0], sizes = [1, 16], strides = [1, 1]} : vector<2x16xf32> to vector<1x16xf32>
    %19 = arith.mulf %17, %17 : vector<1x16xf32>
    %20 = arith.subf %18, %19 : vector<1x16xf32>
    %cst_9 = arith.constant 9.99999974E-6 : f32
    %21 = vector.broadcast %cst_9 : f32 to vector<1x16xf32>
    %22 = arith.addf %20, %21 : vector<1x16xf32>
    %23 = math.rsqrt %22 : vector<1x16xf32>
    %c0_10 = arith.constant 0 : index
    %c0_11 = arith.constant 0 : index
    %24 = vector.load %arg2[%c0_10, %c0_11] : memref<2x16xf32, #tpu.memory_space<vmem>>, vector<1x16xf32>
    %25 = arith.mulf %23, %24 : vector<1x16xf32>
    %c1 = arith.constant 1 : index
    %c0_12 = arith.constant 0 : index
    %26 = vector.load %arg2[%c1, %c0_12] : memref<2x16xf32, #tpu.memory_space<vmem>>, vector<1x16xf32>
    %27 = arith.mulf %17, %25 : vector<1x16xf32>
    %28 = arith.subf %26, %27 : vector<1x16xf32>
    %29 = tpu.concatenate %25, %28 in 0 : vector<1x16xf32>, vector<1x16xf32> -> vector<2x16xf32>
    %c0_13 = arith.constant 0 : index
    %c0_14 = arith.constant 0 : index
    %30 = vector.load %arg14[%c0_13, %c0_14] : memref<16x256xf32, #tpu.memory_space<vmem>>, vector<16x256xf32>
    %cst_15 = arith.constant dense<0.000000e+00> : vector<2x256xf32>
    %31 = tpu.matmul %29, %30, %cst_15 {dimension_numbers = #tpu.dot_dimension_numbers<[1], [0], [0], [1], [0, 0, 1, 1], [], []>} : vector<2x16xf32>, vector<16x256xf32>, vector<2x256xf32> -> vector<2x256xf32>
    %32 = vector.extract_strided_slice %31 {offsets = [0, 0], sizes = [1, 256], strides = [1, 1]} : vector<2x256xf32> to vector<1x256xf32>
    %33 = vector.broadcast %32 : vector<1x256xf32> to vector<32x256xf32>
    %34 = arith.mulf %8, %33 : vector<32x256xf32>
    %35 = vector.extract_strided_slice %31 {offsets = [1, 0], sizes = [1, 256], strides = [1, 1]} : vector<2x256xf32> to vector<1x256xf32>
    %36 = vector.broadcast %35 : vector<1x256xf32> to vector<32x256xf32>
    %37 = arith.addf %34, %36 : vector<32x256xf32>
    %cst_16 = arith.constant 0.000000e+00 : f32
    %38 = vector.broadcast %cst_16 : f32 to vector<32x256xf32>
    %39 = arith.maximumf %37, %38 : vector<32x256xf32>
    %40 = arith.truncf %39 : vector<32x256xf32> to vector<32x256xbf16>
    %cst_17 = arith.constant 0.000000e+00 : bf16
    %41 = vector.broadcast %cst_17 : bf16 to vector<2x256xbf16>
    %42 = vector.extract_strided_slice %40 {offsets = [0, 0], sizes = [30, 256], strides = [1, 1]} : vector<32x256xbf16> to vector<30x256xbf16>
    %43 = tpu.concatenate %41, %42 in 0 : vector<2x256xbf16>, vector<30x256xbf16> -> vector<32x256xbf16>
    %44 = vector.extract_strided_slice %40 {offsets = [2, 0], sizes = [30, 256], strides = [1, 1]} : vector<32x256xbf16> to vector<30x256xbf16>
    %45 = tpu.concatenate %44, %41 in 0 : vector<30x256xbf16>, vector<2x256xbf16> -> vector<32x256xbf16>
    %46 = tpu.concatenate %43, %40, %45 in 1 : vector<32x256xbf16>, vector<32x256xbf16>, vector<32x256xbf16> -> vector<32x768xbf16>
    %c0_18 = arith.constant 0 : index
    %c0_19 = arith.constant 0 : index
    %47 = vector.load %arg3[%c0_18, %c0_19] : memref<768x256xbf16, #tpu.memory_space<vmem>>, vector<768x256xbf16>
    %cst_20 = arith.constant dense<0.000000e+00> : vector<32x256xf32>
    %48 = tpu.matmul %46, %47, %cst_20 {dimension_numbers = #tpu.dot_dimension_numbers<[1], [0], [0], [1], [0, 0, 1, 1], [], []>} : vector<32x768xbf16>, vector<768x256xbf16>, vector<32x256xf32> -> vector<32x256xf32>
    %cst_21 = arith.constant dense<0.000000e+00> : vector<256xf32>
    %49 = vector.multi_reduction <add>, %48, %cst_21 [0] : vector<32x256xf32> to vector<256xf32>
    %50 = vector.shape_cast %49 : vector<256xf32> to vector<1x256xf32>
    %51 = arith.mulf %48, %48 : vector<32x256xf32>
    %cst_22 = arith.constant dense<0.000000e+00> : vector<256xf32>
    %52 = vector.multi_reduction <add>, %51, %cst_22 [0] : vector<32x256xf32> to vector<256xf32>
    %53 = vector.shape_cast %52 : vector<256xf32> to vector<1x256xf32>
    %54 = tpu.concatenate %50, %53 in 0 : vector<1x256xf32>, vector<1x256xf32> -> vector<2x256xf32>
    %c0_23 = arith.constant 0 : index
    %c0_24 = arith.constant 0 : index
    %55 = vector.load %arg13[%c0_23, %c0_24] : memref<256x16xf32, #tpu.memory_space<vmem>>, vector<256x16xf32>
    %cst_25 = arith.constant dense<0.000000e+00> : vector<2x16xf32>
    %56 = tpu.matmul %54, %55, %cst_25 {dimension_numbers = #tpu.dot_dimension_numbers<[1], [0], [0], [1], [0, 0, 1, 1], [], []>} : vector<2x256xf32>, vector<256x16xf32>, vector<2x16xf32> -> vector<2x16xf32>
    %57 = vector.extract_strided_slice %56 {offsets = [0, 0], sizes = [1, 16], strides = [1, 1]} : vector<2x16xf32> to vector<1x16xf32>
    %58 = vector.extract_strided_slice %56 {offsets = [1, 0], sizes = [1, 16], strides = [1, 1]} : vector<2x16xf32> to vector<1x16xf32>
    %59 = arith.mulf %57, %57 : vector<1x16xf32>
    %60 = arith.subf %58, %59 : vector<1x16xf32>
    %cst_26 = arith.constant 9.99999974E-6 : f32
    %61 = vector.broadcast %cst_26 : f32 to vector<1x16xf32>
    %62 = arith.addf %60, %61 : vector<1x16xf32>
    %63 = math.rsqrt %62 : vector<1x16xf32>
    %c0_27 = arith.constant 0 : index
    %c0_28 = arith.constant 0 : index
    %64 = vector.load %arg4[%c0_27, %c0_28] : memref<2x16xf32, #tpu.memory_space<vmem>>, vector<1x16xf32>
    %65 = arith.mulf %63, %64 : vector<1x16xf32>
    %c1_29 = arith.constant 1 : index
    %c0_30 = arith.constant 0 : index
    %66 = vector.load %arg4[%c1_29, %c0_30] : memref<2x16xf32, #tpu.memory_space<vmem>>, vector<1x16xf32>
    %67 = arith.mulf %57, %65 : vector<1x16xf32>
    %68 = arith.subf %66, %67 : vector<1x16xf32>
    %69 = tpu.concatenate %65, %68 in 0 : vector<1x16xf32>, vector<1x16xf32> -> vector<2x16xf32>
    %c0_31 = arith.constant 0 : index
    %c0_32 = arith.constant 0 : index
    %70 = vector.load %arg14[%c0_31, %c0_32] : memref<16x256xf32, #tpu.memory_space<vmem>>, vector<16x256xf32>
    %cst_33 = arith.constant dense<0.000000e+00> : vector<2x256xf32>
    %71 = tpu.matmul %69, %70, %cst_33 {dimension_numbers = #tpu.dot_dimension_numbers<[1], [0], [0], [1], [0, 0, 1, 1], [], []>} : vector<2x16xf32>, vector<16x256xf32>, vector<2x256xf32> -> vector<2x256xf32>
    %72 = vector.extract_strided_slice %71 {offsets = [0, 0], sizes = [1, 256], strides = [1, 1]} : vector<2x256xf32> to vector<1x256xf32>
    %73 = vector.broadcast %72 : vector<1x256xf32> to vector<32x256xf32>
    %74 = arith.mulf %48, %73 : vector<32x256xf32>
    %75 = vector.extract_strided_slice %71 {offsets = [1, 0], sizes = [1, 256], strides = [1, 1]} : vector<2x256xf32> to vector<1x256xf32>
    %76 = vector.broadcast %75 : vector<1x256xf32> to vector<32x256xf32>
    %77 = arith.addf %74, %76 : vector<32x256xf32>
    %cst_34 = arith.constant 0.000000e+00 : f32
    %78 = vector.broadcast %cst_34 : f32 to vector<32x256xf32>
    %79 = arith.maximumf %77, %78 : vector<32x256xf32>
    %80 = arith.truncf %79 : vector<32x256xf32> to vector<32x256xbf16>
    %cst_35 = arith.constant 0.000000e+00 : bf16
    %81 = vector.broadcast %cst_35 : bf16 to vector<2x256xbf16>
    %82 = vector.extract_strided_slice %80 {offsets = [0, 0], sizes = [30, 256], strides = [1, 1]} : vector<32x256xbf16> to vector<30x256xbf16>
    %83 = tpu.concatenate %81, %82 in 0 : vector<2x256xbf16>, vector<30x256xbf16> -> vector<32x256xbf16>
    %84 = vector.extract_strided_slice %80 {offsets = [2, 0], sizes = [30, 256], strides = [1, 1]} : vector<32x256xbf16> to vector<30x256xbf16>
    %85 = tpu.concatenate %84, %81 in 0 : vector<30x256xbf16>, vector<2x256xbf16> -> vector<32x256xbf16>
    %86 = tpu.concatenate %83, %80, %85 in 1 : vector<32x256xbf16>, vector<32x256xbf16>, vector<32x256xbf16> -> vector<32x768xbf16>
    %c0_36 = arith.constant 0 : index
    %c0_37 = arith.constant 0 : index
    %87 = vector.load %arg5[%c0_36, %c0_37] : memref<768x256xbf16, #tpu.memory_space<vmem>>, vector<768x256xbf16>
    %cst_38 = arith.constant dense<0.000000e+00> : vector<32x256xf32>
    %88 = tpu.matmul %86, %87, %cst_38 {dimension_numbers = #tpu.dot_dimension_numbers<[1], [0], [0], [1], [0, 0, 1, 1], [], []>} : vector<32x768xbf16>, vector<768x256xbf16>, vector<32x256xf32> -> vector<32x256xf32>
    %cst_39 = arith.constant dense<0.000000e+00> : vector<256xf32>
    %89 = vector.multi_reduction <add>, %88, %cst_39 [0] : vector<32x256xf32> to vector<256xf32>
    %90 = vector.shape_cast %89 : vector<256xf32> to vector<1x256xf32>
    %91 = arith.mulf %88, %88 : vector<32x256xf32>
    %cst_40 = arith.constant dense<0.000000e+00> : vector<256xf32>
    %92 = vector.multi_reduction <add>, %91, %cst_40 [0] : vector<32x256xf32> to vector<256xf32>
    %93 = vector.shape_cast %92 : vector<256xf32> to vector<1x256xf32>
    %94 = tpu.concatenate %90, %93 in 0 : vector<1x256xf32>, vector<1x256xf32> -> vector<2x256xf32>
    %c0_41 = arith.constant 0 : index
    %c0_42 = arith.constant 0 : index
    %95 = vector.load %arg13[%c0_41, %c0_42] : memref<256x16xf32, #tpu.memory_space<vmem>>, vector<256x16xf32>
    %cst_43 = arith.constant dense<0.000000e+00> : vector<2x16xf32>
    %96 = tpu.matmul %94, %95, %cst_43 {dimension_numbers = #tpu.dot_dimension_numbers<[1], [0], [0], [1], [0, 0, 1, 1], [], []>} : vector<2x256xf32>, vector<256x16xf32>, vector<2x16xf32> -> vector<2x16xf32>
    %97 = vector.extract_strided_slice %96 {offsets = [0, 0], sizes = [1, 16], strides = [1, 1]} : vector<2x16xf32> to vector<1x16xf32>
    %98 = vector.extract_strided_slice %96 {offsets = [1, 0], sizes = [1, 16], strides = [1, 1]} : vector<2x16xf32> to vector<1x16xf32>
    %99 = arith.mulf %97, %97 : vector<1x16xf32>
    %100 = arith.subf %98, %99 : vector<1x16xf32>
    %cst_44 = arith.constant 9.99999974E-6 : f32
    %101 = vector.broadcast %cst_44 : f32 to vector<1x16xf32>
    %102 = arith.addf %100, %101 : vector<1x16xf32>
    %103 = math.rsqrt %102 : vector<1x16xf32>
    %c0_45 = arith.constant 0 : index
    %c0_46 = arith.constant 0 : index
    %104 = vector.load %arg6[%c0_45, %c0_46] : memref<2x16xf32, #tpu.memory_space<vmem>>, vector<1x16xf32>
    %105 = arith.mulf %103, %104 : vector<1x16xf32>
    %c1_47 = arith.constant 1 : index
    %c0_48 = arith.constant 0 : index
    %106 = vector.load %arg6[%c1_47, %c0_48] : memref<2x16xf32, #tpu.memory_space<vmem>>, vector<1x16xf32>
    %107 = arith.mulf %97, %105 : vector<1x16xf32>
    %108 = arith.subf %106, %107 : vector<1x16xf32>
    %109 = tpu.concatenate %105, %108 in 0 : vector<1x16xf32>, vector<1x16xf32> -> vector<2x16xf32>
    %c0_49 = arith.constant 0 : index
    %c0_50 = arith.constant 0 : index
    %110 = vector.load %arg14[%c0_49, %c0_50] : memref<16x256xf32, #tpu.memory_space<vmem>>, vector<16x256xf32>
    %cst_51 = arith.constant dense<0.000000e+00> : vector<2x256xf32>
    %111 = tpu.matmul %109, %110, %cst_51 {dimension_numbers = #tpu.dot_dimension_numbers<[1], [0], [0], [1], [0, 0, 1, 1], [], []>} : vector<2x16xf32>, vector<16x256xf32>, vector<2x256xf32> -> vector<2x256xf32>
    %112 = vector.extract_strided_slice %111 {offsets = [0, 0], sizes = [1, 256], strides = [1, 1]} : vector<2x256xf32> to vector<1x256xf32>
    %113 = vector.broadcast %112 : vector<1x256xf32> to vector<32x256xf32>
    %114 = arith.mulf %88, %113 : vector<32x256xf32>
    %115 = vector.extract_strided_slice %111 {offsets = [1, 0], sizes = [1, 256], strides = [1, 1]} : vector<2x256xf32> to vector<1x256xf32>
    %116 = vector.broadcast %115 : vector<1x256xf32> to vector<32x256xf32>
    %117 = arith.addf %114, %116 : vector<32x256xf32>
    %118 = arith.truncf %117 : vector<32x256xf32> to vector<32x256xbf16>
    %c0_52 = arith.constant 0 : index
    %c0_53 = arith.constant 0 : index
    %119 = vector.load %arg9[%c0_52, %c0_53] : memref<256x32xbf16, #tpu.memory_space<vmem>>, vector<256x32xbf16>
    %cst_54 = arith.constant dense<0.000000e+00> : vector<32x32xf32>
    %120 = tpu.matmul %118, %119, %cst_54 {dimension_numbers = #tpu.dot_dimension_numbers<[1], [0], [0], [1], [0, 0, 1, 1], [], []>} : vector<32x256xbf16>, vector<256x32xbf16>, vector<32x32xf32> -> vector<32x32xf32>
    %c0_55 = arith.constant 0 : index
    %c0_56 = arith.constant 0 : index
    %121 = vector.load %arg10[%c0_55, %c0_56] : memref<1x32xf32, #tpu.memory_space<vmem>>, vector<1x32xf32>
    %122 = vector.broadcast %121 : vector<1x32xf32> to vector<32x32xf32>
    %123 = arith.addf %120, %122 : vector<32x32xf32>
    %cst_57 = arith.constant 0.000000e+00 : f32
    %124 = vector.broadcast %cst_57 : f32 to vector<32x32xf32>
    %125 = arith.maximumf %123, %124 : vector<32x32xf32>
    %126 = arith.truncf %125 : vector<32x32xf32> to vector<32x32xbf16>
    %c0_58 = arith.constant 0 : index
    %c0_59 = arith.constant 0 : index
    %127 = vector.load %arg11[%c0_58, %c0_59] : memref<32x256xbf16, #tpu.memory_space<vmem>>, vector<32x256xbf16>
    %cst_60 = arith.constant dense<0.000000e+00> : vector<32x256xf32>
    %128 = tpu.matmul %126, %127, %cst_60 {dimension_numbers = #tpu.dot_dimension_numbers<[1], [0], [0], [1], [0, 0, 1, 1], [], []>} : vector<32x32xbf16>, vector<32x256xbf16>, vector<32x256xf32> -> vector<32x256xf32>
    %c0_61 = arith.constant 0 : index
    %c0_62 = arith.constant 0 : index
    %129 = vector.load %arg12[%c0_61, %c0_62] : memref<1x256xf32, #tpu.memory_space<vmem>>, vector<1x256xf32>
    %130 = vector.broadcast %129 : vector<1x256xf32> to vector<32x256xf32>
    %131 = arith.addf %128, %130 : vector<32x256xf32>
    %132 = arith.negf %131 : vector<32x256xf32>
    %133 = math.exp %132 : vector<32x256xf32>
    %cst_63 = arith.constant 1.000000e+00 : f32
    %134 = vector.broadcast %cst_63 : f32 to vector<32x256xf32>
    %135 = arith.addf %134, %133 : vector<32x256xf32>
    %136 = arith.divf %134, %135 : vector<32x256xf32>
    %c0_64 = arith.constant 0 : index
    %c0_65 = arith.constant 0 : index
    %137 = vector.load %arg0[%c0_64, %c0_65] : memref<32x512xbf16, #tpu.memory_space<vmem>>, vector<32x512xbf16>
    %c0_66 = arith.constant 0 : index
    %c0_67 = arith.constant 0 : index
    %138 = vector.load %arg7[%c0_66, %c0_67] : memref<512x256xbf16, #tpu.memory_space<vmem>>, vector<512x256xbf16>
    %cst_68 = arith.constant dense<0.000000e+00> : vector<32x256xf32>
    %139 = tpu.matmul %137, %138, %cst_68 {dimension_numbers = #tpu.dot_dimension_numbers<[1], [0], [0], [1], [0, 0, 1, 1], [], []>} : vector<32x512xbf16>, vector<512x256xbf16>, vector<32x256xf32> -> vector<32x256xf32>
    %c0_69 = arith.constant 0 : index
    %c0_70 = arith.constant 0 : index
    %140 = vector.load %arg8[%c0_69, %c0_70] : memref<1x256xf32, #tpu.memory_space<vmem>>, vector<1x256xf32>
    %141 = vector.broadcast %140 : vector<1x256xf32> to vector<32x256xf32>
    %142 = arith.addf %139, %141 : vector<32x256xf32>
    %143 = arith.mulf %117, %136 : vector<32x256xf32>
    %144 = arith.addf %143, %142 : vector<32x256xf32>
    %cst_71 = arith.constant 0.000000e+00 : f32
    %145 = vector.broadcast %cst_71 : f32 to vector<32x256xf32>
    %146 = arith.maximumf %144, %145 : vector<32x256xf32>
    %c0_72 = arith.constant 0 : index
    %c0_73 = arith.constant 0 : index
    %147 = vector.load %arg15[%c0_72, %c0_73] : memref<32x256xf32, #tpu.memory_space<vmem>>, vector<32x256xf32>
    tpu.vector_store %arg15[%c0_72, %c0_73], %146 {strides = array<i32>} : memref<32x256xf32, #tpu.memory_space<vmem>>, vector<32x256xf32>,
    return
  }
}

</mosaic_0001>

<llo_original>
// kernel: tpu_custom_call.1
$region0: #{tpu_custom_call.1}
  #allocation0 [shape = 'u32[]', space=smem, size = 0x4, offset = 0x4, fixed_abs, tag = 'smem constant byte address 0x4 - core index']
  #allocation1 [shape = 'u32[72,128]{1,0:T(1,128)}', space=vmem, size = 0x9000, scoped, tag = 'internal scratch']
  %s0 = inlined_call_operand.vmem [shape: bf16[32,512], index: 0, kind: input, shape index: {}]
  %s1 = inlined_call_operand.hbm [shape: bf16[1536,256], index: 1, kind: input, shape index: {}]
  %s2 = inlined_call_operand.vmem [shape: f32[2,16], index: 2, kind: input, shape index: {}]
  %s3 = inlined_call_operand.hbm [shape: bf16[768,256], index: 3, kind: input, shape index: {}]
  %s4 = inlined_call_operand.vmem [shape: f32[2,16], index: 4, kind: input, shape index: {}]
  %s5 = inlined_call_operand.hbm [shape: bf16[768,256], index: 5, kind: input, shape index: {}]
  %s6 = inlined_call_operand.vmem [shape: f32[2,16], index: 6, kind: input, shape index: {}]
  %s7 = inlined_call_operand.hbm [shape: bf16[512,256], index: 7, kind: input, shape index: {}]
  %s8 = inlined_call_operand.vmem [shape: f32[1,256], index: 8, kind: input, shape index: {}]
  %s9 = inlined_call_operand.vmem [shape: bf16[256,32], index: 9, kind: input, shape index: {}]
  %s10 = inlined_call_operand.vmem [shape: f32[1,32], index: 10, kind: input, shape index: {}]
  %s11 = inlined_call_operand.vmem [shape: bf16[32,256], index: 11, kind: input, shape index: {}]
  %s12 = inlined_call_operand.vmem [shape: f32[1,256], index: 12, kind: input, shape index: {}]
  %s13 = inlined_call_operand.vmem [shape: f32[256,16], index: 13, kind: input, shape index: {}]
  %s14 = inlined_call_operand.vmem [shape: f32[16,256], index: 14, kind: input, shape index: {}]
  %s15 = inlined_call_operand.hbm [shape: f32[32,256], index: 15, kind: output, shape index: {}]
  %s16 = sld [smem:[#allocation0]]
  $region86: #{tpu_custom_call.1} parent=0
    _
  %s18 = ssub.s32 1, %s16
  %s19 = scalar_select 0, %s18, %s16
  $region1: #{tpu_custom_call.1} parent=0
    #allocation2 [shape = 'u8[786432]{0}', space=vmem, size = 0xc0000, scoped, tag = 'input window, operand 1, single buffered']
    #allocation3 [shape = 's32[1]{0}', space=sflag, size = 0x4, scoped, tag = 'scoped memory for tpu_custom_call.1']
    #allocation4 [shape = 's32[1]{0}', space=sflag, size = 0x4, scoped, tag = 'scoped memory for tpu_custom_call.1']
    #allocation5 [shape = 'u8[393216]{0}', space=vmem, size = 0x60000, scoped, tag = 'input window, operand 3, single buffered']
    #allocation6 [shape = 's32[1]{0}', space=sflag, size = 0x4, scoped, tag = 'scoped memory for tpu_custom_call.1']
    #allocation7 [shape = 'u8[393216]{0}', space=vmem, size = 0x60000, scoped, tag = 'input window, operand 5, single buffered']
    #allocation8 [shape = 'u8[262144]{0}', space=vmem, size = 0x40000, scoped, tag = 'input window, operand 7, single buffered']
    #allocation9 [shape = 's32[1]{0}', space=sflag, size = 0x4, scoped, tag = 'scoped memory for tpu_custom_call.1']
    #allocation10 [shape = 'u8[32768]{0}', space=vmem, size = 0x8000, scoped, tag = 'output window, operand 0, single buffered']
    %20 = vsyncpa [#allocation3], 0
    %21 = vsyncpa [#allocation6], 0
    %22 = vsyncpa [#allocation9], 0
    %23 = vsyncpa [#allocation4], 0
    // Predicated region
    $region2: #{tpu_custom_call.1} parent=1 // pred_check
      _
    $region3: #{tpu_custom_call.1} parent=1 // pred_check_branch
      %25 = sbr.rel (0) target = $region5
    $region4: #{tpu_custom_call.1} parent=1 // pred_region
      _
    $region5: #{tpu_custom_call.1} parent=1 // pred_fallthru
      _
    // Predicated region
    $region6: #{tpu_custom_call.1} parent=1 // pred_check
      _
    $region7: #{tpu_custom_call.1} parent=1 // pred_check_branch
      %27 = sbr.rel (0) target = $region9
    $region8: #{tpu_custom_call.1} parent=1 // pred_region
      %29 = vsyncadd [#allocation3], 0
      %s30 = sshll.u32 %s1, 4
      %s31 = int_to_ptr.hbm [resolvable:$true] %s30
      %s32 = sshll.u32 [#allocation2], 4
      %s33 = int_to_ptr.vmem [resolvable:$true] %s32
      %38 = dma.hbm_to_vmem [thread:$0]  %s31, 24576, %s33, [#allocation3], 128, 128, 8
    $region9: #{tpu_custom_call.1} parent=1 // pred_fallthru
      _
    // Predicated region
    $region10: #{tpu_custom_call.1} parent=1 // pred_check
      _
    $region11: #{tpu_custom_call.1} parent=1 // pred_check_branch
      %40 = sbr.rel (0) target = $region13
    $region12: #{tpu_custom_call.1} parent=1 // pred_region
      _
    $region13: #{tpu_custom_call.1} parent=1 // pred_fallthru
      _
    // Predicated region
    $region14: #{tpu_custom_call.1} parent=1 // pred_check
      _
    $region15: #{tpu_custom_call.1} parent=1 // pred_check_branch
      %42 = sbr.rel (0) target = $region17
    $region16: #{tpu_custom_call.1} parent=1 // pred_region
      %44 = vsyncadd [#allocation6], 0
      %s45 = sshll.u32 %s3, 4
      %s46 = int_to_ptr.hbm [resolvable:$true] %s45
      %s47 = sshll.u32 [#allocation5], 4
      %s48 = int_to_ptr.vmem [resolvable:$true] %s47
      %53 = dma.hbm_to_vmem [thread:$0]  %s46, 12288, %s48, [#allocation6], 128, 128, 8
    $region17: #{tpu_custom_call.1} parent=1 // pred_fallthru
      _
    // Predicated region
    $region18: #{tpu_custom_call.1} parent=1 // pred_check
      _
    $region19: #{tpu_custom_call.1} parent=1 // pred_check_branch
      %55 = sbr.rel (0) target = $region21
    $region20: #{tpu_custom_call.1} parent=1 // pred_region
      _
    $region21: #{tpu_custom_call.1} parent=1 // pred_fallthru
      _
    // Predicated region
    $region22: #{tpu_custom_call.1} parent=1 // pred_check
      _
    $region23: #{tpu_custom_call.1} parent=1 // pred_check_branch
      %57 = sbr.rel (0) target = $region25
    $region24: #{tpu_custom_call.1} parent=1 // pred_region
      %59 = vsyncadd [#allocation6], 0
      %s60 = sshll.u32 %s5, 4
      %s61 = int_to_ptr.hbm [resolvable:$true] %s60
      %s62 = sshll.u32 [#allocation7], 4
      %s63 = int_to_ptr.vmem [resolvable:$true] %s62
      %68 = dma.hbm_to_vmem [thread:$0]  %s61, 12288, %s63, [#allocation6], 128, 128, 8
    $region25: #{tpu_custom_call.1} parent=1 // pred_fallthru
      _
    // Predicated region
    $region26: #{tpu_custom_call.1} parent=1 // pred_check
      _
    $region27: #{tpu_custom_call.1} parent=1 // pred_check_branch
      %70 = sbr.rel (0) target = $region29
    $region28: #{tpu_custom_call.1} parent=1 // pred_region
      _
    $region29: #{tpu_custom_call.1} parent=1 // pred_fallthru
      _
    // Predicated region
    $region30: #{tpu_custom_call.1} parent=1 // pred_check
      _
    $region31: #{tpu_custom_call.1} parent=1 // pred_check_branch
      %72 = sbr.rel (0) target = $region33
    $region32: #{tpu_custom_call.1} parent=1 // pred_region
      %74 = vsyncadd [#allocation9], 0
      %s75 = sshll.u32 %s7, 4
      %s76 = int_to_ptr.hbm [resolvable:$true] %s75
      %s77 = sshll.u32 [#allocation8], 4
      %s78 = int_to_ptr.vmem [resolvable:$true] %s77
      %83 = dma.hbm_to_vmem [thread:$0]  %s76, 8192, %s78, [#allocation9], 128, 128, 8
    $region33: #{tpu_custom_call.1} parent=1 // pred_fallthru
      _
    // Predicated region
    $region34: #{tpu_custom_call.1} parent=1 // pred_check
      _
    $region35: #{tpu_custom_call.1} parent=1 // pred_check_branch
      %85 = sbr.rel (0) target = $region37
    $region36: #{tpu_custom_call.1} parent=1 // pred_region
      _
    $region37: #{tpu_custom_call.1} parent=1 // pred_fallthru
      _
    // Predicated region
    $region38: #{tpu_custom_call.1} parent=1 // pred_check
      _
    $region39: #{tpu_custom_call.1} parent=1 // pred_check_branch
      %87 = sbr.rel (0) target = $region41
    $region40: #{tpu_custom_call.1} parent=1 // pred_region
      _
    $region41: #{tpu_custom_call.1} parent=1 // pred_fallthru
      _
    // Predicated region
    $region42: #{tpu_custom_call.1} parent=1 // pred_check
      _
    $region43: #{tpu_custom_call.1} parent=1 // pred_check_branch
      %89 = sbr.rel (0) target = $region45
    $region44: #{tpu_custom_call.1} parent=1 // pred_region
      _
    $region45: #{tpu_custom_call.1} parent=1 // pred_fallthru
      _
    // Predicated region
    $region46: #{tpu_custom_call.1} parent=1 // pred_check
      _
    $region47: #{tpu_custom_call.1} parent=1 // pred_check_branch
      %91 = sbr.rel (0) target = $region49
    $region48: #{tpu_custom_call.1} parent=1 // pred_region
      _
    $region49: #{tpu_custom_call.1} parent=1 // pred_fallthru
      _
    // Predicated region
    $region50: #{tpu_custom_call.1} parent=1 // pred_check
      _
    $region51: #{tpu_custom_call.1} parent=1 // pred_check_branch
      %93 = sbr.rel (0) target = $region53
    $region52: #{tpu_custom_call.1} parent=1 // pred_region
      _
    $region53: #{tpu_custom_call.1} parent=1 // pred_fallthru
      _
    // Predicated region
    $region54: #{tpu_custom_call.1} parent=1 // pred_check
      _
    $region55: #{tpu_custom_call.1} parent=1 // pred_check_branch
      %95 = sbr.rel (0) target = $region57
    $region56: #{tpu_custom_call.1} parent=1 // pred_region
      _
    $region57: #{tpu_custom_call.1} parent=1 // pred_fallthru
      _
    // Predicated region
    $region58: #{tpu_custom_call.1} parent=1 // pred_check
      _
    $region59: #{tpu_custom_call.1} parent=1 // pred_check_branch
      %97 = sbr.rel (0) target = $region61
    $region60: #{tpu_custom_call.1} parent=1 // pred_region
      _
    $region61: #{tpu_custom_call.1} parent=1 // pred_fallthru
      _
    // Predicated region
    $region62: #{tpu_custom_call.1} parent=1 // pred_check
      _
    $region63: #{tpu_custom_call.1} parent=1 // pred_check_branch
      %99 = sbr.rel (0) target = $region65
    $region64: #{tpu_custom_call.1} parent=1 // pred_region
      %101 = dma.done [#allocation3], 24576
    $region65: #{tpu_custom_call.1} parent=1 // pred_fallthru
      _
    // Predicated region
    $region66: #{tpu_custom_call.1} parent=1 // pred_check
      _
    $region67: #{tpu_custom_call.1} parent=1 // pred_check_branch
      %103 = sbr.rel (0) target = $region69
    $region68: #{tpu_custom_call.1} parent=1 // pred_region
      %105 = dma.done [#allocation6], 12288
    $region69: #{tpu_custom_call.1} parent=1 // pred_fallthru
      _
    // Predicated region
    $region70: #{tpu_custom_call.1} parent=1 // pred_check
      _
    $region71: #{tpu_custom_call.1} parent=1 // pred_check_branch
      %107 = sbr.rel (0) target = $region73
    $region72: #{tpu_custom_call.1} parent=1 // pred_region
      %109 = dma.done [#allocation6], 12288
    $region73: #{tpu_custom_call.1} parent=1 // pred_fallthru
      _
    // Predicated region
    $region74: #{tpu_custom_call.1} parent=1 // pred_check
      _
    $region75: #{tpu_custom_call.1} parent=1 // pred_check_branch
      %111 = sbr.rel (0) target = $region77
    $region76: #{tpu_custom_call.1} parent=1 // pred_region
      %113 = dma.done [#allocation9], 8192
    $region77: #{tpu_custom_call.1} parent=1 // pred_fallthru
      _
    %v115 = vld [vmem:[%s0] sm:$0xff]
    %v116 = vld [vmem:[%s0 + $0x8] sm:$0xff]
    %v117 = vld [vmem:[%s0 + $0x10] sm:$0xff]
    %v118 = vld [vmem:[%s0 + $0x18] sm:$0xff]
    %v119 = vld [vmem:[%s0 + $0x20] sm:$0xff]
    %v120 = vld [vmem:[%s0 + $0x28] sm:$0xff]
    %v121 = vld [vmem:[%s0 + $0x30] sm:$0xff]
    %v122 = vld [vmem:[%s0 + $0x38] sm:$0xff]
    %v131 = vunpack.c.l.b16 %v115
    %v132 = vunpack.c.h.b16 %v115
    %v133 = vunpack.c.l.b16 %v116
    %v134 = vunpack.c.h.b16 %v116
    %v135 = vunpack.c.l.b16 %v117
    %v136 = vunpack.c.h.b16 %v117
    %v137 = vunpack.c.l.b16 %v118
    %v138 = vunpack.c.h.b16 %v118
    %v139 = vunpack.c.l.b16 %v119
    %v140 = vunpack.c.h.b16 %v119
    %v141 = vunpack.c.l.b16 %v120
    %v142 = vunpack.c.h.b16 %v120
    %v143 = vunpack.c.l.b16 %v121
    %v144 = vunpack.c.h.b16 %v121
    %v145 = vunpack.c.l.b16 %v122
    %v146 = vunpack.c.h.b16 %v122
    %v147 = vpack.c.b16 %v135, %v131
    %v148 = vpack.c.b16 %v136, %v132
    %v149 = vpack.c.b16 %v137, %v133
    %v150 = vpack.c.b16 %v138, %v134
    %v151 = vpack.c.b16 %v143, %v139
    %v152 = vpack.c.b16 %v144, %v140
    %v153 = vpack.c.b16 %v145, %v141
    %v154 = vpack.c.b16 %v146, %v142
    %vm155 = vcmask 1040384
    %v156 = vrot.slane %v147, 7
    %v157 = vrot.slane %v148, 7
    %v158 = vrot.slane %v149, 7
    %v159 = vrot.slane %v150, 7
    %v160 = vrot.slane %v151, 7
    %v161 = vsel %vm155, %v156, %v160
    %v162 = vrot.slane %v152, 7
    %v163 = vsel %vm155, %v157, %v162
    %v164 = vrot.slane %v153, 7
    %v165 = vsel %vm155, %v158, %v164
    %v166 = vrot.slane %v154, 7
    %v167 = vsel %vm155, %v159, %v166
    %vm172 = vcmask 1040384
    %v175 = vsel %vm172, 0, %v156
    %v178 = vsel %vm172, 0, %v157
    %v181 = vsel %vm172, 0, %v158
    %v184 = vsel %vm172, 0, %v159
    %vm186 = vcmask 1046528
    %v187 = vrot.slane %v147, 1
    %v188 = vrot.slane %v151, 1
    %v189 = vsel %vm186, %v187, %v188
    %v190 = vrot.slane %v148, 1
    %v191 = vrot.slane %v152, 1
    %v192 = vsel %vm186, %v190, %v191
    %v193 = vrot.slane %v149, 1
    %v194 = vrot.slane %v153, 1
    %v195 = vsel %vm186, %v193, %v194
    %v196 = vrot.slane %v150, 1
    %v197 = vrot.slane %v154, 1
    %v198 = vsel %vm186, %v196, %v197
    %vm203 = vcmask 1046528
    %v205 = vsel %vm203, %v188, 0
    %v208 = vsel %vm203, %v191, 0
    %v211 = vsel %vm203, %v194, 0
    %v214 = vsel %vm203, %v197, 0
    %v224 = vld [vmem:[#allocation2] sm:$0xff]
    %v225 = vld [vmem:[#allocation2 + $0x8] sm:$0xff]
    %v226 = vld [vmem:[#allocation2 + $0x10] sm:$0xff]
    %v227 = vld [vmem:[#allocation2 + $0x18] sm:$0xff]
    %v228 = vld [vmem:[#allocation2 + $0x20] sm:$0xff]
    %v229 = vld [vmem:[#allocation2 + $0x28] sm:$0xff]
    %v230 = vld [vmem:[#allocation2 + $0x30] sm:$0xff]
    %v231 = vld [vmem:[#allocation2 + $0x38] sm:$0xff]
    %v232 = vld [vmem:[#allocation2 + $0x40] sm:$0xff]
    %v233 = vld [vmem:[#allocation2 + $0x48] sm:$0xff]
    %v234 = vld [vmem:[#allocation2 + $0x50] sm:$0xff]
    %v235 = vld [vmem:[#allocation2 + $0x58] sm:$0xff]
    %v236 = vld [vmem:[#allocation2 + $0x60] sm:$0xff]
    %v237 = vld [vmem:[#allocation2 + $0x68] sm:$0xff]
    %v238 = vld [vmem:[#allocation2 + $0x70] sm:$0xff]
    %v239 = vld [vmem:[#allocation2 + $0x78] sm:$0xff]
    %v240 = vld [vmem:[#allocation2 + $0x80] sm:$0xff]
    %v241 = vld [vmem:[#allocation2 + $0x88] sm:$0xff]
    %v242 = vld [vmem:[#allocation2 + $0x90] sm:$0xff]
    %v243 = vld [vmem:[#allocation2 + $0x98] sm:$0xff]
    %v244 = vld [vmem:[#allocation2 + $0xa0] sm:$0xff]
    %v245 = vld [vmem:[#allocation2 + $0xa8] sm:$0xff]
    %v246 = vld [vmem:[#allocation2 + $0xb0] sm:$0xff]
    %v247 = vld [vmem:[#allocation2 + $0xb8] sm:$0xff]
    %v248 = vld [vmem:[#allocation2 + $0xc0] sm:$0xff]
    %v249 = vld [vmem:[#allocation2 + $0xc8] sm:$0xff]
    %v250 = vld [vmem:[#allocation2 + $0xd0] sm:$0xff]
    %v251 = vld [vmem:[#allocation2 + $0xd8] sm:$0xff]
    %v252 = vld [vmem:[#allocation2 + $0xe0] sm:$0xff]
    %v253 = vld [vmem:[#allocation2 + $0xe8] sm:$0xff]
    %v254 = vld [vmem:[#allocation2 + $0xf0] sm:$0xff]
    %v255 = vld [vmem:[#allocation2 + $0xf8] sm:$0xff]
    %v256 = vld [vmem:[#allocation2 + $0x100] sm:$0xff]
    %v257 = vld [vmem:[#allocation2 + $0x108] sm:$0xff]
    %v258 = vld [vmem:[#allocation2 + $0x110] sm:$0xff]
    %v259 = vld [vmem:[#allocation2 + $0x118] sm:$0xff]
    %v260 = vld [vmem:[#allocation2 + $0x120] sm:$0xff]
    %v261 = vld [vmem:[#allocation2 + $0x128] sm:$0xff]
    %v262 = vld [vmem:[#allocation2 + $0x130] sm:$0xff]
    %v263 = vld [vmem:[#allocation2 + $0x138] sm:$0xff]
    %v264 = vld [vmem:[#allocation2 + $0x140] sm:$0xff]
    %v265 = vld [vmem:[#allocation2 + $0x148] sm:$0xff]
    %v266 = vld [vmem:[#allocation2 + $0x150] sm:$0xff]
    %v267 = vld [vmem:[#allocation2 + $0x158] sm:$0xff]
    %v268 = vld [vmem:[#allocation2 + $0x160] sm:$0xff]
    %v269 = vld [vmem:[#allocation2 + $0x168] sm:$0xff]
    %v270 = vld [vmem:[#allocation2 + $0x170] sm:$0xff]
    %v271 = vld [vmem:[#allocation2 + $0x178] sm:$0xff]
    %v272 = vld [vmem:[#allocation2 + $0x180] sm:$0xff]
    %v273 = vld [vmem:[#allocation2 + $0x188] sm:$0xff]
    %v274 = vld [vmem:[#allocation2 + $0x190] sm:$0xff]
    %v275 = vld [vmem:[#allocation2 + $0x198] sm:$0xff]
    %v276 = vld [vmem:[#allocation2 + $0x1a0] sm:$0xff]
    %v277 = vld [vmem:[#allocation2 + $0x1a8] sm:$0xff]
    %v278 = vld [vmem:[#allocation2 + $0x1b0] sm:$0xff]
    %v279 = vld [vmem:[#allocation2 + $0x1b8] sm:$0xff]
    %v280 = vld [vmem:[#allocation2 + $0x1c0] sm:$0xff]
    %v281 = vld [vmem:[#allocation2 + $0x1c8] sm:$0xff]
    %v282 = vld [vmem:[#allocation2 + $0x1d0] sm:$0xff]
    %v283 = vld [vmem:[#allocation2 + $0x1d8] sm:$0xff]
    %v284 = vld [vmem:[#allocation2 + $0x1e0] sm:$0xff]
    %v285 = vld [vmem:[#allocation2 + $0x1e8] sm:$0xff]
    %v286 = vld [vmem:[#allocation2 + $0x1f0] sm:$0xff]
    %v287 = vld [vmem:[#allocation2 + $0x1f8] sm:$0xff]
    %v288 = vld [vmem:[#allocation2 + $0x200] sm:$0xff]
    %v289 = vld [vmem:[#allocation2 + $0x208] sm:$0xff]
    %v290 = vld [vmem:[#allocation2 + $0x210] sm:$0xff]
    %v291 = vld [vmem:[#allocation2 + $0x218] sm:$0xff]
    %v292 = vld [vmem:[#allocation2 + $0x220] sm:$0xff]
    %v293 = vld [vmem:[#allocation2 + $0x228] sm:$0xff]
    %v294 = vld [vmem:[#allocation2 + $0x230] sm:$0xff]
    %v295 = vld [vmem:[#allocation2 + $0x238] sm:$0xff]
    %v296 = vld [vmem:[#allocation2 + $0x240] sm:$0xff]
    %v297 = vld [vmem:[#allocation2 + $0x248] sm:$0xff]
    %v298 = vld [vmem:[#allocation2 + $0x250] sm:$0xff]
    %v299 = vld [vmem:[#allocation2 + $0x258] sm:$0xff]
    %v300 = vld [vmem:[#allocation2 + $0x260] sm:$0xff]
    %v301 = vld [vmem:[#allocation2 + $0x268] sm:$0xff]
    %v302 = vld [vmem:[#allocation2 + $0x270] sm:$0xff]
    %v303 = vld [vmem:[#allocation2 + $0x278] sm:$0xff]
    %v304 = vld [vmem:[#allocation2 + $0x280] sm:$0xff]
    %v305 = vld [vmem:[#allocation2 + $0x288] sm:$0xff]
    %v306 = vld [vmem:[#allocation2 + $0x290] sm:$0xff]
    %v307 = vld [vmem:[#allocation2 + $0x298] sm:$0xff]
    %v308 = vld [vmem:[#allocation2 + $0x2a0] sm:$0xff]
    %v309 = vld [vmem:[#allocation2 + $0x2a8] sm:$0xff]
    %v310 = vld [vmem:[#allocation2 + $0x2b0] sm:$0xff]
    %v311 = vld [vmem:[#allocation2 + $0x2b8] sm:$0xff]
    %v312 = vld [vmem:[#allocation2 + $0x2c0] sm:$0xff]
    %v313 = vld [vmem:[#allocation2 + $0x2c8] sm:$0xff]
    %v314 = vld [vmem:[#allocation2 + $0x2d0] sm:$0xff]
    %v315 = vld [vmem:[#allocation2 + $0x2d8] sm:$0xff]
    %v316 = vld [vmem:[#allocation2 + $0x2e0] sm:$0xff]
    %v317 = vld [vmem:[#allocation2 + $0x2e8] sm:$0xff]
    %v318 = vld [vmem:[#allocation2 + $0x2f0] sm:$0xff]
    %v319 = vld [vmem:[#allocation2 + $0x2f8] sm:$0xff]
    %v320 = vld [vmem:[#allocation2 + $0x300] sm:$0xff]
    %v321 = vld [vmem:[#allocation2 + $0x308] sm:$0xff]
    %v322 = vld [vmem:[#allocation2 + $0x310] sm:$0xff]
    %v323 = vld [vmem:[#allocation2 + $0x318] sm:$0xff]
    %v324 = vld [vmem:[#allocation2 + $0x320] sm:$0xff]
    %v325 = vld [vmem:[#allocation2 + $0x328] sm:$0xff]
    %v326 = vld [vmem:[#allocation2 + $0x330] sm:$0xff]
    %v327 = vld [vmem:[#allocation2 + $0x338] sm:$0xff]
    %v328 = vld [vmem:[#allocation2 + $0x340] sm:$0xff]
    %v329 = vld [vmem:[#allocation2 + $0x348] sm:$0xff]
    %v330 = vld [vmem:[#allocation2 + $0x350] sm:$0xff]
    %v331 = vld [vmem:[#allocation2 + $0x358] sm:$0xff]
    %v332 = vld [vmem:[#allocation2 + $0x360] sm:$0xff]
    %v333 = vld [vmem:[#allocation2 + $0x368] sm:$0xff]
    %v334 = vld [vmem:[#allocation2 + $0x370] sm:$0xff]
    %v335 = vld [vmem:[#allocation2 + $0x378] sm:$0xff]
    %v336 = vld [vmem:[#allocation2 + $0x380] sm:$0xff]
    %v337 = vld [vmem:[#allocation2 + $0x388] sm:$0xff]
    %v338 = vld [vmem:[#allocation2 + $0x390] sm:$0xff]
    %v339 = vld [vmem:[#allocation2 + $0x398] sm:$0xff]
    %v340 = vld [vmem:[#allocation2 + $0x3a0] sm:$0xff]
    %v341 = vld [vmem:[#allocation2 + $0x3a8] sm:$0xff]
    %v342 = vld [vmem:[#allocation2 + $0x3b0] sm:$0xff]
    %v343 = vld [vmem:[#allocation2 + $0x3b8] sm:$0xff]
    %v344 = vld [vmem:[#allocation2 + $0x3c0] sm:$0xff]
    %v345 = vld [vmem:[#allocation2 + $0x3c8] sm:$0xff]
    %v346 = vld [vmem:[#allocation2 + $0x3d0] sm:$0xff]
    %v347 = vld [vmem:[#allocation2 + $0x3d8] sm:$0xff]
    %v348 = vld [vmem:[#allocation2 + $0x3e0] sm:$0xff]
    %v349 = vld [vmem:[#allocation2 + $0x3e8] sm:$0xff]
    %v350 = vld [vmem:[#allocation2 + $0x3f0] sm:$0xff]
    %v351 = vld [vmem:[#allocation2 + $0x3f8] sm:$0xff]
    %v352 = vld [vmem:[#allocation2 + $0x400] sm:$0xff]
    %v353 = vld [vmem:[#allocation2 + $0x408] sm:$0xff]
    %v354 = vld [vmem:[#allocation2 + $0x410] sm:$0xff]
    %v355 = vld [vmem:[#allocation2 + $0x418] sm:$0xff]
    %v356 = vld [vmem:[#allocation2 + $0x420] sm:$0xff]
    %v357 = vld [vmem:[#allocation2 + $0x428] sm:$0xff]
    %v358 = vld [vmem:[#allocation2 + $0x430] sm:$0xff]
    %v359 = vld [vmem:[#allocation2 + $0x438] sm:$0xff]
    %v360 = vld [vmem:[#allocation2 + $0x440] sm:$0xff]
    %v361 = vld [vmem:[#allocation2 + $0x448] sm:$0xff]
    %v362 = vld [vmem:[#allocation2 + $0x450] sm:$0xff]
    %v363 = vld [vmem:[#allocation2 + $0x458] sm:$0xff]
    %v364 = vld [vmem:[#allocation2 + $0x460] sm:$0xff]
    %v365 = vld [vmem:[#allocation2 + $0x468] sm:$0xff]
    %v366 = vld [vmem:[#allocation2 + $0x470] sm:$0xff]
    %v367 = vld [vmem:[#allocation2 + $0x478] sm:$0xff]
    %v368 = vld [vmem:[#allocation2 + $0x480] sm:$0xff]
    %v369 = vld [vmem:[#allocation2 + $0x488] sm:$0xff]
    %v370 = vld [vmem:[#allocation2 + $0x490] sm:$0xff]
    %v371 = vld [vmem:[#allocation2 + $0x498] sm:$0xff]
    %v372 = vld [vmem:[#allocation2 + $0x4a0] sm:$0xff]
    %v373 = vld [vmem:[#allocation2 + $0x4a8] sm:$0xff]
    %v374 = vld [vmem:[#allocation2 + $0x4b0] sm:$0xff]
    %v375 = vld [vmem:[#allocation2 + $0x4b8] sm:$0xff]
    %v376 = vld [vmem:[#allocation2 + $0x4c0] sm:$0xff]
    %v377 = vld [vmem:[#allocation2 + $0x4c8] sm:$0xff]
    %v378 = vld [vmem:[#allocation2 + $0x4d0] sm:$0xff]
    %v379 = vld [vmem:[#allocation2 + $0x4d8] sm:$0xff]
    %v380 = vld [vmem:[#allocation2 + $0x4e0] sm:$0xff]
    %v381 = vld [vmem:[#allocation2 + $0x4e8] sm:$0xff]
    %v382 = vld [vmem:[#allocation2 + $0x4f0] sm:$0xff]
    %v383 = vld [vmem:[#allocation2 + $0x4f8] sm:$0xff]
    %v384 = vld [vmem:[#allocation2 + $0x500] sm:$0xff]
    %v385 = vld [vmem:[#allocation2 + $0x508] sm:$0xff]
    %v386 = vld [vmem:[#allocation2 + $0x510] sm:$0xff]
    %v387 = vld [vmem:[#allocation2 + $0x518] sm:$0xff]
    %v388 = vld [vmem:[#allocation2 + $0x520] sm:$0xff]
    %v389 = vld [vmem:[#allocation2 + $0x528] sm:$0xff]
    %v390 = vld [vmem:[#allocation2 + $0x530] sm:$0xff]
    %v391 = vld [vmem:[#allocation2 + $0x538] sm:$0xff]
    %v392 = vld [vmem:[#allocation2 + $0x540] sm:$0xff]
    %v393 = vld [vmem:[#allocation2 + $0x548] sm:$0xff]
    %v394 = vld [vmem:[#allocation2 + $0x550] sm:$0xff]
    %v395 = vld [vmem:[#allocation2 + $0x558] sm:$0xff]
    %v396 = vld [vmem:[#allocation2 + $0x560] sm:$0xff]
    %v397 = vld [vmem:[#allocation2 + $0x568] sm:$0xff]
    %v398 = vld [vmem:[#allocation2 + $0x570] sm:$0xff]
    %v399 = vld [vmem:[#allocation2 + $0x578] sm:$0xff]
    %v400 = vld [vmem:[#allocation2 + $0x580] sm:$0xff]
    %v401 = vld [vmem:[#allocation2 + $0x588] sm:$0xff]
    %v402 = vld [vmem:[#allocation2 + $0x590] sm:$0xff]
    %v403 = vld [vmem:[#allocation2 + $0x598] sm:$0xff]
    %v404 = vld [vmem:[#allocation2 + $0x5a0] sm:$0xff]
    %v405 = vld [vmem:[#allocation2 + $0x5a8] sm:$0xff]
    %v406 = vld [vmem:[#allocation2 + $0x5b0] sm:$0xff]
    %v407 = vld [vmem:[#allocation2 + $0x5b8] sm:$0xff]
    %v408 = vld [vmem:[#allocation2 + $0x5c0] sm:$0xff]
    %v409 = vld [vmem:[#allocation2 + $0x5c8] sm:$0xff]
    %v410 = vld [vmem:[#allocation2 + $0x5d0] sm:$0xff]
    %v411 = vld [vmem:[#allocation2 + $0x5d8] sm:$0xff]
    %v412 = vld [vmem:[#allocation2 + $0x5e0] sm:$0xff]
    %v413 = vld [vmem:[#allocation2 + $0x5e8] sm:$0xff]
    %v414 = vld [vmem:[#allocation2 + $0x5f0] sm:$0xff]
    %v415 = vld [vmem:[#allocation2 + $0x5f8] sm:$0xff]
    %v608 = vunpack.c.l.b16 %v224
    %v609 = vunpack.c.h.b16 %v224
    %v610 = vunpack.c.l.b16 %v225
    %v611 = vunpack.c.h.b16 %v225
    %v612 = vunpack.c.l.b16 %v226
    %v613 = vunpack.c.h.b16 %v226
    %v614 = vunpack.c.l.b16 %v227
    %v615 = vunpack.c.h.b16 %v227
    %v616 = vunpack.c.l.b16 %v228
    %v617 = vunpack.c.h.b16 %v228
    %v618 = vunpack.c.l.b16 %v229
    %v619 = vunpack.c.h.b16 %v229
    %v620 = vunpack.c.l.b16 %v230
    %v621 = vunpack.c.h.b16 %v230
    %v622 = vunpack.c.l.b16 %v231
    %v623 = vunpack.c.h.b16 %v231
    %v624 = vunpack.c.l.b16 %v232
    %v625 = vunpack.c.h.b16 %v232
    %v626 = vunpack.c.l.b16 %v233
    %v627 = vunpack.c.h.b16 %v233
    %v628 = vunpack.c.l.b16 %v234
    %v629 = vunpack.c.h.b16 %v234
    %v630 = vunpack.c.l.b16 %v235
    %v631 = vunpack.c.h.b16 %v235
    %v632 = vunpack.c.l.b16 %v236
    %v633 = vunpack.c.h.b16 %v236
    %v634 = vunpack.c.l.b16 %v237
    %v635 = vunpack.c.h.b16 %v237
    %v636 = vunpack.c.l.b16 %v238
    %v637 = vunpack.c.h.b16 %v238
    %v638 = vunpack.c.l.b16 %v239
    %v639 = vunpack.c.h.b16 %v239
    %v640 = vunpack.c.l.b16 %v240
    %v641 = vunpack.c.h.b16 %v240
    %v642 = vunpack.c.l.b16 %v241
    %v643 = vunpack.c.h.b16 %v241
    %v644 = vunpack.c.l.b16 %v242
    %v645 = vunpack.c.h.b16 %v242
    %v646 = vunpack.c.l.b16 %v243
    %v647 = vunpack.c.h.b16 %v243
    %v648 = vunpack.c.l.b16 %v244
    %v649 = vunpack.c.h.b16 %v244
    %v650 = vunpack.c.l.b16 %v245
    %v651 = vunpack.c.h.b16 %v245
    %v652 = vunpack.c.l.b16 %v246
    %v653 = vunpack.c.h.b16 %v246
    %v654 = vunpack.c.l.b16 %v247
    %v655 = vunpack.c.h.b16 %v247
    %v656 = vunpack.c.l.b16 %v248
    %v657 = vunpack.c.h.b16 %v248
    %v658 = vunpack.c.l.b16 %v249
    %v659 = vunpack.c.h.b16 %v249
    %v660 = vunpack.c.l.b16 %v250
    %v661 = vunpack.c.h.b16 %v250
    %v662 = vunpack.c.l.b16 %v251
    %v663 = vunpack.c.h.b16 %v251
    %v664 = vunpack.c.l.b16 %v252
    %v665 = vunpack.c.h.b16 %v252
    %v666 = vunpack.c.l.b16 %v253
    %v667 = vunpack.c.h.b16 %v253
    %v668 = vunpack.c.l.b16 %v254
    %v669 = vunpack.c.h.b16 %v254
    %v670 = vunpack.c.l.b16 %v255
    %v671 = vunpack.c.h.b16 %v255
    %v672 = vunpack.c.l.b16 %v256
    %v673 = vunpack.c.h.b16 %v256
    %v674 = vunpack.c.l.b16 %v257
    %v675 = vunpack.c.h.b16 %v257
    %v676 = vunpack.c.l.b16 %v258
    %v677 = vunpack.c.h.b16 %v258
    %v678 = vunpack.c.l.b16 %v259
    %v679 = vunpack.c.h.b16 %v259
    %v680 = vunpack.c.l.b16 %v260
    %v681 = vunpack.c.h.b16 %v260
    %v682 = vunpack.c.l.b16 %v261
    %v683 = vunpack.c.h.b16 %v261
    %v684 = vunpack.c.l.b16 %v262
    %v685 = vunpack.c.h.b16 %v262
    %v686 = vunpack.c.l.b16 %v263
    %v687 = vunpack.c.h.b16 %v263
    %v688 = vunpack.c.l.b16 %v264
    %v689 = vunpack.c.h.b16 %v264
    %v690 = vunpack.c.l.b16 %v265
    %v691 = vunpack.c.h.b16 %v265
    %v692 = vunpack.c.l.b16 %v266
    %v693 = vunpack.c.h.b16 %v266
    %v694 = vunpack.c.l.b16 %v267
    %v695 = vunpack.c.h.b16 %v267
    %v696 = vunpack.c.l.b16 %v268
    %v697 = vunpack.c.h.b16 %v268
    %v698 = vunpack.c.l.b16 %v269
    %v699 = vunpack.c.h.b16 %v269
    %v700 = vunpack.c.l.b16 %v270
    %v701 = vunpack.c.h.b16 %v270
    %v702 = vunpack.c.l.b16 %v271
    %v703 = vunpack.c.h.b16 %v271
    %v704 = vunpack.c.l.b16 %v272
    %v705 = vunpack.c.h.b16 %v272
    %v706 = vunpack.c.l.b16 %v273
    %v707 = vunpack.c.h.b16 %v273
    %v708 = vunpack.c.l.b16 %v274
    %v709 = vunpack.c.h.b16 %v274
    %v710 = vunpack.c.l.b16 %v275
    %v711 = vunpack.c.h.b16 %v275
    %v712 = vunpack.c.l.b16 %v276
    %v713 = vunpack.c.h.b16 %v276
    %v714 = vunpack.c.l.b16 %v277
    %v715 = vunpack.c.h.b16 %v277
    %v716 = vunpack.c.l.b16 %v278
    %v717 = vunpack.c.h.b16 %v278
    %v718 = vunpack.c.l.b16 %v279
    %v719 = vunpack.c.h.b16 %v279
    %v720 = vunpack.c.l.b16 %v280
    %v721 = vunpack.c.h.b16 %v280
    %v722 = vunpack.c.l.b16 %v281
    %v723 = vunpack.c.h.b16 %v281
    %v724 = vunpack.c.l.b16 %v282
    %v725 = vunpack.c.h.b16 %v282
    %v726 = vunpack.c.l.b16 %v283
    %v727 = vunpack.c.h.b16 %v283
    %v728 = vunpack.c.l.b16 %v284
    %v729 = vunpack.c.h.b16 %v284
    %v730 = vunpack.c.l.b16 %v285
    %v731 = vunpack.c.h.b16 %v285
    %v732 = vunpack.c.l.b16 %v286
    %v733 = vunpack.c.h.b16 %v286
    %v734 = vunpack.c.l.b16 %v287
    %v735 = vunpack.c.h.b16 %v287
    %v736 = vunpack.c.l.b16 %v288
    %v737 = vunpack.c.h.b16 %v288
    %v738 = vunpack.c.l.b16 %v289
    %v739 = vunpack.c.h.b16 %v289
    %v740 = vunpack.c.l.b16 %v290
    %v741 = vunpack.c.h.b16 %v290
    %v742 = vunpack.c.l.b16 %v291
    %v743 = vunpack.c.h.b16 %v291
    %v744 = vunpack.c.l.b16 %v292
    %v745 = vunpack.c.h.b16 %v292
    %v746 = vunpack.c.l.b16 %v293
    %v747 = vunpack.c.h.b16 %v293
    %v748 = vunpack.c.l.b16 %v294
    %v749 = vunpack.c.h.b16 %v294
    %v750 = vunpack.c.l.b16 %v295
    %v751 = vunpack.c.h.b16 %v295
    %v752 = vunpack.c.l.b16 %v296
    %v753 = vunpack.c.h.b16 %v296
    %v754 = vunpack.c.l.b16 %v297
    %v755 = vunpack.c.h.b16 %v297
    %v756 = vunpack.c.l.b16 %v298
    %v757 = vunpack.c.h.b16 %v298
    %v758 = vunpack.c.l.b16 %v299
    %v759 = vunpack.c.h.b16 %v299
    %v760 = vunpack.c.l.b16 %v300
    %v761 = vunpack.c.h.b16 %v300
    %v762 = vunpack.c.l.b16 %v301
    %v763 = vunpack.c.h.b16 %v301
    %v764 = vunpack.c.l.b16 %v302
    %v765 = vunpack.c.h.b16 %v302
    %v766 = vunpack.c.l.b16 %v303
    %v767 = vunpack.c.h.b16 %v303
    %v768 = vunpack.c.l.b16 %v304
    %v769 = vunpack.c.h.b16 %v304
    %v770 = vunpack.c.l.b16 %v305
    %v771 = vunpack.c.h.b16 %v305
    %v772 = vunpack.c.l.b16 %v306
    %v773 = vunpack.c.h.b16 %v306
    %v774 = vunpack.c.l.b16 %v307
    %v775 = vunpack.c.h.b16 %v307
    %v776 = vunpack.c.l.b16 %v308
    %v777 = vunpack.c.h.b16 %v308
    %v778 = vunpack.c.l.b16 %v309
    %v779 = vunpack.c.h.b16 %v309
    %v780 = vunpack.c.l.b16 %v310
    %v781 = vunpack.c.h.b16 %v310
    %v782 = vunpack.c.l.b16 %v311
    %v783 = vunpack.c.h.b16 %v311
    %v784 = vunpack.c.l.b16 %v312
    %v785 = vunpack.c.h.b16 %v312
    %v786 = vunpack.c.l.b16 %v313
    %v787 = vunpack.c.h.b16 %v313
    %v788 = vunpack.c.l.b16 %v314
    %v789 = vunpack.c.h.b16 %v314
    %v790 = vunpack.c.l.b16 %v315
    %v791 = vunpack.c.h.b16 %v315
    %v792 = vunpack.c.l.b16 %v316
    %v793 = vunpack.c.h.b16 %v316
    %v794 = vunpack.c.l.b16 %v317
    %v795 = vunpack.c.h.b16 %v317
    %v796 = vunpack.c.l.b16 %v318
    %v797 = vunpack.c.h.b16 %v318
    %v798 = vunpack.c.l.b16 %v319
    %v799 = vunpack.c.h.b16 %v319
    %v800 = vunpack.c.l.b16 %v320
    %v801 = vunpack.c.h.b16 %v320
    %v802 = vunpack.c.l.b16 %v321
    %v803 = vunpack.c.h.b16 %v321
    %v804 = vunpack.c.l.b16 %v322
    %v805 = vunpack.c.h.b16 %v322
    %v806 = vunpack.c.l.b16 %v323
    %v807 = vunpack.c.h.b16 %v323
    %v808 = vunpack.c.l.b16 %v324
    %v809 = vunpack.c.h.b16 %v324
    %v810 = vunpack.c.l.b16 %v325
    %v811 = vunpack.c.h.b16 %v325
    %v812 = vunpack.c.l.b16 %v326
    %v813 = vunpack.c.h.b16 %v326
    %v814 = vunpack.c.l.b16 %v327
    %v815 = vunpack.c.h.b16 %v327
    %v816 = vunpack.c.l.b16 %v328
    %v817 = vunpack.c.h.b16 %v328
    %v818 = vunpack.c.l.b16 %v329
    %v819 = vunpack.c.h.b16 %v329
    %v820 = vunpack.c.l.b16 %v330
    %v821 = vunpack.c.h.b16 %v330
    %v822 = vunpack.c.l.b16 %v331
    %v823 = vunpack.c.h.b16 %v331
    %v824 = vunpack.c.l.b16 %v332
    %v825 = vunpack.c.h.b16 %v332
    %v826 = vunpack.c.l.b16 %v333
    %v827 = vunpack.c.h.b16 %v333
    %v828 = vunpack.c.l.b16 %v334
    %v829 = vunpack.c.h.b16 %v334
    %v830 = vunpack.c.l.b16 %v335
    %v831 = vunpack.c.h.b16 %v335
    %v832 = vunpack.c.l.b16 %v336
    %v833 = vunpack.c.h.b16 %v336
    %v834 = vunpack.c.l.b16 %v337
    %v835 = vunpack.c.h.b16 %v337
    %v836 = vunpack.c.l.b16 %v338
    %v837 = vunpack.c.h.b16 %v338
    %v838 = vunpack.c.l.b16 %v339
    %v839 = vunpack.c.h.b16 %v339
    %v840 = vunpack.c.l.b16 %v340
    %v841 = vunpack.c.h.b16 %v340
    %v842 = vunpack.c.l.b16 %v341
    %v843 = vunpack.c.h.b16 %v341
    %v844 = vunpack.c.l.b16 %v342
    %v845 = vunpack.c.h.b16 %v342
    %v846 = vunpack.c.l.b16 %v343
    %v847 = vunpack.c.h.b16 %v343
    %v848 = vunpack.c.l.b16 %v344
    %v849 = vunpack.c.h.b16 %v344
    %v850 = vunpack.c.l.b16 %v345
    %v851 = vunpack.c.h.b16 %v345
    %v852 = vunpack.c.l.b16 %v346
    %v853 = vunpack.c.h.b16 %v346
    %v854 = vunpack.c.l.b16 %v347
    %v855 = vunpack.c.h.b16 %v347
    %v856 = vunpack.c.l.b16 %v348
    %v857 = vunpack.c.h.b16 %v348
    %v858 = vunpack.c.l.b16 %v349
    %v859 = vunpack.c.h.b16 %v349
    %v860 = vunpack.c.l.b16 %v350
    %v861 = vunpack.c.h.b16 %v350
    %v862 = vunpack.c.l.b16 %v351
    %v863 = vunpack.c.h.b16 %v351
    %v864 = vunpack.c.l.b16 %v352
    %v865 = vunpack.c.h.b16 %v352
    %v866 = vunpack.c.l.b16 %v353
    %v867 = vunpack.c.h.b16 %v353
    %v868 = vunpack.c.l.b16 %v354
    %v869 = vunpack.c.h.b16 %v354
    %v870 = vunpack.c.l.b16 %v355
    %v871 = vunpack.c.h.b16 %v355
    %v872 = vunpack.c.l.b16 %v356
    %v873 = vunpack.c.h.b16 %v356
    %v874 = vunpack.c.l.b16 %v357
    %v875 = vunpack.c.h.b16 %v357
    %v876 = vunpack.c.l.b16 %v358
    %v877 = vunpack.c.h.b16 %v358
    %v878 = vunpack.c.l.b16 %v359
    %v879 = vunpack.c.h.b16 %v359
    %v880 = vunpack.c.l.b16 %v360
    %v881 = vunpack.c.h.b16 %v360
    %v882 = vunpack.c.l.b16 %v361
    %v883 = vunpack.c.h.b16 %v361
    %v884 = vunpack.c.l.b16 %v362
    %v885 = vunpack.c.h.b16 %v362
    %v886 = vunpack.c.l.b16 %v363
    %v887 = vunpack.c.h.b16 %v363
    %v888 = vunpack.c.l.b16 %v364
    %v889 = vunpack.c.h.b16 %v364
    %v890 = vunpack.c.l.b16 %v365
    %v891 = vunpack.c.h.b16 %v365
    %v892 = vunpack.c.l.b16 %v366
    %v893 = vunpack.c.h.b16 %v366
    %v894 = vunpack.c.l.b16 %v367
    %v895 = vunpack.c.h.b16 %v367
    %v896 = vunpack.c.l.b16 %v368
    %v897 = vunpack.c.h.b16 %v368
    %v898 = vunpack.c.l.b16 %v369
    %v899 = vunpack.c.h.b16 %v369
    %v900 = vunpack.c.l.b16 %v370
    %v901 = vunpack.c.h.b16 %v370
    %v902 = vunpack.c.l.b16 %v371
    %v903 = vunpack.c.h.b16 %v371
    %v904 = vunpack.c.l.b16 %v372
    %v905 = vunpack.c.h.b16 %v372
    %v906 = vunpack.c.l.b16 %v373
    %v907 = vunpack.c.h.b16 %v373
    %v908 = vunpack.c.l.b16 %v374
    %v909 = vunpack.c.h.b16 %v374
    %v910 = vunpack.c.l.b16 %v375
    %v911 = vunpack.c.h.b16 %v375
    %v912 = vunpack.c.l.b16 %v376
    %v913 = vunpack.c.h.b16 %v376
    %v914 = vunpack.c.l.b16 %v377
    %v915 = vunpack.c.h.b16 %v377
    %v916 = vunpack.c.l.b16 %v378
    %v917 = vunpack.c.h.b16 %v378
    %v918 = vunpack.c.l.b16 %v379
    %v919 = vunpack.c.h.b16 %v379
    %v920 = vunpack.c.l.b16 %v380
    %v921 = vunpack.c.h.b16 %v380
    %v922 = vunpack.c.l.b16 %v381
    %v923 = vunpack.c.h.b16 %v381
    %v924 = vunpack.c.l.b16 %v382
    %v925 = vunpack.c.h.b16 %v382
    %v926 = vunpack.c.l.b16 %v383
    %v927 = vunpack.c.h.b16 %v383
    %v928 = vunpack.c.l.b16 %v384
    %v929 = vunpack.c.h.b16 %v384
    %v930 = vunpack.c.l.b16 %v385
    %v931 = vunpack.c.h.b16 %v385
    %v932 = vunpack.c.l.b16 %v386
    %v933 = vunpack.c.h.b16 %v386
    %v934 = vunpack.c.l.b16 %v387
    %v935 = vunpack.c.h.b16 %v387
    %v936 = vunpack.c.l.b16 %v388
    %v937 = vunpack.c.h.b16 %v388
    %v938 = vunpack.c.l.b16 %v389
    %v939 = vunpack.c.h.b16 %v389
    %v940 = vunpack.c.l.b16 %v390
    %v941 = vunpack.c.h.b16 %v390
    %v942 = vunpack.c.l.b16 %v391
    %v943 = vunpack.c.h.b16 %v391
    %v944 = vunpack.c.l.b16 %v392
    %v945 = vunpack.c.h.b16 %v392
    %v946 = vunpack.c.l.b16 %v393
    %v947 = vunpack.c.h.b16 %v393
    %v948 = vunpack.c.l.b16 %v394
    %v949 = vunpack.c.h.b16 %v394
    %v950 = vunpack.c.l.b16 %v395
    %v951 = vunpack.c.h.b16 %v395
    %v952 = vunpack.c.l.b16 %v396
    %v953 = vunpack.c.h.b16 %v396
    %v954 = vunpack.c.l.b16 %v397
    %v955 = vunpack.c.h.b16 %v397
    %v956 = vunpack.c.l.b16 %v398
    %v957 = vunpack.c.h.b16 %v398
    %v958 = vunpack.c.l.b16 %v399
    %v959 = vunpack.c.h.b16 %v399
    %v960 = vunpack.c.l.b16 %v400
    %v961 = vunpack.c.h.b16 %v400
    %v962 = vunpack.c.l.b16 %v401
    %v963 = vunpack.c.h.b16 %v401
    %v964 = vunpack.c.l.b16 %v402
    %v965 = vunpack.c.h.b16 %v402
    %v966 = vunpack.c.l.b16 %v403
    %v967 = vunpack.c.h.b16 %v403
    %v968 = vunpack.c.l.b16 %v404
    %v969 = vunpack.c.h.b16 %v404
    %v970 = vunpack.c.l.b16 %v405
    %v971 = vunpack.c.h.b16 %v405
    %v972 = vunpack.c.l.b16 %v406
    %v973 = vunpack.c.h.b16 %v406
    %v974 = vunpack.c.l.b16 %v407
    %v975 = vunpack.c.h.b16 %v407
    %v976 = vunpack.c.l.b16 %v408
    %v977 = vunpack.c.h.b16 %v408
    %v978 = vunpack.c.l.b16 %v409
    %v979 = vunpack.c.h.b16 %v409
    %v980 = vunpack.c.l.b16 %v410
    %v981 = vunpack.c.h.b16 %v410
    %v982 = vunpack.c.l.b16 %v411
    %v983 = vunpack.c.h.b16 %v411
    %v984 = vunpack.c.l.b16 %v412
    %v985 = vunpack.c.h.b16 %v412
    %v986 = vunpack.c.l.b16 %v413
    %v987 = vunpack.c.h.b16 %v413
    %v988 = vunpack.c.l.b16 %v414
    %v989 = vunpack.c.h.b16 %v414
    %v990 = vunpack.c.l.b16 %v415
    %v991 = vunpack.c.h.b16 %v415
    %v992 = vpack.c.b16 %v610, %v608
    %v993 = vpack.c.b16 %v611, %v609
    %v994 = vpack.c.b16 %v614, %v612
    %v995 = vpack.c.b16 %v615, %v613
    %v996 = vpack.c.b16 %v618, %v616
    %v997 = vpack.c.b16 %v619, %v617
    %v998 = vpack.c.b16 %v622, %v620
    %v999 = vpack.c.b16 %v623, %v621
    %v1000 = vpack.c.b16 %v626, %v624
    %v1001 = vpack.c.b16 %v627, %v625
    %v1002 = vpack.c.b16 %v630, %v628
    %v1003 = vpack.c.b16 %v631, %v629
    %v1004 = vpack.c.b16 %v634, %v632
    %v1005 = vpack.c.b16 %v635, %v633
    %v1006 = vpack.c.b16 %v638, %v636
    %v1007 = vpack.c.b16 %v639, %v637
    %v1008 = vpack.c.b16 %v642, %v640
    %v1009 = vpack.c.b16 %v643, %v641
    %v1010 = vpack.c.b16 %v646, %v644
    %v1011 = vpack.c.b16 %v647, %v645
    %v1012 = vpack.c.b16 %v650, %v648
    %v1013 = vpack.c.b16 %v651, %v649
    %v1014 = vpack.c.b16 %v654, %v652
    %v1015 = vpack.c.b16 %v655, %v653
    %v1016 = vpack.c.b16 %v658, %v656
    %v1017 = vpack.c.b16 %v659, %v657
    %v1018 = vpack.c.b16 %v662, %v660
    %v1019 = vpack.c.b16 %v663, %v661
    %v1020 = vpack.c.b16 %v666, %v664
    %v1021 = vpack.c.b16 %v667, %v665
    %v1022 = vpack.c.b16 %v670, %v668
    %v1023 = vpack.c.b16 %v671, %v669
    %v1024 = vpack.c.b16 %v674, %v672
    %v1025 = vpack.c.b16 %v675, %v673
    %v1026 = vpack.c.b16 %v678, %v676
    %v1027 = vpack.c.b16 %v679, %v677
    %v1028 = vpack.c.b16 %v682, %v680
    %v1029 = vpack.c.b16 %v683, %v681
    %v1030 = vpack.c.b16 %v686, %v684
    %v1031 = vpack.c.b16 %v687, %v685
    %v1032 = vpack.c.b16 %v690, %v688
    %v1033 = vpack.c.b16 %v691, %v689
    %v1034 = vpack.c.b16 %v694, %v692
    %v1035 = vpack.c.b16 %v695, %v693
    %v1036 = vpack.c.b16 %v698, %v696
    %v1037 = vpack.c.b16 %v699, %v697
    %v1038 = vpack.c.b16 %v702, %v700
    %v1039 = vpack.c.b16 %v703, %v701
    %v1040 = vpack.c.b16 %v706, %v704
    %v1041 = vpack.c.b16 %v707, %v705
    %v1042 = vpack.c.b16 %v710, %v708
    %v1043 = vpack.c.b16 %v711, %v709
    %v1044 = vpack.c.b16 %v714, %v712
    %v1045 = vpack.c.b16 %v715, %v713
    %v1046 = vpack.c.b16 %v718, %v716
    %v1047 = vpack.c.b16 %v719, %v717
    %v1048 = vpack.c.b16 %v722, %v720
    %v1049 = vpack.c.b16 %v723, %v721
    %v1050 = vpack.c.b16 %v726, %v724
    %v1051 = vpack.c.b16 %v727, %v725
    %v1052 = vpack.c.b16 %v730, %v728
    %v1053 = vpack.c.b16 %v731, %v729
    %v1054 = vpack.c.b16 %v734, %v732
    %v1055 = vpack.c.b16 %v735, %v733
    %v1056 = vpack.c.b16 %v738, %v736
    %v1057 = vpack.c.b16 %v739, %v737
    %v1058 = vpack.c.b16 %v742, %v740
    %v1059 = vpack.c.b16 %v743, %v741
    %v1060 = vpack.c.b16 %v746, %v744
    %v1061 = vpack.c.b16 %v747, %v745
    %v1062 = vpack.c.b16 %v750, %v748
    %v1063 = vpack.c.b16 %v751, %v749
    %v1064 = vpack.c.b16 %v754, %v752
    %v1065 = vpack.c.b16 %v755, %v753
    %v1066 = vpack.c.b16 %v758, %v756
    %v1067 = vpack.c.b16 %v759, %v757
    %v1068 = vpack.c.b16 %v762, %v760
    %v1069 = vpack.c.b16 %v763, %v761
    %v1070 = vpack.c.b16 %v766, %v764
    %v1071 = vpack.c.b16 %v767, %v765
    %v1072 = vpack.c.b16 %v770, %v768
    %v1073 = vpack.c.b16 %v771, %v769
    %v1074 = vpack.c.b16 %v774, %v772
    %v1075 = vpack.c.b16 %v775, %v773
    %v1076 = vpack.c.b16 %v778, %v776
    %v1077 = vpack.c.b16 %v779, %v777
    %v1078 = vpack.c.b16 %v782, %v780
    %v1079 = vpack.c.b16 %v783, %v781
    %v1080 = vpack.c.b16 %v786, %v784
    %v1081 = vpack.c.b16 %v787, %v785
    %v1082 = vpack.c.b16 %v790, %v788
    %v1083 = vpack.c.b16 %v791, %v789
    %v1084 = vpack.c.b16 %v794, %v792
    %v1085 = vpack.c.b16 %v795, %v793
    %v1086 = vpack.c.b16 %v798, %v796
    %v1087 = vpack.c.b16 %v799, %v797
    %v1088 = vpack.c.b16 %v802, %v800
    %v1089 = vpack.c.b16 %v803, %v801
    %v1090 = vpack.c.b16 %v806, %v804
    %v1091 = vpack.c.b16 %v807, %v805
    %v1092 = vpack.c.b16 %v810, %v808
    %v1093 = vpack.c.b16 %v811, %v809
    %v1094 = vpack.c.b16 %v814, %v812
    %v1095 = vpack.c.b16 %v815, %v813
    %v1096 = vpack.c.b16 %v818, %v816
    %v1097 = vpack.c.b16 %v819, %v817
    %v1098 = vpack.c.b16 %v822, %v820
    %v1099 = vpack.c.b16 %v823, %v821
    %v1100 = vpack.c.b16 %v826, %v824
    %v1101 = vpack.c.b16 %v827, %v825
    %v1102 = vpack.c.b16 %v830, %v828
    %v1103 = vpack.c.b16 %v831, %v829
    %v1104 = vpack.c.b16 %v834, %v832
    %v1105 = vpack.c.b16 %v835, %v833
    %v1106 = vpack.c.b16 %v838, %v836
    %v1107 = vpack.c.b16 %v839, %v837
    %v1108 = vpack.c.b16 %v842, %v840
    %v1109 = vpack.c.b16 %v843, %v841
    %v1110 = vpack.c.b16 %v846, %v844
    %v1111 = vpack.c.b16 %v847, %v845
    %v1112 = vpack.c.b16 %v850, %v848
    %v1113 = vpack.c.b16 %v851, %v849
    %v1114 = vpack.c.b16 %v854, %v852
    %v1115 = vpack.c.b16 %v855, %v853
    %v1116 = vpack.c.b16 %v858, %v856
    %v1117 = vpack.c.b16 %v859, %v857
    %v1118 = vpack.c.b16 %v862, %v860
    %v1119 = vpack.c.b16 %v863, %v861
    %v1120 = vpack.c.b16 %v866, %v864
    %v1121 = vpack.c.b16 %v867, %v865
    %v1122 = vpack.c.b16 %v870, %v868
    %v1123 = vpack.c.b16 %v871, %v869
    %v1124 = vpack.c.b16 %v874, %v872
    %v1125 = vpack.c.b16 %v875, %v873
    %v1126 = vpack.c.b16 %v878, %v876
    %v1127 = vpack.c.b16 %v879, %v877
    %v1128 = vpack.c.b16 %v882, %v880
    %v1129 = vpack.c.b16 %v883, %v881
    %v1130 = vpack.c.b16 %v886, %v884
    %v1131 = vpack.c.b16 %v887, %v885
    %v1132 = vpack.c.b16 %v890, %v888
    %v1133 = vpack.c.b16 %v891, %v889
    %v1134 = vpack.c.b16 %v894, %v892
    %v1135 = vpack.c.b16 %v895, %v893
    %v1136 = vpack.c.b16 %v898, %v896
    %v1137 = vpack.c.b16 %v899, %v897
    %v1138 = vpack.c.b16 %v902, %v900
    %v1139 = vpack.c.b16 %v903, %v901
    %v1140 = vpack.c.b16 %v906, %v904
    %v1141 = vpack.c.b16 %v907, %v905
    %v1142 = vpack.c.b16 %v910, %v908
    %v1143 = vpack.c.b16 %v911, %v909
    %v1144 = vpack.c.b16 %v914, %v912
    %v1145 = vpack.c.b16 %v915, %v913
    %v1146 = vpack.c.b16 %v918, %v916
    %v1147 = vpack.c.b16 %v919, %v917
    %v1148 = vpack.c.b16 %v922, %v920
    %v1149 = vpack.c.b16 %v923, %v921
    %v1150 = vpack.c.b16 %v926, %v924
    %v1151 = vpack.c.b16 %v927, %v925
    %v1152 = vpack.c.b16 %v930, %v928
    %v1153 = vpack.c.b16 %v931, %v929
    %v1154 = vpack.c.b16 %v934, %v932
    %v1155 = vpack.c.b16 %v935, %v933
    %v1156 = vpack.c.b16 %v938, %v936
    %v1157 = vpack.c.b16 %v939, %v937
    %v1158 = vpack.c.b16 %v942, %v940
    %v1159 = vpack.c.b16 %v943, %v941
    %v1160 = vpack.c.b16 %v946, %v944
    %v1161 = vpack.c.b16 %v947, %v945
    %v1162 = vpack.c.b16 %v950, %v948
    %v1163 = vpack.c.b16 %v951, %v949
    %v1164 = vpack.c.b16 %v954, %v952
    %v1165 = vpack.c.b16 %v955, %v953
    %v1166 = vpack.c.b16 %v958, %v956
    %v1167 = vpack.c.b16 %v959, %v957
    %v1168 = vpack.c.b16 %v962, %v960
    %v1169 = vpack.c.b16 %v963, %v961
    %v1170 = vpack.c.b16 %v966, %v964
    %v1171 = vpack.c.b16 %v967, %v965
    %v1172 = vpack.c.b16 %v970, %v968
    %v1173 = vpack.c.b16 %v971, %v969
    %v1174 = vpack.c.b16 %v974, %v972
    %v1175 = vpack.c.b16 %v975, %v973
    %v1176 = vpack.c.b16 %v978, %v976
    %v1177 = vpack.c.b16 %v979, %v977
    %v1178 = vpack.c.b16 %v982, %v980
    %v1179 = vpack.c.b16 %v983, %v981
    %v1180 = vpack.c.b16 %v986, %v984
    %v1181 = vpack.c.b16 %v987, %v985
    %v1182 = vpack.c.b16 %v990, %v988
    %v1183 = vpack.c.b16 %v991, %v989
    %1376 = vmatpush.bf16.msra.mxu0 %v1006
    %1377 = vmatpush.bf16.msra.mxu0 %v1004
    %1378 = vmatpush.bf16.msra.mxu0 %v1002
    %1379 = vmatpush.bf16.msra.mxu0 %v1000
    %1380 = vmatpush.bf16.msra.mxu0 %v998
    %1381 = vmatpush.bf16.msra.mxu0 %v996
    %1382 = vmatpush.bf16.msra.mxu0 %v994
    %1383 = vmatpush.bf16.msra.mxu0 %v992
    %1384 = vmatmul.bf16.gmra.mxu0 %v175
    %v1385 = vpop.f32.mrf.mxu0
    %v1386 = vadd.f32 0.0, %v1385
    %v1387 = vpop.f32.mrf.mxu0
    %v1388 = vadd.f32 0.0, %v1387
    %1389 = vmatmul.bf16.gmra.mxu0 %v161
    %v1390 = vpop.f32.mrf.mxu0
    %v1391 = vadd.f32 0.0, %v1390
    %v1392 = vpop.f32.mrf.mxu0
    %v1393 = vadd.f32 0.0, %v1392
    %1394 = vdwg.mxu0
    %1395 = vmatpush.bf16.msra.mxu0 %v1022
    %1396 = vmatpush.bf16.msra.mxu0 %v1020
    %1397 = vmatpush.bf16.msra.mxu0 %v1018
    %1398 = vmatpush.bf16.msra.mxu0 %v1016
    %1399 = vmatpush.bf16.msra.mxu0 %v1014
    %1400 = vmatpush.bf16.msra.mxu0 %v1012
    %1401 = vmatpush.bf16.msra.mxu0 %v1010
    %1402 = vmatpush.bf16.msra.mxu0 %v1008
    %1403 = vmatmul.bf16.gmra.mxu0 %v178
    %v1404 = vpop.f32.mrf.mxu0
    %v1405 = vadd.f32 %v1386, %v1404
    %v1406 = vpop.f32.mrf.mxu0
    %v1407 = vadd.f32 %v1388, %v1406
    %1408 = vmatmul.bf16.gmra.mxu0 %v163
    %v1409 = vpop.f32.mrf.mxu0
    %v1410 = vadd.f32 %v1391, %v1409
    %v1411 = vpop.f32.mrf.mxu0
    %v1412 = vadd.f32 %v1393, %v1411
    %1413 = vdwg.mxu0
    %1414 = vmatpush.bf16.msra.mxu0 %v1038
    %1415 = vmatpush.bf16.msra.mxu0 %v1036
    %1416 = vmatpush.bf16.msra.mxu0 %v1034
    %1417 = vmatpush.bf16.msra.mxu0 %v1032
    %1418 = vmatpush.bf16.msra.mxu0 %v1030
    %1419 = vmatpush.bf16.msra.mxu0 %v1028
    %1420 = vmatpush.bf16.msra.mxu0 %v1026
    %1421 = vmatpush.bf16.msra.mxu0 %v1024
    %1422 = vmatmul.bf16.gmra.mxu0 %v181
    %v1423 = vpop.f32.mrf.mxu0
    %v1424 = vadd.f32 %v1405, %v1423
    %v1425 = vpop.f32.mrf.mxu0
    %v1426 = vadd.f32 %v1407, %v1425
    %1427 = vmatmul.bf16.gmra.mxu0 %v165
    %v1428 = vpop.f32.mrf.mxu0
    %v1429 = vadd.f32 %v1410, %v1428
    %v1430 = vpop.f32.mrf.mxu0
    %v1431 = vadd.f32 %v1412, %v1430
    %1432 = vdwg.mxu0
    %1433 = vmatpush.bf16.msra.mxu0 %v1054
    %1434 = vmatpush.bf16.msra.mxu0 %v1052
    %1435 = vmatpush.bf16.msra.mxu0 %v1050
    %1436 = vmatpush.bf16.msra.mxu0 %v1048
    %1437 = vmatpush.bf16.msra.mxu0 %v1046
    %1438 = vmatpush.bf16.msra.mxu0 %v1044
    %1439 = vmatpush.bf16.msra.mxu0 %v1042
    %1440 = vmatpush.bf16.msra.mxu0 %v1040
    %1441 = vmatmul.bf16.gmra.mxu0 %v184
    %v1442 = vpop.f32.mrf.mxu0
    %v1443 = vadd.f32 %v1424, %v1442
    %v1444 = vpop.f32.mrf.mxu0
    %v1445 = vadd.f32 %v1426, %v1444
    %1446 = vmatmul.bf16.gmra.mxu0 %v167
    %v1447 = vpop.f32.mrf.mxu0
    %v1448 = vadd.f32 %v1429, %v1447
    %v1449 = vpop.f32.mrf.mxu0
    %v1450 = vadd.f32 %v1431, %v1449
    %1451 = vdwg.mxu0
    %1452 = vmatpush.bf16.msra.mxu0 %v1070
    %1453 = vmatpush.bf16.msra.mxu0 %v1068
    %1454 = vmatpush.bf16.msra.mxu0 %v1066
    %1455 = vmatpush.bf16.msra.mxu0 %v1064
    %1456 = vmatpush.bf16.msra.mxu0 %v1062
    %1457 = vmatpush.bf16.msra.mxu0 %v1060
    %1458 = vmatpush.bf16.msra.mxu0 %v1058
    %1459 = vmatpush.bf16.msra.mxu0 %v1056
    %1460 = vmatmul.bf16.gmra.mxu0 %v147
    %v1461 = vpop.f32.mrf.mxu0
    %v1462 = vadd.f32 %v1443, %v1461
    %v1463 = vpop.f32.mrf.mxu0
    %v1464 = vadd.f32 %v1445, %v1463
    %1465 = vmatmul.bf16.gmra.mxu0 %v151
    %v1466 = vpop.f32.mrf.mxu0
    %v1467 = vadd.f32 %v1448, %v1466
    %v1468 = vpop.f32.mrf.mxu0
    %v1469 = vadd.f32 %v1450, %v1468
    %1470 = vdwg.mxu0
    %1471 = vmatpush.bf16.msra.mxu0 %v1086
    %1472 = vmatpush.bf16.msra.mxu0 %v1084
    %1473 = vmatpush.bf16.msra.mxu0 %v1082
    %1474 = vmatpush.bf16.msra.mxu0 %v1080
    %1475 = vmatpush.bf16.msra.mxu0 %v1078
    %1476 = vmatpush.bf16.msra.mxu0 %v1076
    %1477 = vmatpush.bf16.msra.mxu0 %v1074
    %1478 = vmatpush.bf16.msra.mxu0 %v1072
    %1479 = vmatmul.bf16.gmra.mxu0 %v148
    %v1480 = vpop.f32.mrf.mxu0
    %v1481 = vadd.f32 %v1462, %v1480
    %v1482 = vpop.f32.mrf.mxu0
    %v1483 = vadd.f32 %v1464, %v1482
    %1484 = vmatmul.bf16.gmra.mxu0 %v152
    %v1485 = vpop.f32.mrf.mxu0
    %v1486 = vadd.f32 %v1467, %v1485
    %v1487 = vpop.f32.mrf.mxu0
    %v1488 = vadd.f32 %v1469, %v1487
    %1489 = vdwg.mxu0
    %1490 = vmatpush.bf16.msra.mxu0 %v1102
    %1491 = vmatpush.bf16.msra.mxu0 %v1100
    %1492 = vmatpush.bf16.msra.mxu0 %v1098
    %1493 = vmatpush.bf16.msra.mxu0 %v1096
    %1494 = vmatpush.bf16.msra.mxu0 %v1094
    %1495 = vmatpush.bf16.msra.mxu0 %v1092
    %1496 = vmatpush.bf16.msra.mxu0 %v1090
    %1497 = vmatpush.bf16.msra.mxu0 %v1088
    %1498 = vmatmul.bf16.gmra.mxu0 %v149
    %v1499 = vpop.f32.mrf.mxu0
    %v1500 = vadd.f32 %v1481, %v1499
    %v1501 = vpop.f32.mrf.mxu0
    %v1502 = vadd.f32 %v1483, %v1501
    %1503 = vmatmul.bf16.gmra.mxu0 %v153
    %v1504 = vpop.f32.mrf.mxu0
    %v1505 = vadd.f32 %v1486, %v1504
    %v1506 = vpop.f32.mrf.mxu0
    %v1507 = vadd.f32 %v1488, %v1506
    %1508 = vdwg.mxu0
    %1509 = vmatpush.bf16.msra.mxu0 %v1118
    %1510 = vmatpush.bf16.msra.mxu0 %v1116
    %1511 = vmatpush.bf16.msra.mxu0 %v1114
    %1512 = vmatpush.bf16.msra.mxu0 %v1112
    %1513 = vmatpush.bf16.msra.mxu0 %v1110
    %1514 = vmatpush.bf16.msra.mxu0 %v1108
    %1515 = vmatpush.bf16.msra.mxu0 %v1106
    %1516 = vmatpush.bf16.msra.mxu0 %v1104
    %1517 = vmatmul.bf16.gmra.mxu0 %v150
    %v1518 = vpop.f32.mrf.mxu0
    %v1519 = vadd.f32 %v1500, %v1518
    %v1520 = vpop.f32.mrf.mxu0
    %v1521 = vadd.f32 %v1502, %v1520
    %1522 = vmatmul.bf16.gmra.mxu0 %v154
    %v1523 = vpop.f32.mrf.mxu0
    %v1524 = vadd.f32 %v1505, %v1523
    %v1525 = vpop.f32.mrf.mxu0
    %v1526 = vadd.f32 %v1507, %v1525
    %1527 = vdwg.mxu0
    %1528 = vmatpush.bf16.msra.mxu0 %v1134
    %1529 = vmatpush.bf16.msra.mxu0 %v1132
    %1530 = vmatpush.bf16.msra.mxu0 %v1130
    %1531 = vmatpush.bf16.msra.mxu0 %v1128
    %1532 = vmatpush.bf16.msra.mxu0 %v1126
    %1533 = vmatpush.bf16.msra.mxu0 %v1124
    %1534 = vmatpush.bf16.msra.mxu0 %v1122
    %1535 = vmatpush.bf16.msra.mxu0 %v1120
    %1536 = vmatmul.bf16.gmra.mxu0 %v189
    %v1537 = vpop.f32.mrf.mxu0
    %v1538 = vadd.f32 %v1519, %v1537
    %v1539 = vpop.f32.mrf.mxu0
    %v1540 = vadd.f32 %v1521, %v1539
    %1541 = vmatmul.bf16.gmra.mxu0 %v205
    %v1542 = vpop.f32.mrf.mxu0
    %v1543 = vadd.f32 %v1524, %v1542
    %v1544 = vpop.f32.mrf.mxu0
    %v1545 = vadd.f32 %v1526, %v1544
    %1546 = vdwg.mxu0
    %1547 = vmatpush.bf16.msra.mxu0 %v1150
    %1548 = vmatpush.bf16.msra.mxu0 %v1148
    %1549 = vmatpush.bf16.msra.mxu0 %v1146
    %1550 = vmatpush.bf16.msra.mxu0 %v1144
    %1551 = vmatpush.bf16.msra.mxu0 %v1142
    %1552 = vmatpush.bf16.msra.mxu0 %v1140
    %1553 = vmatpush.bf16.msra.mxu0 %v1138
    %1554 = vmatpush.bf16.msra.mxu0 %v1136
    %1555 = vmatmul.bf16.gmra.mxu0 %v192
    %v1556 = vpop.f32.mrf.mxu0
    %v1557 = vadd.f32 %v1538, %v1556
    %v1558 = vpop.f32.mrf.mxu0
    %v1559 = vadd.f32 %v1540, %v1558
    %1560 = vmatmul.bf16.gmra.mxu0 %v208
    %v1561 = vpop.f32.mrf.mxu0
    %v1562 = vadd.f32 %v1543, %v1561
    %v1563 = vpop.f32.mrf.mxu0
    %v1564 = vadd.f32 %v1545, %v1563
    %1565 = vdwg.mxu0
    %1566 = vmatpush.bf16.msra.mxu0 %v1166
    %1567 = vmatpush.bf16.msra.mxu0 %v1164
    %1568 = vmatpush.bf16.msra.mxu0 %v1162
    %1569 = vmatpush.bf16.msra.mxu0 %v1160
    %1570 = vmatpush.bf16.msra.mxu0 %v1158
    %1571 = vmatpush.bf16.msra.mxu0 %v1156
    %1572 = vmatpush.bf16.msra.mxu0 %v1154
    %1573 = vmatpush.bf16.msra.mxu0 %v1152
    %1574 = vmatmul.bf16.gmra.mxu0 %v195
    %v1575 = vpop.f32.mrf.mxu0
    %v1576 = vadd.f32 %v1557, %v1575
    %v1577 = vpop.f32.mrf.mxu0
    %v1578 = vadd.f32 %v1559, %v1577
    %1579 = vmatmul.bf16.gmra.mxu0 %v211
    %v1580 = vpop.f32.mrf.mxu0
    %v1581 = vadd.f32 %v1562, %v1580
    %v1582 = vpop.f32.mrf.mxu0
    %v1583 = vadd.f32 %v1564, %v1582
    %1584 = vdwg.mxu0
    %1585 = vmatpush.bf16.msra.mxu0 %v1182
    %1586 = vmatpush.bf16.msra.mxu0 %v1180
    %1587 = vmatpush.bf16.msra.mxu0 %v1178
    %1588 = vmatpush.bf16.msra.mxu0 %v1176
    %1589 = vmatpush.bf16.msra.mxu0 %v1174
    %1590 = vmatpush.bf16.msra.mxu0 %v1172
    %1591 = vmatpush.bf16.msra.mxu0 %v1170
    %1592 = vmatpush.bf16.msra.mxu0 %v1168
    %1593 = vmatmul.bf16.gmra.mxu0 %v198
    %v1594 = vpop.f32.mrf.mxu0
    %v1595 = vadd.f32 %v1576, %v1594
    %v1596 = vpop.f32.mrf.mxu0
    %v1597 = vadd.f32 %v1578, %v1596
    %1598 = vmatmul.bf16.gmra.mxu0 %v214
    %v1599 = vpop.f32.mrf.mxu0
    %v1600 = vadd.f32 %v1581, %v1599
    %v1601 = vpop.f32.mrf.mxu0
    %v1602 = vadd.f32 %v1583, %v1601
    %1603 = vdwg.mxu0
    %1604 = vmatpush.bf16.msra.mxu0 %v1007
    %1605 = vmatpush.bf16.msra.mxu0 %v1005
    %1606 = vmatpush.bf16.msra.mxu0 %v1003
    %1607 = vmatpush.bf16.msra.mxu0 %v1001
    %1608 = vmatpush.bf16.msra.mxu0 %v999
    %1609 = vmatpush.bf16.msra.mxu0 %v997
    %1610 = vmatpush.bf16.msra.mxu0 %v995
    %1611 = vmatpush.bf16.msra.mxu0 %v993
    %1612 = vmatmul.bf16.gmra.mxu0 %v175
    %v1613 = vpop.f32.mrf.mxu0
    %v1614 = vadd.f32 0.0, %v1613
    %v1615 = vpop.f32.mrf.mxu0
    %v1616 = vadd.f32 0.0, %v1615
    %1617 = vmatmul.bf16.gmra.mxu0 %v161
    %v1618 = vpop.f32.mrf.mxu0
    %v1619 = vadd.f32 0.0, %v1618
    %v1620 = vpop.f32.mrf.mxu0
    %v1621 = vadd.f32 0.0, %v1620
    %1622 = vdwg.mxu0
    %1623 = vmatpush.bf16.msra.mxu0 %v1023
    %1624 = vmatpush.bf16.msra.mxu0 %v1021
    %1625 = vmatpush.bf16.msra.mxu0 %v1019
    %1626 = vmatpush.bf16.msra.mxu0 %v1017
    %1627 = vmatpush.bf16.msra.mxu0 %v1015
    %1628 = vmatpush.bf16.msra.mxu0 %v1013
    %1629 = vmatpush.bf16.msra.mxu0 %v1011
    %1630 = vmatpush.bf16.msra.mxu0 %v1009
    %1631 = vmatmul.bf16.gmra.mxu0 %v178
    %v1632 = vpop.f32.mrf.mxu0
    %v1633 = vadd.f32 %v1614, %v1632
    %v1634 = vpop.f32.mrf.mxu0
    %v1635 = vadd.f32 %v1616, %v1634
    %1636 = vmatmul.bf16.gmra.mxu0 %v163
    %v1637 = vpop.f32.mrf.mxu0
    %v1638 = vadd.f32 %v1619, %v1637
    %v1639 = vpop.f32.mrf.mxu0
    %v1640 = vadd.f32 %v1621, %v1639
    %1641 = vdwg.mxu0
    %1642 = vmatpush.bf16.msra.mxu0 %v1039
    %1643 = vmatpush.bf16.msra.mxu0 %v1037
    %1644 = vmatpush.bf16.msra.mxu0 %v1035
    %1645 = vmatpush.bf16.msra.mxu0 %v1033
    %1646 = vmatpush.bf16.msra.mxu0 %v1031
    %1647 = vmatpush.bf16.msra.mxu0 %v1029
    %1648 = vmatpush.bf16.msra.mxu0 %v1027
    %1649 = vmatpush.bf16.msra.mxu0 %v1025
    %1650 = vmatmul.bf16.gmra.mxu0 %v181
    %v1651 = vpop.f32.mrf.mxu0
    %v1652 = vadd.f32 %v1633, %v1651
    %v1653 = vpop.f32.mrf.mxu0
    %v1654 = vadd.f32 %v1635, %v1653
    %1655 = vmatmul.bf16.gmra.mxu0 %v165
    %v1656 = vpop.f32.mrf.mxu0
    %v1657 = vadd.f32 %v1638, %v1656
    %v1658 = vpop.f32.mrf.mxu0
    %v1659 = vadd.f32 %v1640, %v1658
    %1660 = vdwg.mxu0
    %1661 = vmatpush.bf16.msra.mxu0 %v1055
    %1662 = vmatpush.bf16.msra.mxu0 %v1053
    %1663 = vmatpush.bf16.msra.mxu0 %v1051
    %1664 = vmatpush.bf16.msra.mxu0 %v1049
    %1665 = vmatpush.bf16.msra.mxu0 %v1047
    %1666 = vmatpush.bf16.msra.mxu0 %v1045
    %1667 = vmatpush.bf16.msra.mxu0 %v1043
    %1668 = vmatpush.bf16.msra.mxu0 %v1041
    %1669 = vmatmul.bf16.gmra.mxu0 %v184
    %v1670 = vpop.f32.mrf.mxu0
    %v1671 = vadd.f32 %v1652, %v1670
    %v1672 = vpop.f32.mrf.mxu0
    %v1673 = vadd.f32 %v1654, %v1672
    %1674 = vmatmul.bf16.gmra.mxu0 %v167
    %v1675 = vpop.f32.mrf.mxu0
    %v1676 = vadd.f32 %v1657, %v1675
    %v1677 = vpop.f32.mrf.mxu0
    %v1678 = vadd.f32 %v1659, %v1677
    %1679 = vdwg.mxu0
    %1680 = vmatpush.bf16.msra.mxu0 %v1071
    %1681 = vmatpush.bf16.msra.mxu0 %v1069
    %1682 = vmatpush.bf16.msra.mxu0 %v1067
    %1683 = vmatpush.bf16.msra.mxu0 %v1065
    %1684 = vmatpush.bf16.msra.mxu0 %v1063
    %1685 = vmatpush.bf16.msra.mxu0 %v1061
    %1686 = vmatpush.bf16.msra.mxu0 %v1059
    %1687 = vmatpush.bf16.msra.mxu0 %v1057
    %1688 = vmatmul.bf16.gmra.mxu0 %v147
    %v1689 = vpop.f32.mrf.mxu0
    %v1690 = vadd.f32 %v1671, %v1689
    %v1691 = vpop.f32.mrf.mxu0
    %v1692 = vadd.f32 %v1673, %v1691
    %1693 = vmatmul.bf16.gmra.mxu0 %v151
    %v1694 = vpop.f32.mrf.mxu0
    %v1695 = vadd.f32 %v1676, %v1694
    %v1696 = vpop.f32.mrf.mxu0
    %v1697 = vadd.f32 %v1678, %v1696
    %1698 = vdwg.mxu0
    %1699 = vmatpush.bf16.msra.mxu0 %v1087
    %1700 = vmatpush.bf16.msra.mxu0 %v1085
    %1701 = vmatpush.bf16.msra.mxu0 %v1083
    %1702 = vmatpush.bf16.msra.mxu0 %v1081
    %1703 = vmatpush.bf16.msra.mxu0 %v1079
    %1704 = vmatpush.bf16.msra.mxu0 %v1077
    %1705 = vmatpush.bf16.msra.mxu0 %v1075
    %1706 = vmatpush.bf16.msra.mxu0 %v1073
    %1707 = vmatmul.bf16.gmra.mxu0 %v148
    %v1708 = vpop.f32.mrf.mxu0
    %v1709 = vadd.f32 %v1690, %v1708
    %v1710 = vpop.f32.mrf.mxu0
    %v1711 = vadd.f32 %v1692, %v1710
    %1712 = vmatmul.bf16.gmra.mxu0 %v152
    %v1713 = vpop.f32.mrf.mxu0
    %v1714 = vadd.f32 %v1695, %v1713
    %v1715 = vpop.f32.mrf.mxu0
    %v1716 = vadd.f32 %v1697, %v1715
    %1717 = vdwg.mxu0
    %1718 = vmatpush.bf16.msra.mxu0 %v1103
    %1719 = vmatpush.bf16.msra.mxu0 %v1101
    %1720 = vmatpush.bf16.msra.mxu0 %v1099
    %1721 = vmatpush.bf16.msra.mxu0 %v1097
    %1722 = vmatpush.bf16.msra.mxu0 %v1095
    %1723 = vmatpush.bf16.msra.mxu0 %v1093
    %1724 = vmatpush.bf16.msra.mxu0 %v1091
    %1725 = vmatpush.bf16.msra.mxu0 %v1089
    %1726 = vmatmul.bf16.gmra.mxu0 %v149
    %v1727 = vpop.f32.mrf.mxu0
    %v1728 = vadd.f32 %v1709, %v1727
    %v1729 = vpop.f32.mrf.mxu0
    %v1730 = vadd.f32 %v1711, %v1729
    %1731 = vmatmul.bf16.gmra.mxu0 %v153
    %v1732 = vpop.f32.mrf.mxu0
    %v1733 = vadd.f32 %v1714, %v1732
    %v1734 = vpop.f32.mrf.mxu0
    %v1735 = vadd.f32 %v1716, %v1734
    %1736 = vdwg.mxu0
    %1737 = vmatpush.bf16.msra.mxu0 %v1119
    %1738 = vmatpush.bf16.msra.mxu0 %v1117
    %1739 = vmatpush.bf16.msra.mxu0 %v1115
    %1740 = vmatpush.bf16.msra.mxu0 %v1113
    %1741 = vmatpush.bf16.msra.mxu0 %v1111
    %1742 = vmatpush.bf16.msra.mxu0 %v1109
    %1743 = vmatpush.bf16.msra.mxu0 %v1107
    %1744 = vmatpush.bf16.msra.mxu0 %v1105
    %1745 = vmatmul.bf16.gmra.mxu0 %v150
    %v1746 = vpop.f32.mrf.mxu0
    %v1747 = vadd.f32 %v1728, %v1746
    %v1748 = vpop.f32.mrf.mxu0
    %v1749 = vadd.f32 %v1730, %v1748
    %1750 = vmatmul.bf16.gmra.mxu0 %v154
    %v1751 = vpop.f32.mrf.mxu0
    %v1752 = vadd.f32 %v1733, %v1751
    %v1753 = vpop.f32.mrf.mxu0
    %v1754 = vadd.f32 %v1735, %v1753
    %1755 = vdwg.mxu0
    %1756 = vmatpush.bf16.msra.mxu0 %v1135
    %1757 = vmatpush.bf16.msra.mxu0 %v1133
    %1758 = vmatpush.bf16.msra.mxu0 %v1131
    %1759 = vmatpush.bf16.msra.mxu0 %v1129
    %1760 = vmatpush.bf16.msra.mxu0 %v1127
    %1761 = vmatpush.bf16.msra.mxu0 %v1125
    %1762 = vmatpush.bf16.msra.mxu0 %v1123
    %1763 = vmatpush.bf16.msra.mxu0 %v1121
    %1764 = vmatmul.bf16.gmra.mxu0 %v189
    %v1765 = vpop.f32.mrf.mxu0
    %v1766 = vadd.f32 %v1747, %v1765
    %v1767 = vpop.f32.mrf.mxu0
    %v1768 = vadd.f32 %v1749, %v1767
    %1769 = vmatmul.bf16.gmra.mxu0 %v205
    %v1770 = vpop.f32.mrf.mxu0
    %v1771 = vadd.f32 %v1752, %v1770
    %v1772 = vpop.f32.mrf.mxu0
    %v1773 = vadd.f32 %v1754, %v1772
    %1774 = vdwg.mxu0
    %1775 = vmatpush.bf16.msra.mxu0 %v1151
    %1776 = vmatpush.bf16.msra.mxu0 %v1149
    %1777 = vmatpush.bf16.msra.mxu0 %v1147
    %1778 = vmatpush.bf16.msra.mxu0 %v1145
    %1779 = vmatpush.bf16.msra.mxu0 %v1143
    %1780 = vmatpush.bf16.msra.mxu0 %v1141
    %1781 = vmatpush.bf16.msra.mxu0 %v1139
    %1782 = vmatpush.bf16.msra.mxu0 %v1137
    %1783 = vmatmul.bf16.gmra.mxu0 %v192
    %v1784 = vpop.f32.mrf.mxu0
    %v1785 = vadd.f32 %v1766, %v1784
    %v1786 = vpop.f32.mrf.mxu0
    %v1787 = vadd.f32 %v1768, %v1786
    %1788 = vmatmul.bf16.gmra.mxu0 %v208
    %v1789 = vpop.f32.mrf.mxu0
    %v1790 = vadd.f32 %v1771, %v1789
    %v1791 = vpop.f32.mrf.mxu0
    %v1792 = vadd.f32 %v1773, %v1791
    %1793 = vdwg.mxu0
    %1794 = vmatpush.bf16.msra.mxu0 %v1167
    %1795 = vmatpush.bf16.msra.mxu0 %v1165
    %1796 = vmatpush.bf16.msra.mxu0 %v1163
    %1797 = vmatpush.bf16.msra.mxu0 %v1161
    %1798 = vmatpush.bf16.msra.mxu0 %v1159
    %1799 = vmatpush.bf16.msra.mxu0 %v1157
    %1800 = vmatpush.bf16.msra.mxu0 %v1155
    %1801 = vmatpush.bf16.msra.mxu0 %v1153
    %1802 = vmatmul.bf16.gmra.mxu0 %v195
    %v1803 = vpop.f32.mrf.mxu0
    %v1804 = vadd.f32 %v1785, %v1803
    %v1805 = vpop.f32.mrf.mxu0
    %v1806 = vadd.f32 %v1787, %v1805
    %1807 = vmatmul.bf16.gmra.mxu0 %v211
    %v1808 = vpop.f32.mrf.mxu0
    %v1809 = vadd.f32 %v1790, %v1808
    %v1810 = vpop.f32.mrf.mxu0
    %v1811 = vadd.f32 %v1792, %v1810
    %1812 = vdwg.mxu0
    %1813 = vmatpush.bf16.msra.mxu0 %v1183
    %1814 = vmatpush.bf16.msra.mxu0 %v1181
    %1815 = vmatpush.bf16.msra.mxu0 %v1179
    %1816 = vmatpush.bf16.msra.mxu0 %v1177
    %1817 = vmatpush.bf16.msra.mxu0 %v1175
    %1818 = vmatpush.bf16.msra.mxu0 %v1173
    %1819 = vmatpush.bf16.msra.mxu0 %v1171
    %1820 = vmatpush.bf16.msra.mxu0 %v1169
    %1821 = vmatmul.bf16.gmra.mxu0 %v198
    %v1822 = vpop.f32.mrf.mxu0
    %v1823 = vadd.f32 %v1804, %v1822
    %v1824 = vpop.f32.mrf.mxu0
    %v1825 = vadd.f32 %v1806, %v1824
    %1826 = vmatmul.bf16.gmra.mxu0 %v214
    %v1827 = vpop.f32.mrf.mxu0
    %v1828 = vadd.f32 %v1809, %v1827
    %v1829 = vpop.f32.mrf.mxu0
    %v1830 = vadd.f32 %v1811, %v1829
    %1831 = vdwg.mxu0
    %v1832 = vadd.f32 %v1595, %v1597
    %v1833 = vadd.f32 %v1832, %v1600
    %v1834 = vadd.f32 %v1833, %v1602
    %v1835 = vrot.slane %v1834, 4
    %v1836 = vadd.f32 %v1834, %v1835
    %v1837 = vrot.slane %v1836, 2
    %v1838 = vadd.f32 %v1836, %v1837
    %v1839 = vrot.slane %v1838, 1
    %v1840 = vadd.f32 %v1838, %v1839
    %v1841 = vadd.f32 %v1823, %v1825
    %v1842 = vadd.f32 %v1841, %v1828
    %v1843 = vadd.f32 %v1842, %v1830
    %v1844 = vrot.slane %v1843, 4
    %v1845 = vadd.f32 %v1843, %v1844
    %v1846 = vrot.slane %v1845, 2
    %v1847 = vadd.f32 %v1845, %v1846
    %v1848 = vrot.slane %v1847, 1
    %v1849 = vadd.f32 %v1847, %v1848
    %v1850 = vmul.f32 %v1595, %v1595
    %v1851 = vmul.f32 %v1823, %v1823
    %v1852 = vmul.f32 %v1597, %v1597
    %v1853 = vmul.f32 %v1825, %v1825
    %v1854 = vmul.f32 %v1600, %v1600
    %v1855 = vmul.f32 %v1828, %v1828
    %v1856 = vmul.f32 %v1602, %v1602
    %v1857 = vmul.f32 %v1830, %v1830
    %v1858 = vadd.f32 %v1850, %v1852
    %v1859 = vadd.f32 %v1858, %v1854
    %v1860 = vadd.f32 %v1859, %v1856
    %v1861 = vrot.slane %v1860, 4
    %v1862 = vadd.f32 %v1860, %v1861
    %v1863 = vrot.slane %v1862, 2
    %v1864 = vadd.f32 %v1862, %v1863
    %v1865 = vrot.slane %v1864, 1
    %v1866 = vadd.f32 %v1864, %v1865
    %v1867 = vadd.f32 %v1851, %v1853
    %v1868 = vadd.f32 %v1867, %v1855
    %v1869 = vadd.f32 %v1868, %v1857
    %v1870 = vrot.slane %v1869, 4
    %v1871 = vadd.f32 %v1869, %v1870
    %v1872 = vrot.slane %v1871, 2
    %v1873 = vadd.f32 %v1871, %v1872
    %v1874 = vrot.slane %v1873, 1
    %v1875 = vadd.f32 %v1873, %v1874
    %v1876 = vsel %vm172, %v1840, %v1866
    %v1877 = vsel %vm172, %v1849, %v1875
    %v1878 = vld [vmem:[%s13] sm:$0xff]
    %v1879 = vld [vmem:[%s13 + $0x8] sm:$0xff]
    %v1880 = vld [vmem:[%s13 + $0x10] sm:$0xff]
    %v1881 = vld [vmem:[%s13 + $0x18] sm:$0xff]
    %v1882 = vld [vmem:[%s13 + $0x20] sm:$0xff]
    %v1883 = vld [vmem:[%s13 + $0x28] sm:$0xff]
    %v1884 = vld [vmem:[%s13 + $0x30] sm:$0xff]
    %v1885 = vld [vmem:[%s13 + $0x38] sm:$0xff]
    %v1886 = vld [vmem:[%s13 + $0x40] sm:$0xff]
    %v1887 = vld [vmem:[%s13 + $0x48] sm:$0xff]
    %v1888 = vld [vmem:[%s13 + $0x50] sm:$0xff]
    %v1889 = vld [vmem:[%s13 + $0x58] sm:$0xff]
    %v1890 = vld [vmem:[%s13 + $0x60] sm:$0xff]
    %v1891 = vld [vmem:[%s13 + $0x68] sm:$0xff]
    %v1892 = vld [vmem:[%s13 + $0x70] sm:$0xff]
    %v1893 = vld [vmem:[%s13 + $0x78] sm:$0xff]
    %v1894 = vld [vmem:[%s13 + $0x80] sm:$0xff]
    %v1895 = vld [vmem:[%s13 + $0x88] sm:$0xff]
    %v1896 = vld [vmem:[%s13 + $0x90] sm:$0xff]
    %v1897 = vld [vmem:[%s13 + $0x98] sm:$0xff]
    %v1898 = vld [vmem:[%s13 + $0xa0] sm:$0xff]
    %v1899 = vld [vmem:[%s13 + $0xa8] sm:$0xff]
    %v1900 = vld [vmem:[%s13 + $0xb0] sm:$0xff]
    %v1901 = vld [vmem:[%s13 + $0xb8] sm:$0xff]
    %v1902 = vld [vmem:[%s13 + $0xc0] sm:$0xff]
    %v1903 = vld [vmem:[%s13 + $0xc8] sm:$0xff]
    %v1904 = vld [vmem:[%s13 + $0xd0] sm:$0xff]
    %v1905 = vld [vmem:[%s13 + $0xd8] sm:$0xff]
    %v1906 = vld [vmem:[%s13 + $0xe0] sm:$0xff]
    %v1907 = vld [vmem:[%s13 + $0xe8] sm:$0xff]
    %v1908 = vld [vmem:[%s13 + $0xf0] sm:$0xff]
    %v1909 = vld [vmem:[%s13 + $0xf8] sm:$0xff]
    %1910 = vmatpush.msra.mxu0 %v1893
    %1911 = vmatpush.msra.mxu0 %v1892
    %1912 = vmatpush.msra.mxu0 %v1891
    %1913 = vmatpush.msra.mxu0 %v1890
    %1914 = vmatpush.msra.mxu0 %v1889
    %1915 = vmatpush.msra.mxu0 %v1888
    %1916 = vmatpush.msra.mxu0 %v1887
    %1917 = vmatpush.msra.mxu0 %v1886
    %1918 = vmatpush.msra.mxu0 %v1885
    %1919 = vmatpush.msra.mxu0 %v1884
    %1920 = vmatpush.msra.mxu0 %v1883
    %1921 = vmatpush.msra.mxu0 %v1882
    %1922 = vmatpush.msra.mxu0 %v1881
    %1923 = vmatpush.msra.mxu0 %v1880
    %1924 = vmatpush.msra.mxu0 %v1879
    %1925 = vmatpush.msra.mxu0 %v1878
    %1926 = vmatmul.f32.gmra.mxu0 %v1876
    %v1927 = vpop.f32.mrf.mxu0
    %v1928 = vadd.f32 0.0, %v1927
    %1929 = vdwg.mxu0
    %1930 = vmatpush.msra.mxu0 %v1909
    %1931 = vmatpush.msra.mxu0 %v1908
    %1932 = vmatpush.msra.mxu0 %v1907
    %1933 = vmatpush.msra.mxu0 %v1906
    %1934 = vmatpush.msra.mxu0 %v1905
    %1935 = vmatpush.msra.mxu0 %v1904
    %1936 = vmatpush.msra.mxu0 %v1903
    %1937 = vmatpush.msra.mxu0 %v1902
    %1938 = vmatpush.msra.mxu0 %v1901
    %1939 = vmatpush.msra.mxu0 %v1900
    %1940 = vmatpush.msra.mxu0 %v1899
    %1941 = vmatpush.msra.mxu0 %v1898
    %1942 = vmatpush.msra.mxu0 %v1897
    %1943 = vmatpush.msra.mxu0 %v1896
    %1944 = vmatpush.msra.mxu0 %v1895
    %1945 = vmatpush.msra.mxu0 %v1894
    %1946 = vmatmul.f32.gmra.mxu0 %v1877
    %v1947 = vpop.f32.mrf.mxu0
    %v1948 = vadd.f32 %v1928, %v1947
    %1949 = vdwg.mxu0
    %v1950 = vmul.f32 %v1948, %v1948
    %v1952 = vrot.slane %v1950, 7
    %v1954 = vsub.f32 %v1948, %v1952
    %v1955 = vadd.f32 %v1954, 1e-05
    %v1956 = vrsqrt.pop %v1955
    %v1957 = vmul.f32 %v1956, %v1955
    %v1958 = vmul.f32 %v1957, %v1956
    %v1959 = vmul.f32 0.5, %v1958
    %v1960 = vsub.f32 1.5, %v1959
    %v1961 = vmul.f32 %v1956, %v1960
    %vm1962 = vweird.f32 %v1955
    %vm1963 = vweird.f32 %v1956
    %vm1964 = vmor %vm1962, %vm1963
    %v1965 = vsel %vm1964, %v1956, %v1961
    %v1966 = vld [vmem:[%s2] sm:$0x1]
    %v1968 = vrot.slane %v1966, 7
    %v1970 = vmul.f32 %v1965, %v1968
    %v1971 = vld [vmem:[%s2 + $0x1] sm:$0x1]
    %v1973 = vrot.slane %v1970, 1
    %v1975 = vmul.f32 %v1948, %v1973
    %v1976 = vsub.f32 %v1971, %v1975
    %v1978 = vrot.slane %v1976, 7
    %v1980 = vsel %vm172, %v1973, %v1978
    %v1981 = vld [vmem:[%s14] sm:$0xff]
    %v1982 = vld [vmem:[%s14 + $0x8] sm:$0xff]
    %v1983 = vld [vmem:[%s14 + $0x10] sm:$0xff]
    %v1984 = vld [vmem:[%s14 + $0x18] sm:$0xff]
    %vm1985 = vcmask 130048
    %v1987 = vsel %vm1985, %v1980, 0
    %1989 = vmatpush.msra.mxu0 0.0
    %1990 = vmatpush.msra.mxu0 0.0
    %1991 = vmatpush.msra.mxu0 0.0
    %1992 = vmatpush.msra.mxu0 0.0
    %1993 = vmatpush.msra.mxu0 0.0
    %1994 = vmatpush.msra.mxu0 0.0
    %1995 = vmatpush.msra.mxu0 0.0
    %1996 = vmatpush.msra.mxu0 0.0
    %1997 = vmatpush.msra.mxu0 0.0
    %1998 = vmatpush.msra.mxu0 0.0
    %1999 = vmatpush.msra.mxu0 0.0
    %2000 = vmatpush.msra.mxu0 0.0
    %2001 = vmatpush.msra.mxu0 0.0
    %2002 = vmatpush.msra.mxu0 0.0
    %2003 = vmatpush.msra.mxu0 %v1983
    %2004 = vmatpush.msra.mxu0 %v1981
    %2005 = vmatmul.f32.gmra.mxu0 %v1987
    %v2006 = vpop.f32.mrf.mxu0
    %v2007 = vadd.f32 0.0, %v2006
    %2008 = vdwg.mxu0
    %2009 = vmatpush.msra.mxu0 0.0
    %2010 = vmatpush.msra.mxu0 0.0
    %2011 = vmatpush.msra.mxu0 0.0
    %2012 = vmatpush.msra.mxu0 0.0
    %2013 = vmatpush.msra.mxu0 0.0
    %2014 = vmatpush.msra.mxu0 0.0
    %2015 = vmatpush.msra.mxu0 0.0
    %2016 = vmatpush.msra.mxu0 0.0
    %2017 = vmatpush.msra.mxu0 0.0
    %2018 = vmatpush.msra.mxu0 0.0
    %2019 = vmatpush.msra.mxu0 0.0
    %2020 = vmatpush.msra.mxu0 0.0
    %2021 = vmatpush.msra.mxu0 0.0
    %2022 = vmatpush.msra.mxu0 0.0
    %2023 = vmatpush.msra.mxu0 %v1984
    %2024 = vmatpush.msra.mxu0 %v1982
    %2025 = vmatmul.f32.gmra.mxu0 %v1987
    %v2026 = vpop.f32.mrf.mxu0
    %v2027 = vadd.f32 0.0, %v2026
    %2028 = vdwg.mxu0
    %v2029 = vperm.slane %v2007, 0
    %v2030 = vperm.slane %v2027, 0
    %v2031 = vmul.f32 %v1595, %v2029
    %v2032 = vmul.f32 %v1823, %v2030
    %v2033 = vmul.f32 %v1597, %v2029
    %v2034 = vmul.f32 %v1825, %v2030
    %v2035 = vmul.f32 %v1600, %v2029
    %v2036 = vmul.f32 %v1828, %v2030
    %v2037 = vmul.f32 %v1602, %v2029
    %v2038 = vmul.f32 %v1830, %v2030
    %v2039 = vperm.slane %v2007, 1
    %v2040 = vperm.slane %v2027, 1
    %v2041 = vadd.f32 %v2031, %v2039
    %v2042 = vadd.f32 %v2032, %v2040
    %v2043 = vadd.f32 %v2033, %v2039
    %v2044 = vadd.f32 %v2034, %v2040
    %v2045 = vadd.f32 %v2035, %v2039
    %v2046 = vadd.f32 %v2036, %v2040
    %v2047 = vadd.f32 %v2037, %v2039
    %v2048 = vadd.f32 %v2038, %v2040
    %v2049 = vmax.f32 %v2041, 0.0
    %v2050 = vmax.f32 %v2042, 0.0
    %v2051 = vmax.f32 %v2043, 0.0
    %v2052 = vmax.f32 %v2044, 0.0
    %v2053 = vmax.f32 %v2045, 0.0
    %v2054 = vmax.f32 %v2046, 0.0
    %v2055 = vmax.f32 %v2047, 0.0
    %v2056 = vmax.f32 %v2048, 0.0
    %v2057 = vpack.c.bf16 %v2050, %v2049
    %v2058 = vpack.c.bf16 %v2052, %v2051
    %v2059 = vpack.c.bf16 %v2054, %v2053
    %v2060 = vpack.c.bf16 %v2056, %v2055
    %v2065 = vunpack.c.l.b16 %v2057
    %v2066 = vunpack.c.h.b16 %v2057
    %v2067 = vunpack.c.l.b16 %v2058
    %v2068 = vunpack.c.h.b16 %v2058
    %v2069 = vunpack.c.l.b16 %v2059
    %v2070 = vunpack.c.h.b16 %v2059
    %v2071 = vunpack.c.l.b16 %v2060
    %v2072 = vunpack.c.h.b16 %v2060
    %v2073 = vpack.c.b16 %v2067, %v2065
    %v2074 = vpack.c.b16 %v2068, %v2066
    %v2075 = vpack.c.b16 %v2071, %v2069
    %v2076 = vpack.c.b16 %v2072, %v2070
    %v2077 = vrot.slane %v2073, 7
    %v2078 = vrot.slane %v2074, 7
    %v2079 = vrot.slane %v2075, 7
    %v2080 = vsel %vm155, %v2077, %v2079
    %v2081 = vrot.slane %v2076, 7
    %v2082 = vsel %vm155, %v2078, %v2081
    %v2086 = vsel %vm172, 0, %v2077
    %v2089 = vsel %vm172, 0, %v2078
    %v2091 = vrot.slane %v2073, 1
    %v2092 = vrot.slane %v2075, 1
    %v2093 = vsel %vm186, %v2091, %v2092
    %v2094 = vrot.slane %v2074, 1
    %v2095 = vrot.slane %v2076, 1
    %v2096 = vsel %vm186, %v2094, %v2095
    %v2100 = vsel %vm203, %v2092, 0
    %v2103 = vsel %vm203, %v2095, 0
    %v2109 = vld [vmem:[#allocation5] sm:$0xff]
    %v2110 = vld [vmem:[#allocation5 + $0x8] sm:$0xff]
    %v2111 = vld [vmem:[#allocation5 + $0x10] sm:$0xff]
    %v2112 = vld [vmem:[#allocation5 + $0x18] sm:$0xff]
    %v2113 = vld [vmem:[#allocation5 + $0x20] sm:$0xff]
    %v2114 = vld [vmem:[#allocation5 + $0x28] sm:$0xff]
    %v2115 = vld [vmem:[#allocation5 + $0x30] sm:$0xff]
    %v2116 = vld [vmem:[#allocation5 + $0x38] sm:$0xff]
    %v2117 = vld [vmem:[#allocation5 + $0x40] sm:$0xff]
    %v2118 = vld [vmem:[#allocation5 + $0x48] sm:$0xff]
    %v2119 = vld [vmem:[#allocation5 + $0x50] sm:$0xff]
    %v2120 = vld [vmem:[#allocation5 + $0x58] sm:$0xff]
    %v2121 = vld [vmem:[#allocation5 + $0x60] sm:$0xff]
    %v2122 = vld [vmem:[#allocation5 + $0x68] sm:$0xff]
    %v2123 = vld [vmem:[#allocation5 + $0x70] sm:$0xff]
    %v2124 = vld [vmem:[#allocation5 + $0x78] sm:$0xff]
    %v2125 = vld [vmem:[#allocation5 + $0x80] sm:$0xff]
    %v2126 = vld [vmem:[#allocation5 + $0x88] sm:$0xff]
    %v2127 = vld [vmem:[#allocation5 + $0x90] sm:$0xff]
    %v2128 = vld [vmem:[#allocation5 + $0x98] sm:$0xff]
    %v2129 = vld [vmem:[#allocation5 + $0xa0] sm:$0xff]
    %v2130 = vld [vmem:[#allocation5 + $0xa8] sm:$0xff]
    %v2131 = vld [vmem:[#allocation5 + $0xb0] sm:$0xff]
    %v2132 = vld [vmem:[#allocation5 + $0xb8] sm:$0xff]
    %v2133 = vld [vmem:[#allocation5 + $0xc0] sm:$0xff]
    %v2134 = vld [vmem:[#allocation5 + $0xc8] sm:$0xff]
    %v2135 = vld [vmem:[#allocation5 + $0xd0] sm:$0xff]
    %v2136 = vld [vmem:[#allocation5 + $0xd8] sm:$0xff]
    %v2137 = vld [vmem:[#allocation5 + $0xe0] sm:$0xff]
    %v2138 = vld [vmem:[#allocation5 + $0xe8] sm:$0xff]
    %v2139 = vld [vmem:[#allocation5 + $0xf0] sm:$0xff]
    %v2140 = vld [vmem:[#allocation5 + $0xf8] sm:$0xff]
    %v2141 = vld [vmem:[#allocation5 + $0x100] sm:$0xff]
    %v2142 = vld [vmem:[#allocation5 + $0x108] sm:$0xff]
    %v2143 = vld [vmem:[#allocation5 + $0x110] sm:$0xff]
    %v2144 = vld [vmem:[#allocation5 + $0x118] sm:$0xff]
    %v2145 = vld [vmem:[#allocation5 + $0x120] sm:$0xff]
    %v2146 = vld [vmem:[#allocation5 + $0x128] sm:$0xff]
    %v2147 = vld [vmem:[#allocation5 + $0x130] sm:$0xff]
    %v2148 = vld [vmem:[#allocation5 + $0x138] sm:$0xff]
    %v2149 = vld [vmem:[#allocation5 + $0x140] sm:$0xff]
    %v2150 = vld [vmem:[#allocation5 + $0x148] sm:$0xff]
    %v2151 = vld [vmem:[#allocation5 + $0x150] sm:$0xff]
    %v2152 = vld [vmem:[#allocation5 + $0x158] sm:$0xff]
    %v2153 = vld [vmem:[#allocation5 + $0x160] sm:$0xff]
    %v2154 = vld [vmem:[#allocation5 + $0x168] sm:$0xff]
    %v2155 = vld [vmem:[#allocation5 + $0x170] sm:$0xff]
    %v2156 = vld [vmem:[#allocation5 + $0x178] sm:$0xff]
    %v2157 = vld [vmem:[#allocation5 + $0x180] sm:$0xff]
    %v2158 = vld [vmem:[#allocation5 + $0x188] sm:$0xff]
    %v2159 = vld [vmem:[#allocation5 + $0x190] sm:$0xff]
    %v2160 = vld [vmem:[#allocation5 + $0x198] sm:$0xff]
    %v2161 = vld [vmem:[#allocation5 + $0x1a0] sm:$0xff]
    %v2162 = vld [vmem:[#allocation5 + $0x1a8] sm:$0xff]
    %v2163 = vld [vmem:[#allocation5 + $0x1b0] sm:$0xff]
    %v2164 = vld [vmem:[#allocation5 + $0x1b8] sm:$0xff]
    %v2165 = vld [vmem:[#allocation5 + $0x1c0] sm:$0xff]
    %v2166 = vld [vmem:[#allocation5 + $0x1c8] sm:$0xff]
    %v2167 = vld [vmem:[#allocation5 + $0x1d0] sm:$0xff]
    %v2168 = vld [vmem:[#allocation5 + $0x1d8] sm:$0xff]
    %v2169 = vld [vmem:[#allocation5 + $0x1e0] sm:$0xff]
    %v2170 = vld [vmem:[#allocation5 + $0x1e8] sm:$0xff]
    %v2171 = vld [vmem:[#allocation5 + $0x1f0] sm:$0xff]
    %v2172 = vld [vmem:[#allocation5 + $0x1f8] sm:$0xff]
    %v2173 = vld [vmem:[#allocation5 + $0x200] sm:$0xff]
    %v2174 = vld [vmem:[#allocation5 + $0x208] sm:$0xff]
    %v2175 = vld [vmem:[#allocation5 + $0x210] sm:$0xff]
    %v2176 = vld [vmem:[#allocation5 + $0x218] sm:$0xff]
    %v2177 = vld [vmem:[#allocation5 + $0x220] sm:$0xff]
    %v2178 = vld [vmem:[#allocation5 + $0x228] sm:$0xff]
    %v2179 = vld [vmem:[#allocation5 + $0x230] sm:$0xff]
    %v2180 = vld [vmem:[#allocation5 + $0x238] sm:$0xff]
    %v2181 = vld [vmem:[#allocation5 + $0x240] sm:$0xff]
    %v2182 = vld [vmem:[#allocation5 + $0x248] sm:$0xff]
    %v2183 = vld [vmem:[#allocation5 + $0x250] sm:$0xff]
    %v2184 = vld [vmem:[#allocation5 + $0x258] sm:$0xff]
    %v2185 = vld [vmem:[#allocation5 + $0x260] sm:$0xff]
    %v2186 = vld [vmem:[#allocation5 + $0x268] sm:$0xff]
    %v2187 = vld [vmem:[#allocation5 + $0x270] sm:$0xff]
    %v2188 = vld [vmem:[#allocation5 + $0x278] sm:$0xff]
    %v2189 = vld [vmem:[#allocation5 + $0x280] sm:$0xff]
    %v2190 = vld [vmem:[#allocation5 + $0x288] sm:$0xff]
    %v2191 = vld [vmem:[#allocation5 + $0x290] sm:$0xff]
    %v2192 = vld [vmem:[#allocation5 + $0x298] sm:$0xff]
    %v2193 = vld [vmem:[#allocation5 + $0x2a0] sm:$0xff]
    %v2194 = vld [vmem:[#allocation5 + $0x2a8] sm:$0xff]
    %v2195 = vld [vmem:[#allocation5 + $0x2b0] sm:$0xff]
    %v2196 = vld [vmem:[#allocation5 + $0x2b8] sm:$0xff]
    %v2197 = vld [vmem:[#allocation5 + $0x2c0] sm:$0xff]
    %v2198 = vld [vmem:[#allocation5 + $0x2c8] sm:$0xff]
    %v2199 = vld [vmem:[#allocation5 + $0x2d0] sm:$0xff]
    %v2200 = vld [vmem:[#allocation5 + $0x2d8] sm:$0xff]
    %v2201 = vld [vmem:[#allocation5 + $0x2e0] sm:$0xff]
    %v2202 = vld [vmem:[#allocation5 + $0x2e8] sm:$0xff]
    %v2203 = vld [vmem:[#allocation5 + $0x2f0] sm:$0xff]
    %v2204 = vld [vmem:[#allocation5 + $0x2f8] sm:$0xff]
    %v2301 = vunpack.c.l.b16 %v2109
    %v2302 = vunpack.c.h.b16 %v2109
    %v2303 = vunpack.c.l.b16 %v2110
    %v2304 = vunpack.c.h.b16 %v2110
    %v2305 = vunpack.c.l.b16 %v2111
    %v2306 = vunpack.c.h.b16 %v2111
    %v2307 = vunpack.c.l.b16 %v2112
    %v2308 = vunpack.c.h.b16 %v2112
    %v2309 = vunpack.c.l.b16 %v2113
    %v2310 = vunpack.c.h.b16 %v2113
    %v2311 = vunpack.c.l.b16 %v2114
    %v2312 = vunpack.c.h.b16 %v2114
    %v2313 = vunpack.c.l.b16 %v2115
    %v2314 = vunpack.c.h.b16 %v2115
    %v2315 = vunpack.c.l.b16 %v2116
    %v2316 = vunpack.c.h.b16 %v2116
    %v2317 = vunpack.c.l.b16 %v2117
    %v2318 = vunpack.c.h.b16 %v2117
    %v2319 = vunpack.c.l.b16 %v2118
    %v2320 = vunpack.c.h.b16 %v2118
    %v2321 = vunpack.c.l.b16 %v2119
    %v2322 = vunpack.c.h.b16 %v2119
    %v2323 = vunpack.c.l.b16 %v2120
    %v2324 = vunpack.c.h.b16 %v2120
    %v2325 = vunpack.c.l.b16 %v2121
    %v2326 = vunpack.c.h.b16 %v2121
    %v2327 = vunpack.c.l.b16 %v2122
    %v2328 = vunpack.c.h.b16 %v2122
    %v2329 = vunpack.c.l.b16 %v2123
    %v2330 = vunpack.c.h.b16 %v2123
    %v2331 = vunpack.c.l.b16 %v2124
    %v2332 = vunpack.c.h.b16 %v2124
    %v2333 = vunpack.c.l.b16 %v2125
    %v2334 = vunpack.c.h.b16 %v2125
    %v2335 = vunpack.c.l.b16 %v2126
    %v2336 = vunpack.c.h.b16 %v2126
    %v2337 = vunpack.c.l.b16 %v2127
    %v2338 = vunpack.c.h.b16 %v2127
    %v2339 = vunpack.c.l.b16 %v2128
    %v2340 = vunpack.c.h.b16 %v2128
    %v2341 = vunpack.c.l.b16 %v2129
    %v2342 = vunpack.c.h.b16 %v2129
    %v2343 = vunpack.c.l.b16 %v2130
    %v2344 = vunpack.c.h.b16 %v2130
    %v2345 = vunpack.c.l.b16 %v2131
    %v2346 = vunpack.c.h.b16 %v2131
    %v2347 = vunpack.c.l.b16 %v2132
    %v2348 = vunpack.c.h.b16 %v2132
    %v2349 = vunpack.c.l.b16 %v2133
    %v2350 = vunpack.c.h.b16 %v2133
    %v2351 = vunpack.c.l.b16 %v2134
    %v2352 = vunpack.c.h.b16 %v2134
    %v2353 = vunpack.c.l.b16 %v2135
    %v2354 = vunpack.c.h.b16 %v2135
    %v2355 = vunpack.c.l.b16 %v2136
    %v2356 = vunpack.c.h.b16 %v2136
    %v2357 = vunpack.c.l.b16 %v2137
    %v2358 = vunpack.c.h.b16 %v2137
    %v2359 = vunpack.c.l.b16 %v2138
    %v2360 = vunpack.c.h.b16 %v2138
    %v2361 = vunpack.c.l.b16 %v2139
    %v2362 = vunpack.c.h.b16 %v2139
    %v2363 = vunpack.c.l.b16 %v2140
    %v2364 = vunpack.c.h.b16 %v2140
    %v2365 = vunpack.c.l.b16 %v2141
    %v2366 = vunpack.c.h.b16 %v2141
    %v2367 = vunpack.c.l.b16 %v2142
    %v2368 = vunpack.c.h.b16 %v2142
    %v2369 = vunpack.c.l.b16 %v2143
    %v2370 = vunpack.c.h.b16 %v2143
    %v2371 = vunpack.c.l.b16 %v2144
    %v2372 = vunpack.c.h.b16 %v2144
    %v2373 = vunpack.c.l.b16 %v2145
    %v2374 = vunpack.c.h.b16 %v2145
    %v2375 = vunpack.c.l.b16 %v2146
    %v2376 = vunpack.c.h.b16 %v2146
    %v2377 = vunpack.c.l.b16 %v2147
    %v2378 = vunpack.c.h.b16 %v2147
    %v2379 = vunpack.c.l.b16 %v2148
    %v2380 = vunpack.c.h.b16 %v2148
    %v2381 = vunpack.c.l.b16 %v2149
    %v2382 = vunpack.c.h.b16 %v2149
    %v2383 = vunpack.c.l.b16 %v2150
    %v2384 = vunpack.c.h.b16 %v2150
    %v2385 = vunpack.c.l.b16 %v2151
    %v2386 = vunpack.c.h.b16 %v2151
    %v2387 = vunpack.c.l.b16 %v2152
    %v2388 = vunpack.c.h.b16 %v2152
    %v2389 = vunpack.c.l.b16 %v2153
    %v2390 = vunpack.c.h.b16 %v2153
    %v2391 = vunpack.c.l.b16 %v2154
    %v2392 = vunpack.c.h.b16 %v2154
    %v2393 = vunpack.c.l.b16 %v2155
    %v2394 = vunpack.c.h.b16 %v2155
    %v2395 = vunpack.c.l.b16 %v2156
    %v2396 = vunpack.c.h.b16 %v2156
    %v2397 = vunpack.c.l.b16 %v2157
    %v2398 = vunpack.c.h.b16 %v2157
    %v2399 = vunpack.c.l.b16 %v2158
    %v2400 = vunpack.c.h.b16 %v2158
    %v2401 = vunpack.c.l.b16 %v2159
    %v2402 = vunpack.c.h.b16 %v2159
    %v2403 = vunpack.c.l.b16 %v2160
    %v2404 = vunpack.c.h.b16 %v2160
    %v2405 = vunpack.c.l.b16 %v2161
    %v2406 = vunpack.c.h.b16 %v2161
    %v2407 = vunpack.c.l.b16 %v2162
    %v2408 = vunpack.c.h.b16 %v2162
    %v2409 = vunpack.c.l.b16 %v2163
    %v2410 = vunpack.c.h.b16 %v2163
    %v2411 = vunpack.c.l.b16 %v2164
    %v2412 = vunpack.c.h.b16 %v2164
    %v2413 = vunpack.c.l.b16 %v2165
    %v2414 = vunpack.c.h.b16 %v2165
    %v2415 = vunpack.c.l.b16 %v2166
    %v2416 = vunpack.c.h.b16 %v2166
    %v2417 = vunpack.c.l.b16 %v2167
    %v2418 = vunpack.c.h.b16 %v2167
    %v2419 = vunpack.c.l.b16 %v2168
    %v2420 = vunpack.c.h.b16 %v2168
    %v2421 = vunpack.c.l.b16 %v2169
    %v2422 = vunpack.c.h.b16 %v2169
    %v2423 = vunpack.c.l.b16 %v2170
    %v2424 = vunpack.c.h.b16 %v2170
    %v2425 = vunpack.c.l.b16 %v2171
    %v2426 = vunpack.c.h.b16 %v2171
    %v2427 = vunpack.c.l.b16 %v2172
    %v2428 = vunpack.c.h.b16 %v2172
    %v2429 = vunpack.c.l.b16 %v2173
    %v2430 = vunpack.c.h.b16 %v2173
    %v2431 = vunpack.c.l.b16 %v2174
    %v2432 = vunpack.c.h.b16 %v2174
    %v2433 = vunpack.c.l.b16 %v2175
    %v2434 = vunpack.c.h.b16 %v2175
    %v2435 = vunpack.c.l.b16 %v2176
    %v2436 = vunpack.c.h.b16 %v2176
    %v2437 = vunpack.c.l.b16 %v2177
    %v2438 = vunpack.c.h.b16 %v2177
    %v2439 = vunpack.c.l.b16 %v2178
    %v2440 = vunpack.c.h.b16 %v2178
    %v2441 = vunpack.c.l.b16 %v2179
    %v2442 = vunpack.c.h.b16 %v2179
    %v2443 = vunpack.c.l.b16 %v2180
    %v2444 = vunpack.c.h.b16 %v2180
    %v2445 = vunpack.c.l.b16 %v2181
    %v2446 = vunpack.c.h.b16 %v2181
    %v2447 = vunpack.c.l.b16 %v2182
    %v2448 = vunpack.c.h.b16 %v2182
    %v2449 = vunpack.c.l.b16 %v2183
    %v2450 = vunpack.c.h.b16 %v2183
    %v2451 = vunpack.c.l.b16 %v2184
    %v2452 = vunpack.c.h.b16 %v2184
    %v2453 = vunpack.c.l.b16 %v2185
    %v2454 = vunpack.c.h.b16 %v2185
    %v2455 = vunpack.c.l.b16 %v2186
    %v2456 = vunpack.c.h.b16 %v2186
    %v2457 = vunpack.c.l.b16 %v2187
    %v2458 = vunpack.c.h.b16 %v2187
    %v2459 = vunpack.c.l.b16 %v2188
    %v2460 = vunpack.c.h.b16 %v2188
    %v2461 = vunpack.c.l.b16 %v2189
    %v2462 = vunpack.c.h.b16 %v2189
    %v2463 = vunpack.c.l.b16 %v2190
    %v2464 = vunpack.c.h.b16 %v2190
    %v2465 = vunpack.c.l.b16 %v2191
    %v2466 = vunpack.c.h.b16 %v2191
    %v2467 = vunpack.c.l.b16 %v2192
    %v2468 = vunpack.c.h.b16 %v2192
    %v2469 = vunpack.c.l.b16 %v2193
    %v2470 = vunpack.c.h.b16 %v2193
    %v2471 = vunpack.c.l.b16 %v2194
    %v2472 = vunpack.c.h.b16 %v2194
    %v2473 = vunpack.c.l.b16 %v2195
    %v2474 = vunpack.c.h.b16 %v2195
    %v2475 = vunpack.c.l.b16 %v2196
    %v2476 = vunpack.c.h.b16 %v2196
    %v2477 = vunpack.c.l.b16 %v2197
    %v2478 = vunpack.c.h.b16 %v2197
    %v2479 = vunpack.c.l.b16 %v2198
    %v2480 = vunpack.c.h.b16 %v2198
    %v2481 = vunpack.c.l.b16 %v2199
    %v2482 = vunpack.c.h.b16 %v2199
    %v2483 = vunpack.c.l.b16 %v2200
    %v2484 = vunpack.c.h.b16 %v2200
    %v2485 = vunpack.c.l.b16 %v2201
    %v2486 = vunpack.c.h.b16 %v2201
    %v2487 = vunpack.c.l.b16 %v2202
    %v2488 = vunpack.c.h.b16 %v2202
    %v2489 = vunpack.c.l.b16 %v2203
    %v2490 = vunpack.c.h.b16 %v2203
    %v2491 = vunpack.c.l.b16 %v2204
    %v2492 = vunpack.c.h.b16 %v2204
    %v2493 = vpack.c.b16 %v2303, %v2301
    %v2494 = vpack.c.b16 %v2304, %v2302
    %v2495 = vpack.c.b16 %v2307, %v2305
    %v2496 = vpack.c.b16 %v2308, %v2306
    %v2497 = vpack.c.b16 %v2311, %v2309
    %v2498 = vpack.c.b16 %v2312, %v2310
    %v2499 = vpack.c.b16 %v2315, %v2313
    %v2500 = vpack.c.b16 %v2316, %v2314
    %v2501 = vpack.c.b16 %v2319, %v2317
    %v2502 = vpack.c.b16 %v2320, %v2318
    %v2503 = vpack.c.b16 %v2323, %v2321
    %v2504 = vpack.c.b16 %v2324, %v2322
    %v2505 = vpack.c.b16 %v2327, %v2325
    %v2506 = vpack.c.b16 %v2328, %v2326
    %v2507 = vpack.c.b16 %v2331, %v2329
    %v2508 = vpack.c.b16 %v2332, %v2330
    %v2509 = vpack.c.b16 %v2335, %v2333
    %v2510 = vpack.c.b16 %v2336, %v2334
    %v2511 = vpack.c.b16 %v2339, %v2337
    %v2512 = vpack.c.b16 %v2340, %v2338
    %v2513 = vpack.c.b16 %v2343, %v2341
    %v2514 = vpack.c.b16 %v2344, %v2342
    %v2515 = vpack.c.b16 %v2347, %v2345
    %v2516 = vpack.c.b16 %v2348, %v2346
    %v2517 = vpack.c.b16 %v2351, %v2349
    %v2518 = vpack.c.b16 %v2352, %v2350
    %v2519 = vpack.c.b16 %v2355, %v2353
    %v2520 = vpack.c.b16 %v2356, %v2354
    %v2521 = vpack.c.b16 %v2359, %v2357
    %v2522 = vpack.c.b16 %v2360, %v2358
    %v2523 = vpack.c.b16 %v2363, %v2361
    %v2524 = vpack.c.b16 %v2364, %v2362
    %v2525 = vpack.c.b16 %v2367, %v2365
    %v2526 = vpack.c.b16 %v2368, %v2366
    %v2527 = vpack.c.b16 %v2371, %v2369
    %v2528 = vpack.c.b16 %v2372, %v2370
    %v2529 = vpack.c.b16 %v2375, %v2373
    %v2530 = vpack.c.b16 %v2376, %v2374
    %v2531 = vpack.c.b16 %v2379, %v2377
    %v2532 = vpack.c.b16 %v2380, %v2378
    %v2533 = vpack.c.b16 %v2383, %v2381
    %v2534 = vpack.c.b16 %v2384, %v2382
    %v2535 = vpack.c.b16 %v2387, %v2385
    %v2536 = vpack.c.b16 %v2388, %v2386
    %v2537 = vpack.c.b16 %v2391, %v2389
    %v2538 = vpack.c.b16 %v2392, %v2390
    %v2539 = vpack.c.b16 %v2395, %v2393
    %v2540 = vpack.c.b16 %v2396, %v2394
    %v2541 = vpack.c.b16 %v2399, %v2397
    %v2542 = vpack.c.b16 %v2400, %v2398
    %v2543 = vpack.c.b16 %v2403, %v2401
    %v2544 = vpack.c.b16 %v2404, %v2402
    %v2545 = vpack.c.b16 %v2407, %v2405
    %v2546 = vpack.c.b16 %v2408, %v2406
    %v2547 = vpack.c.b16 %v2411, %v2409
    %v2548 = vpack.c.b16 %v2412, %v2410
    %v2549 = vpack.c.b16 %v2415, %v2413
    %v2550 = vpack.c.b16 %v2416, %v2414
    %v2551 = vpack.c.b16 %v2419, %v2417
    %v2552 = vpack.c.b16 %v2420, %v2418
    %v2553 = vpack.c.b16 %v2423, %v2421
    %v2554 = vpack.c.b16 %v2424, %v2422
    %v2555 = vpack.c.b16 %v2427, %v2425
    %v2556 = vpack.c.b16 %v2428, %v2426
    %v2557 = vpack.c.b16 %v2431, %v2429
    %v2558 = vpack.c.b16 %v2432, %v2430
    %v2559 = vpack.c.b16 %v2435, %v2433
    %v2560 = vpack.c.b16 %v2436, %v2434
    %v2561 = vpack.c.b16 %v2439, %v2437
    %v2562 = vpack.c.b16 %v2440, %v2438
    %v2563 = vpack.c.b16 %v2443, %v2441
    %v2564 = vpack.c.b16 %v2444, %v2442
    %v2565 = vpack.c.b16 %v2447, %v2445
    %v2566 = vpack.c.b16 %v2448, %v2446
    %v2567 = vpack.c.b16 %v2451, %v2449
    %v2568 = vpack.c.b16 %v2452, %v2450
    %v2569 = vpack.c.b16 %v2455, %v2453
    %v2570 = vpack.c.b16 %v2456, %v2454
    %v2571 = vpack.c.b16 %v2459, %v2457
    %v2572 = vpack.c.b16 %v2460, %v2458
    %v2573 = vpack.c.b16 %v2463, %v2461
    %v2574 = vpack.c.b16 %v2464, %v2462
    %v2575 = vpack.c.b16 %v2467, %v2465
    %v2576 = vpack.c.b16 %v2468, %v2466
    %v2577 = vpack.c.b16 %v2471, %v2469
    %v2578 = vpack.c.b16 %v2472, %v2470
    %v2579 = vpack.c.b16 %v2475, %v2473
    %v2580 = vpack.c.b16 %v2476, %v2474
    %v2581 = vpack.c.b16 %v2479, %v2477
    %v2582 = vpack.c.b16 %v2480, %v2478
    %v2583 = vpack.c.b16 %v2483, %v2481
    %v2584 = vpack.c.b16 %v2484, %v2482
    %v2585 = vpack.c.b16 %v2487, %v2485
    %v2586 = vpack.c.b16 %v2488, %v2486
    %v2587 = vpack.c.b16 %v2491, %v2489
    %v2588 = vpack.c.b16 %v2492, %v2490
    %2685 = vmatpush.bf16.msra.mxu0 %v2507
    %2686 = vmatpush.bf16.msra.mxu0 %v2505
    %2687 = vmatpush.bf16.msra.mxu0 %v2503
    %2688 = vmatpush.bf16.msra.mxu0 %v2501
    %2689 = vmatpush.bf16.msra.mxu0 %v2499
    %2690 = vmatpush.bf16.msra.mxu0 %v2497
    %2691 = vmatpush.bf16.msra.mxu0 %v2495
    %2692 = vmatpush.bf16.msra.mxu0 %v2493
    %2693 = vmatmul.bf16.gmra.mxu0 %v2086
    %v2694 = vpop.f32.mrf.mxu0
    %v2695 = vadd.f32 0.0, %v2694
    %v2696 = vpop.f32.mrf.mxu0
    %v2697 = vadd.f32 0.0, %v2696
    %2698 = vmatmul.bf16.gmra.mxu0 %v2080
    %v2699 = vpop.f32.mrf.mxu0
    %v2700 = vadd.f32 0.0, %v2699
    %v2701 = vpop.f32.mrf.mxu0
    %v2702 = vadd.f32 0.0, %v2701
    %2703 = vdwg.mxu0
    %2704 = vmatpush.bf16.msra.mxu0 %v2523
    %2705 = vmatpush.bf16.msra.mxu0 %v2521
    %2706 = vmatpush.bf16.msra.mxu0 %v2519
    %2707 = vmatpush.bf16.msra.mxu0 %v2517
    %2708 = vmatpush.bf16.msra.mxu0 %v2515
    %2709 = vmatpush.bf16.msra.mxu0 %v2513
    %2710 = vmatpush.bf16.msra.mxu0 %v2511
    %2711 = vmatpush.bf16.msra.mxu0 %v2509
    %2712 = vmatmul.bf16.gmra.mxu0 %v2089
    %v2713 = vpop.f32.mrf.mxu0
    %v2714 = vadd.f32 %v2695, %v2713
    %v2715 = vpop.f32.mrf.mxu0
    %v2716 = vadd.f32 %v2697, %v2715
    %2717 = vmatmul.bf16.gmra.mxu0 %v2082
    %v2718 = vpop.f32.mrf.mxu0
    %v2719 = vadd.f32 %v2700, %v2718
    %v2720 = vpop.f32.mrf.mxu0
    %v2721 = vadd.f32 %v2702, %v2720
    %2722 = vdwg.mxu0
    %2723 = vmatpush.bf16.msra.mxu0 %v2539
    %2724 = vmatpush.bf16.msra.mxu0 %v2537
    %2725 = vmatpush.bf16.msra.mxu0 %v2535
    %2726 = vmatpush.bf16.msra.mxu0 %v2533
    %2727 = vmatpush.bf16.msra.mxu0 %v2531
    %2728 = vmatpush.bf16.msra.mxu0 %v2529
    %2729 = vmatpush.bf16.msra.mxu0 %v2527
    %2730 = vmatpush.bf16.msra.mxu0 %v2525
    %2731 = vmatmul.bf16.gmra.mxu0 %v2073
    %v2732 = vpop.f32.mrf.mxu0
    %v2733 = vadd.f32 %v2714, %v2732
    %v2734 = vpop.f32.mrf.mxu0
    %v2735 = vadd.f32 %v2716, %v2734
    %2736 = vmatmul.bf16.gmra.mxu0 %v2075
    %v2737 = vpop.f32.mrf.mxu0
    %v2738 = vadd.f32 %v2719, %v2737
    %v2739 = vpop.f32.mrf.mxu0
    %v2740 = vadd.f32 %v2721, %v2739
    %2741 = vdwg.mxu0
    %2742 = vmatpush.bf16.msra.mxu0 %v2555
    %2743 = vmatpush.bf16.msra.mxu0 %v2553
    %2744 = vmatpush.bf16.msra.mxu0 %v2551
    %2745 = vmatpush.bf16.msra.mxu0 %v2549
    %2746 = vmatpush.bf16.msra.mxu0 %v2547
    %2747 = vmatpush.bf16.msra.mxu0 %v2545
    %2748 = vmatpush.bf16.msra.mxu0 %v2543
    %2749 = vmatpush.bf16.msra.mxu0 %v2541
    %2750 = vmatmul.bf16.gmra.mxu0 %v2074
    %v2751 = vpop.f32.mrf.mxu0
    %v2752 = vadd.f32 %v2733, %v2751
    %v2753 = vpop.f32.mrf.mxu0
    %v2754 = vadd.f32 %v2735, %v2753
    %2755 = vmatmul.bf16.gmra.mxu0 %v2076
    %v2756 = vpop.f32.mrf.mxu0
    %v2757 = vadd.f32 %v2738, %v2756
    %v2758 = vpop.f32.mrf.mxu0
    %v2759 = vadd.f32 %v2740, %v2758
    %2760 = vdwg.mxu0
    %2761 = vmatpush.bf16.msra.mxu0 %v2571
    %2762 = vmatpush.bf16.msra.mxu0 %v2569
    %2763 = vmatpush.bf16.msra.mxu0 %v2567
    %2764 = vmatpush.bf16.msra.mxu0 %v2565
    %2765 = vmatpush.bf16.msra.mxu0 %v2563
    %2766 = vmatpush.bf16.msra.mxu0 %v2561
    %2767 = vmatpush.bf16.msra.mxu0 %v2559
    %2768 = vmatpush.bf16.msra.mxu0 %v2557
    %2769 = vmatmul.bf16.gmra.mxu0 %v2093
    %v2770 = vpop.f32.mrf.mxu0
    %v2771 = vadd.f32 %v2752, %v2770
    %v2772 = vpop.f32.mrf.mxu0
    %v2773 = vadd.f32 %v2754, %v2772
    %2774 = vmatmul.bf16.gmra.mxu0 %v2100
    %v2775 = vpop.f32.mrf.mxu0
    %v2776 = vadd.f32 %v2757, %v2775
    %v2777 = vpop.f32.mrf.mxu0
    %v2778 = vadd.f32 %v2759, %v2777
    %2779 = vdwg.mxu0
    %2780 = vmatpush.bf16.msra.mxu0 %v2587
    %2781 = vmatpush.bf16.msra.mxu0 %v2585
    %2782 = vmatpush.bf16.msra.mxu0 %v2583
    %2783 = vmatpush.bf16.msra.mxu0 %v2581
    %2784 = vmatpush.bf16.msra.mxu0 %v2579
    %2785 = vmatpush.bf16.msra.mxu0 %v2577
    %2786 = vmatpush.bf16.msra.mxu0 %v2575
    %2787 = vmatpush.bf16.msra.mxu0 %v2573
    %2788 = vmatmul.bf16.gmra.mxu0 %v2096
    %v2789 = vpop.f32.mrf.mxu0
    %v2790 = vadd.f32 %v2771, %v2789
    %v2791 = vpop.f32.mrf.mxu0
    %v2792 = vadd.f32 %v2773, %v2791
    %2793 = vmatmul.bf16.gmra.mxu0 %v2103
    %v2794 = vpop.f32.mrf.mxu0
    %v2795 = vadd.f32 %v2776, %v2794
    %v2796 = vpop.f32.mrf.mxu0
    %v2797 = vadd.f32 %v2778, %v2796
    %2798 = vdwg.mxu0
    %2799 = vmatpush.bf16.msra.mxu0 %v2508
    %2800 = vmatpush.bf16.msra.mxu0 %v2506
    %2801 = vmatpush.bf16.msra.mxu0 %v2504
    %2802 = vmatpush.bf16.msra.mxu0 %v2502
    %2803 = vmatpush.bf16.msra.mxu0 %v2500
    %2804 = vmatpush.bf16.msra.mxu0 %v2498
    %2805 = vmatpush.bf16.msra.mxu0 %v2496
    %2806 = vmatpush.bf16.msra.mxu0 %v2494
    %2807 = vmatmul.bf16.gmra.mxu0 %v2086
    %v2808 = vpop.f32.mrf.mxu0
    %v2809 = vadd.f32 0.0, %v2808
    %v2810 = vpop.f32.mrf.mxu0
    %v2811 = vadd.f32 0.0, %v2810
    %2812 = vmatmul.bf16.gmra.mxu0 %v2080
    %v2813 = vpop.f32.mrf.mxu0
    %v2814 = vadd.f32 0.0, %v2813
    %v2815 = vpop.f32.mrf.mxu0
    %v2816 = vadd.f32 0.0, %v2815
    %2817 = vdwg.mxu0
    %2818 = vmatpush.bf16.msra.mxu0 %v2524
    %2819 = vmatpush.bf16.msra.mxu0 %v2522
    %2820 = vmatpush.bf16.msra.mxu0 %v2520
    %2821 = vmatpush.bf16.msra.mxu0 %v2518
    %2822 = vmatpush.bf16.msra.mxu0 %v2516
    %2823 = vmatpush.bf16.msra.mxu0 %v2514
    %2824 = vmatpush.bf16.msra.mxu0 %v2512
    %2825 = vmatpush.bf16.msra.mxu0 %v2510
    %2826 = vmatmul.bf16.gmra.mxu0 %v2089
    %v2827 = vpop.f32.mrf.mxu0
    %v2828 = vadd.f32 %v2809, %v2827
    %v2829 = vpop.f32.mrf.mxu0
    %v2830 = vadd.f32 %v2811, %v2829
    %2831 = vmatmul.bf16.gmra.mxu0 %v2082
    %v2832 = vpop.f32.mrf.mxu0
    %v2833 = vadd.f32 %v2814, %v2832
    %v2834 = vpop.f32.mrf.mxu0
    %v2835 = vadd.f32 %v2816, %v2834
    %2836 = vdwg.mxu0
    %2837 = vmatpush.bf16.msra.mxu0 %v2540
    %2838 = vmatpush.bf16.msra.mxu0 %v2538
    %2839 = vmatpush.bf16.msra.mxu0 %v2536
    %2840 = vmatpush.bf16.msra.mxu0 %v2534
    %2841 = vmatpush.bf16.msra.mxu0 %v2532
    %2842 = vmatpush.bf16.msra.mxu0 %v2530
    %2843 = vmatpush.bf16.msra.mxu0 %v2528
    %2844 = vmatpush.bf16.msra.mxu0 %v2526
    %2845 = vmatmul.bf16.gmra.mxu0 %v2073
    %v2846 = vpop.f32.mrf.mxu0
    %v2847 = vadd.f32 %v2828, %v2846
    %v2848 = vpop.f32.mrf.mxu0
    %v2849 = vadd.f32 %v2830, %v2848
    %2850 = vmatmul.bf16.gmra.mxu0 %v2075
    %v2851 = vpop.f32.mrf.mxu0
    %v2852 = vadd.f32 %v2833, %v2851
    %v2853 = vpop.f32.mrf.mxu0
    %v2854 = vadd.f32 %v2835, %v2853
    %2855 = vdwg.mxu0
    %2856 = vmatpush.bf16.msra.mxu0 %v2556
    %2857 = vmatpush.bf16.msra.mxu0 %v2554
    %2858 = vmatpush.bf16.msra.mxu0 %v2552
    %2859 = vmatpush.bf16.msra.mxu0 %v2550
    %2860 = vmatpush.bf16.msra.mxu0 %v2548
    %2861 = vmatpush.bf16.msra.mxu0 %v2546
    %2862 = vmatpush.bf16.msra.mxu0 %v2544
    %2863 = vmatpush.bf16.msra.mxu0 %v2542
    %2864 = vmatmul.bf16.gmra.mxu0 %v2074
    %v2865 = vpop.f32.mrf.mxu0
    %v2866 = vadd.f32 %v2847, %v2865
    %v2867 = vpop.f32.mrf.mxu0
    %v2868 = vadd.f32 %v2849, %v2867
    %2869 = vmatmul.bf16.gmra.mxu0 %v2076
    %v2870 = vpop.f32.mrf.mxu0
    %v2871 = vadd.f32 %v2852, %v2870
    %v2872 = vpop.f32.mrf.mxu0
    %v2873 = vadd.f32 %v2854, %v2872
    %2874 = vdwg.mxu0
    %2875 = vmatpush.bf16.msra.mxu0 %v2572
    %2876 = vmatpush.bf16.msra.mxu0 %v2570
    %2877 = vmatpush.bf16.msra.mxu0 %v2568
    %2878 = vmatpush.bf16.msra.mxu0 %v2566
    %2879 = vmatpush.bf16.msra.mxu0 %v2564
    %2880 = vmatpush.bf16.msra.mxu0 %v2562
    %2881 = vmatpush.bf16.msra.mxu0 %v2560
    %2882 = vmatpush.bf16.msra.mxu0 %v2558
    %2883 = vmatmul.bf16.gmra.mxu0 %v2093
    %v2884 = vpop.f32.mrf.mxu0
    %v2885 = vadd.f32 %v2866, %v2884
    %v2886 = vpop.f32.mrf.mxu0
    %v2887 = vadd.f32 %v2868, %v2886
    %2888 = vmatmul.bf16.gmra.mxu0 %v2100
    %v2889 = vpop.f32.mrf.mxu0
    %v2890 = vadd.f32 %v2871, %v2889
    %v2891 = vpop.f32.mrf.mxu0
    %v2892 = vadd.f32 %v2873, %v2891
    %2893 = vdwg.mxu0
    %2894 = vmatpush.bf16.msra.mxu0 %v2588
    %2895 = vmatpush.bf16.msra.mxu0 %v2586
    %2896 = vmatpush.bf16.msra.mxu0 %v2584
    %2897 = vmatpush.bf16.msra.mxu0 %v2582
    %2898 = vmatpush.bf16.msra.mxu0 %v2580
    %2899 = vmatpush.bf16.msra.mxu0 %v2578
    %2900 = vmatpush.bf16.msra.mxu0 %v2576
    %2901 = vmatpush.bf16.msra.mxu0 %v2574
    %2902 = vmatmul.bf16.gmra.mxu0 %v2096
    %v2903 = vpop.f32.mrf.mxu0
    %v2904 = vadd.f32 %v2885, %v2903
    %v2905 = vpop.f32.mrf.mxu0
    %v2906 = vadd.f32 %v2887, %v2905
    %2907 = vmatmul.bf16.gmra.mxu0 %v2103
    %v2908 = vpop.f32.mrf.mxu0
    %v2909 = vadd.f32 %v2890, %v2908
    %v2910 = vpop.f32.mrf.mxu0
    %v2911 = vadd.f32 %v2892, %v2910
    %2912 = vdwg.mxu0
    %v2913 = vadd.f32 %v2790, %v2792
    %v2914 = vadd.f32 %v2913, %v2795
    %v2915 = vadd.f32 %v2914, %v2797
    %v2916 = vrot.slane %v2915, 4
    %v2917 = vadd.f32 %v2915, %v2916
    %v2918 = vrot.slane %v2917, 2
    %v2919 = vadd.f32 %v2917, %v2918
    %v2920 = vrot.slane %v2919, 1
    %v2921 = vadd.f32 %v2919, %v2920
    %v2922 = vadd.f32 %v2904, %v2906
    %v2923 = vadd.f32 %v2922, %v2909
    %v2924 = vadd.f32 %v2923, %v2911
    %v2925 = vrot.slane %v2924, 4
    %v2926 = vadd.f32 %v2924, %v2925
    %v2927 = vrot.slane %v2926, 2
    %v2928 = vadd.f32 %v2926, %v2927
    %v2929 = vrot.slane %v2928, 1
    %v2930 = vadd.f32 %v2928, %v2929
    %v2931 = vmul.f32 %v2790, %v2790
    %v2932 = vmul.f32 %v2904, %v2904
    %v2933 = vmul.f32 %v2792, %v2792
    %v2934 = vmul.f32 %v2906, %v2906
    %v2935 = vmul.f32 %v2795, %v2795
    %v2936 = vmul.f32 %v2909, %v2909
    %v2937 = vmul.f32 %v2797, %v2797
    %v2938 = vmul.f32 %v2911, %v2911
    %v2939 = vadd.f32 %v2931, %v2933
    %v2940 = vadd.f32 %v2939, %v2935
    %v2941 = vadd.f32 %v2940, %v2937
    %v2942 = vrot.slane %v2941, 4
    %v2943 = vadd.f32 %v2941, %v2942
    %v2944 = vrot.slane %v2943, 2
    %v2945 = vadd.f32 %v2943, %v2944
    %v2946 = vrot.slane %v2945, 1
    %v2947 = vadd.f32 %v2945, %v2946
    %v2948 = vadd.f32 %v2932, %v2934
    %v2949 = vadd.f32 %v2948, %v2936
    %v2950 = vadd.f32 %v2949, %v2938
    %v2951 = vrot.slane %v2950, 4
    %v2952 = vadd.f32 %v2950, %v2951
    %v2953 = vrot.slane %v2952, 2
    %v2954 = vadd.f32 %v2952, %v2953
    %v2955 = vrot.slane %v2954, 1
    %v2956 = vadd.f32 %v2954, %v2955
    %v2957 = vsel %vm172, %v2921, %v2947
    %v2958 = vsel %vm172, %v2930, %v2956
    %2959 = vmatpush.msra.mxu0 %v1893
    %2960 = vmatpush.msra.mxu0 %v1892
    %2961 = vmatpush.msra.mxu0 %v1891
    %2962 = vmatpush.msra.mxu0 %v1890
    %2963 = vmatpush.msra.mxu0 %v1889
    %2964 = vmatpush.msra.mxu0 %v1888
    %2965 = vmatpush.msra.mxu0 %v1887
    %2966 = vmatpush.msra.mxu0 %v1886
    %2967 = vmatpush.msra.mxu0 %v1885
    %2968 = vmatpush.msra.mxu0 %v1884
    %2969 = vmatpush.msra.mxu0 %v1883
    %2970 = vmatpush.msra.mxu0 %v1882
    %2971 = vmatpush.msra.mxu0 %v1881
    %2972 = vmatpush.msra.mxu0 %v1880
    %2973 = vmatpush.msra.mxu0 %v1879
    %2974 = vmatpush.msra.mxu0 %v1878
    %2975 = vmatmul.f32.gmra.mxu0 %v2957
    %v2976 = vpop.f32.mrf.mxu0
    %v2977 = vadd.f32 0.0, %v2976
    %2978 = vdwg.mxu0
    %2979 = vmatpush.msra.mxu0 %v1909
    %2980 = vmatpush.msra.mxu0 %v1908
    %2981 = vmatpush.msra.mxu0 %v1907
    %2982 = vmatpush.msra.mxu0 %v1906
    %2983 = vmatpush.msra.mxu0 %v1905
    %2984 = vmatpush.msra.mxu0 %v1904
    %2985 = vmatpush.msra.mxu0 %v1903
    %2986 = vmatpush.msra.mxu0 %v1902
    %2987 = vmatpush.msra.mxu0 %v1901
    %2988 = vmatpush.msra.mxu0 %v1900
    %2989 = vmatpush.msra.mxu0 %v1899
    %2990 = vmatpush.msra.mxu0 %v1898
    %2991 = vmatpush.msra.mxu0 %v1897
    %2992 = vmatpush.msra.mxu0 %v1896
    %2993 = vmatpush.msra.mxu0 %v1895
    %2994 = vmatpush.msra.mxu0 %v1894
    %2995 = vmatmul.f32.gmra.mxu0 %v2958
    %v2996 = vpop.f32.mrf.mxu0
    %v2997 = vadd.f32 %v2977, %v2996
    %2998 = vdwg.mxu0
    %v2999 = vmul.f32 %v2997, %v2997
    %v3001 = vrot.slane %v2999, 7
    %v3003 = vsub.f32 %v2997, %v3001
    %v3004 = vadd.f32 %v3003, 1e-05
    %v3005 = vrsqrt.pop %v3004
    %v3006 = vmul.f32 %v3005, %v3004
    %v3007 = vmul.f32 %v3006, %v3005
    %v3008 = vmul.f32 0.5, %v3007
    %v3009 = vsub.f32 1.5, %v3008
    %v3010 = vmul.f32 %v3005, %v3009
    %vm3011 = vweird.f32 %v3004
    %vm3012 = vweird.f32 %v3005
    %vm3013 = vmor %vm3011, %vm3012
    %v3014 = vsel %vm3013, %v3005, %v3010
    %v3015 = vld [vmem:[%s4] sm:$0x1]
    %v3017 = vrot.slane %v3015, 7
    %v3019 = vmul.f32 %v3014, %v3017
    %v3020 = vld [vmem:[%s4 + $0x1] sm:$0x1]
    %v3022 = vrot.slane %v3019, 1
    %v3024 = vmul.f32 %v2997, %v3022
    %v3025 = vsub.f32 %v3020, %v3024
    %v3027 = vrot.slane %v3025, 7
    %v3029 = vsel %vm172, %v3022, %v3027
    %v3031 = vsel %vm1985, %v3029, 0
    %3033 = vmatpush.msra.mxu0 0.0
    %3034 = vmatpush.msra.mxu0 0.0
    %3035 = vmatpush.msra.mxu0 0.0
    %3036 = vmatpush.msra.mxu0 0.0
    %3037 = vmatpush.msra.mxu0 0.0
    %3038 = vmatpush.msra.mxu0 0.0
    %3039 = vmatpush.msra.mxu0 0.0
    %3040 = vmatpush.msra.mxu0 0.0
    %3041 = vmatpush.msra.mxu0 0.0
    %3042 = vmatpush.msra.mxu0 0.0
    %3043 = vmatpush.msra.mxu0 0.0
    %3044 = vmatpush.msra.mxu0 0.0
    %3045 = vmatpush.msra.mxu0 0.0
    %3046 = vmatpush.msra.mxu0 0.0
    %3047 = vmatpush.msra.mxu0 %v1983
    %3048 = vmatpush.msra.mxu0 %v1981
    %3049 = vmatmul.f32.gmra.mxu0 %v3031
    %v3050 = vpop.f32.mrf.mxu0
    %v3051 = vadd.f32 0.0, %v3050
    %3052 = vdwg.mxu0
    %3053 = vmatpush.msra.mxu0 0.0
    %3054 = vmatpush.msra.mxu0 0.0
    %3055 = vmatpush.msra.mxu0 0.0
    %3056 = vmatpush.msra.mxu0 0.0
    %3057 = vmatpush.msra.mxu0 0.0
    %3058 = vmatpush.msra.mxu0 0.0
    %3059 = vmatpush.msra.mxu0 0.0
    %3060 = vmatpush.msra.mxu0 0.0
    %3061 = vmatpush.msra.mxu0 0.0
    %3062 = vmatpush.msra.mxu0 0.0
    %3063 = vmatpush.msra.mxu0 0.0
    %3064 = vmatpush.msra.mxu0 0.0
    %3065 = vmatpush.msra.mxu0 0.0
    %3066 = vmatpush.msra.mxu0 0.0
    %3067 = vmatpush.msra.mxu0 %v1984
    %3068 = vmatpush.msra.mxu0 %v1982
    %3069 = vmatmul.f32.gmra.mxu0 %v3031
    %v3070 = vpop.f32.mrf.mxu0
    %v3071 = vadd.f32 0.0, %v3070
    %3072 = vdwg.mxu0
    %v3073 = vperm.slane %v3051, 0
    %v3074 = vperm.slane %v3071, 0
    %v3075 = vmul.f32 %v2790, %v3073
    %v3076 = vmul.f32 %v2904, %v3074
    %v3077 = vmul.f32 %v2792, %v3073
    %v3078 = vmul.f32 %v2906, %v3074
    %v3079 = vmul.f32 %v2795, %v3073
    %v3080 = vmul.f32 %v2909, %v3074
    %v3081 = vmul.f32 %v2797, %v3073
    %v3082 = vmul.f32 %v2911, %v3074
    %v3083 = vperm.slane %v3051, 1
    %v3084 = vperm.slane %v3071, 1
    %v3085 = vadd.f32 %v3075, %v3083
    %v3086 = vadd.f32 %v3076, %v3084
    %v3087 = vadd.f32 %v3077, %v3083
    %v3088 = vadd.f32 %v3078, %v3084
    %v3089 = vadd.f32 %v3079, %v3083
    %v3090 = vadd.f32 %v3080, %v3084
    %v3091 = vadd.f32 %v3081, %v3083
    %v3092 = vadd.f32 %v3082, %v3084
    %v3093 = vmax.f32 %v3085, 0.0
    %v3094 = vmax.f32 %v3086, 0.0
    %v3095 = vmax.f32 %v3087, 0.0
    %v3096 = vmax.f32 %v3088, 0.0
    %v3097 = vmax.f32 %v3089, 0.0
    %v3098 = vmax.f32 %v3090, 0.0
    %v3099 = vmax.f32 %v3091, 0.0
    %v3100 = vmax.f32 %v3092, 0.0
    %v3101 = vpack.c.bf16 %v3094, %v3093
    %v3102 = vpack.c.bf16 %v3096, %v3095
    %v3103 = vpack.c.bf16 %v3098, %v3097
    %v3104 = vpack.c.bf16 %v3100, %v3099
    %v3109 = vunpack.c.l.b16 %v3101
    %v3110 = vunpack.c.h.b16 %v3101
    %v3111 = vunpack.c.l.b16 %v3102
    %v3112 = vunpack.c.h.b16 %v3102
    %v3113 = vunpack.c.l.b16 %v3103
    %v3114 = vunpack.c.h.b16 %v3103
    %v3115 = vunpack.c.l.b16 %v3104
    %v3116 = vunpack.c.h.b16 %v3104
    %v3117 = vpack.c.b16 %v3111, %v3109
    %v3118 = vpack.c.b16 %v3112, %v3110
    %v3119 = vpack.c.b16 %v3115, %v3113
    %v3120 = vpack.c.b16 %v3116, %v3114
    %v3121 = vrot.slane %v3117, 7
    %v3122 = vrot.slane %v3118, 7
    %v3123 = vrot.slane %v3119, 7
    %v3124 = vsel %vm155, %v3121, %v3123
    %v3125 = vrot.slane %v3120, 7
    %v3126 = vsel %vm155, %v3122, %v3125
    %v3130 = vsel %vm172, 0, %v3121
    %v3133 = vsel %vm172, 0, %v3122
    %v3135 = vrot.slane %v3117, 1
    %v3136 = vrot.slane %v3119, 1
    %v3137 = vsel %vm186, %v3135, %v3136
    %v3138 = vrot.slane %v3118, 1
    %v3139 = vrot.slane %v3120, 1
    %v3140 = vsel %vm186, %v3138, %v3139
    %v3144 = vsel %vm203, %v3136, 0
    %v3147 = vsel %vm203, %v3139, 0
    %v3153 = vld [vmem:[#allocation7] sm:$0xff]
    %v3154 = vld [vmem:[#allocation7 + $0x8] sm:$0xff]
    %v3155 = vld [vmem:[#allocation7 + $0x10] sm:$0xff]
    %v3156 = vld [vmem:[#allocation7 + $0x18] sm:$0xff]
    %v3157 = vld [vmem:[#allocation7 + $0x20] sm:$0xff]
    %v3158 = vld [vmem:[#allocation7 + $0x28] sm:$0xff]
    %v3159 = vld [vmem:[#allocation7 + $0x30] sm:$0xff]
    %v3160 = vld [vmem:[#allocation7 + $0x38] sm:$0xff]
    %v3161 = vld [vmem:[#allocation7 + $0x40] sm:$0xff]
    %v3162 = vld [vmem:[#allocation7 + $0x48] sm:$0xff]
    %v3163 = vld [vmem:[#allocation7 + $0x50] sm:$0xff]
    %v3164 = vld [vmem:[#allocation7 + $0x58] sm:$0xff]
    %v3165 = vld [vmem:[#allocation7 + $0x60] sm:$0xff]
    %v3166 = vld [vmem:[#allocation7 + $0x68] sm:$0xff]
    %v3167 = vld [vmem:[#allocation7 + $0x70] sm:$0xff]
    %v3168 = vld [vmem:[#allocation7 + $0x78] sm:$0xff]
    %v3169 = vld [vmem:[#allocation7 + $0x80] sm:$0xff]
    %v3170 = vld [vmem:[#allocation7 + $0x88] sm:$0xff]
    %v3171 = vld [vmem:[#allocation7 + $0x90] sm:$0xff]
    %v3172 = vld [vmem:[#allocation7 + $0x98] sm:$0xff]
    %v3173 = vld [vmem:[#allocation7 + $0xa0] sm:$0xff]
    %v3174 = vld [vmem:[#allocation7 + $0xa8] sm:$0xff]
    %v3175 = vld [vmem:[#allocation7 + $0xb0] sm:$0xff]
    %v3176 = vld [vmem:[#allocation7 + $0xb8] sm:$0xff]
    %v3177 = vld [vmem:[#allocation7 + $0xc0] sm:$0xff]
    %v3178 = vld [vmem:[#allocation7 + $0xc8] sm:$0xff]
    %v3179 = vld [vmem:[#allocation7 + $0xd0] sm:$0xff]
    %v3180 = vld [vmem:[#allocation7 + $0xd8] sm:$0xff]
    %v3181 = vld [vmem:[#allocation7 + $0xe0] sm:$0xff]
    %v3182 = vld [vmem:[#allocation7 + $0xe8] sm:$0xff]
    %v3183 = vld [vmem:[#allocation7 + $0xf0] sm:$0xff]
    %v3184 = vld [vmem:[#allocation7 + $0xf8] sm:$0xff]
    %v3185 = vld [vmem:[#allocation7 + $0x100] sm:$0xff]
    %v3186 = vld [vmem:[#allocation7 + $0x108] sm:$0xff]
    %v3187 = vld [vmem:[#allocation7 + $0x110] sm:$0xff]
    %v3188 = vld [vmem:[#allocation7 + $0x118] sm:$0xff]
    %v3189 = vld [vmem:[#allocation7 + $0x120] sm:$0xff]
    %v3190 = vld [vmem:[#allocation7 + $0x128] sm:$0xff]
    %v3191 = vld [vmem:[#allocation7 + $0x130] sm:$0xff]
    %v3192 = vld [vmem:[#allocation7 + $0x138] sm:$0xff]
    %v3193 = vld [vmem:[#allocation7 + $0x140] sm:$0xff]
    %v3194 = vld [vmem:[#allocation7 + $0x148] sm:$0xff]
    %v3195 = vld [vmem:[#allocation7 + $0x150] sm:$0xff]
    %v3196 = vld [vmem:[#allocation7 + $0x158] sm:$0xff]
    %v3197 = vld [vmem:[#allocation7 + $0x160] sm:$0xff]
    %v3198 = vld [vmem:[#allocation7 + $0x168] sm:$0xff]
    %v3199 = vld [vmem:[#allocation7 + $0x170] sm:$0xff]
    %v3200 = vld [vmem:[#allocation7 + $0x178] sm:$0xff]
    %v3201 = vld [vmem:[#allocation7 + $0x180] sm:$0xff]
    %v3202 = vld [vmem:[#allocation7 + $0x188] sm:$0xff]
    %v3203 = vld [vmem:[#allocation7 + $0x190] sm:$0xff]
    %v3204 = vld [vmem:[#allocation7 + $0x198] sm:$0xff]
    %v3205 = vld [vmem:[#allocation7 + $0x1a0] sm:$0xff]
    %v3206 = vld [vmem:[#allocation7 + $0x1a8] sm:$0xff]
    %v3207 = vld [vmem:[#allocation7 + $0x1b0] sm:$0xff]
    %v3208 = vld [vmem:[#allocation7 + $0x1b8] sm:$0xff]
    %v3209 = vld [vmem:[#allocation7 + $0x1c0] sm:$0xff]
    %v3210 = vld [vmem:[#allocation7 + $0x1c8] sm:$0xff]
    %v3211 = vld [vmem:[#allocation7 + $0x1d0] sm:$0xff]
    %v3212 = vld [vmem:[#allocation7 + $0x1d8] sm:$0xff]
    %v3213 = vld [vmem:[#allocation7 + $0x1e0] sm:$0xff]
    %v3214 = vld [vmem:[#allocation7 + $0x1e8] sm:$0xff]
    %v3215 = vld [vmem:[#allocation7 + $0x1f0] sm:$0xff]
    %v3216 = vld [vmem:[#allocation7 + $0x1f8] sm:$0xff]
    %v3217 = vld [vmem:[#allocation7 + $0x200] sm:$0xff]
    %v3218 = vld [vmem:[#allocation7 + $0x208] sm:$0xff]
    %v3219 = vld [vmem:[#allocation7 + $0x210] sm:$0xff]
    %v3220 = vld [vmem:[#allocation7 + $0x218] sm:$0xff]
    %v3221 = vld [vmem:[#allocation7 + $0x220] sm:$0xff]
    %v3222 = vld [vmem:[#allocation7 + $0x228] sm:$0xff]
    %v3223 = vld [vmem:[#allocation7 + $0x230] sm:$0xff]
    %v3224 = vld [vmem:[#allocation7 + $0x238] sm:$0xff]
    %v3225 = vld [vmem:[#allocation7 + $0x240] sm:$0xff]
    %v3226 = vld [vmem:[#allocation7 + $0x248] sm:$0xff]
    %v3227 = vld [vmem:[#allocation7 + $0x250] sm:$0xff]
    %v3228 = vld [vmem:[#allocation7 + $0x258] sm:$0xff]
    %v3229 = vld [vmem:[#allocation7 + $0x260] sm:$0xff]
    %v3230 = vld [vmem:[#allocation7 + $0x268] sm:$0xff]
    %v3231 = vld [vmem:[#allocation7 + $0x270] sm:$0xff]
    %v3232 = vld [vmem:[#allocation7 + $0x278] sm:$0xff]
    %v3233 = vld [vmem:[#allocation7 + $0x280] sm:$0xff]
    %v3234 = vld [vmem:[#allocation7 + $0x288] sm:$0xff]
    %v3235 = vld [vmem:[#allocation7 + $0x290] sm:$0xff]
    %v3236 = vld [vmem:[#allocation7 + $0x298] sm:$0xff]
    %v3237 = vld [vmem:[#allocation7 + $0x2a0] sm:$0xff]
    %v3238 = vld [vmem:[#allocation7 + $0x2a8] sm:$0xff]
    %v3239 = vld [vmem:[#allocation7 + $0x2b0] sm:$0xff]
    %v3240 = vld [vmem:[#allocation7 + $0x2b8] sm:$0xff]
    %v3241 = vld [vmem:[#allocation7 + $0x2c0] sm:$0xff]
    %v3242 = vld [vmem:[#allocation7 + $0x2c8] sm:$0xff]
    %v3243 = vld [vmem:[#allocation7 + $0x2d0] sm:$0xff]
    %v3244 = vld [vmem:[#allocation7 + $0x2d8] sm:$0xff]
    %v3245 = vld [vmem:[#allocation7 + $0x2e0] sm:$0xff]
    %v3246 = vld [vmem:[#allocation7 + $0x2e8] sm:$0xff]
    %v3247 = vld [vmem:[#allocation7 + $0x2f0] sm:$0xff]
    %v3248 = vld [vmem:[#allocation7 + $0x2f8] sm:$0xff]
    %v3345 = vunpack.c.l.b16 %v3153
    %v3346 = vunpack.c.h.b16 %v3153
    %v3347 = vunpack.c.l.b16 %v3154
    %v3348 = vunpack.c.h.b16 %v3154
    %v3349 = vunpack.c.l.b16 %v3155
    %v3350 = vunpack.c.h.b16 %v3155
    %v3351 = vunpack.c.l.b16 %v3156
    %v3352 = vunpack.c.h.b16 %v3156
    %v3353 = vunpack.c.l.b16 %v3157
    %v3354 = vunpack.c.h.b16 %v3157
    %v3355 = vunpack.c.l.b16 %v3158
    %v3356 = vunpack.c.h.b16 %v3158
    %v3357 = vunpack.c.l.b16 %v3159
    %v3358 = vunpack.c.h.b16 %v3159
    %v3359 = vunpack.c.l.b16 %v3160
    %v3360 = vunpack.c.h.b16 %v3160
    %v3361 = vunpack.c.l.b16 %v3161
    %v3362 = vunpack.c.h.b16 %v3161
    %v3363 = vunpack.c.l.b16 %v3162
    %v3364 = vunpack.c.h.b16 %v3162
    %v3365 = vunpack.c.l.b16 %v3163
    %v3366 = vunpack.c.h.b16 %v3163
    %v3367 = vunpack.c.l.b16 %v3164
    %v3368 = vunpack.c.h.b16 %v3164
    %v3369 = vunpack.c.l.b16 %v3165
    %v3370 = vunpack.c.h.b16 %v3165
    %v3371 = vunpack.c.l.b16 %v3166
    %v3372 = vunpack.c.h.b16 %v3166
    %v3373 = vunpack.c.l.b16 %v3167
    %v3374 = vunpack.c.h.b16 %v3167
    %v3375 = vunpack.c.l.b16 %v3168
    %v3376 = vunpack.c.h.b16 %v3168
    %v3377 = vunpack.c.l.b16 %v3169
    %v3378 = vunpack.c.h.b16 %v3169
    %v3379 = vunpack.c.l.b16 %v3170
    %v3380 = vunpack.c.h.b16 %v3170
    %v3381 = vunpack.c.l.b16 %v3171
    %v3382 = vunpack.c.h.b16 %v3171
    %v3383 = vunpack.c.l.b16 %v3172
    %v3384 = vunpack.c.h.b16 %v3172
    %v3385 = vunpack.c.l.b16 %v3173
    %v3386 = vunpack.c.h.b16 %v3173
    %v3387 = vunpack.c.l.b16 %v3174
    %v3388 = vunpack.c.h.b16 %v3174
    %v3389 = vunpack.c.l.b16 %v3175
    %v3390 = vunpack.c.h.b16 %v3175
    %v3391 = vunpack.c.l.b16 %v3176
    %v3392 = vunpack.c.h.b16 %v3176
    %v3393 = vunpack.c.l.b16 %v3177
    %v3394 = vunpack.c.h.b16 %v3177
    %v3395 = vunpack.c.l.b16 %v3178
    %v3396 = vunpack.c.h.b16 %v3178
    %v3397 = vunpack.c.l.b16 %v3179
    %v3398 = vunpack.c.h.b16 %v3179
    %v3399 = vunpack.c.l.b16 %v3180
    %v3400 = vunpack.c.h.b16 %v3180
    %v3401 = vunpack.c.l.b16 %v3181
    %v3402 = vunpack.c.h.b16 %v3181
    %v3403 = vunpack.c.l.b16 %v3182
    %v3404 = vunpack.c.h.b16 %v3182
    %v3405 = vunpack.c.l.b16 %v3183
    %v3406 = vunpack.c.h.b16 %v3183
    %v3407 = vunpack.c.l.b16 %v3184
    %v3408 = vunpack.c.h.b16 %v3184
    %v3409 = vunpack.c.l.b16 %v3185
    %v3410 = vunpack.c.h.b16 %v3185
    %v3411 = vunpack.c.l.b16 %v3186
    %v3412 = vunpack.c.h.b16 %v3186
    %v3413 = vunpack.c.l.b16 %v3187
    %v3414 = vunpack.c.h.b16 %v3187
    %v3415 = vunpack.c.l.b16 %v3188
    %v3416 = vunpack.c.h.b16 %v3188
    %v3417 = vunpack.c.l.b16 %v3189
    %v3418 = vunpack.c.h.b16 %v3189
    %v3419 = vunpack.c.l.b16 %v3190
    %v3420 = vunpack.c.h.b16 %v3190
    %v3421 = vunpack.c.l.b16 %v3191
    %v3422 = vunpack.c.h.b16 %v3191
    %v3423 = vunpack.c.l.b16 %v3192
    %v3424 = vunpack.c.h.b16 %v3192
    %v3425 = vunpack.c.l.b16 %v3193
    %v3426 = vunpack.c.h.b16 %v3193
    %v3427 = vunpack.c.l.b16 %v3194
    %v3428 = vunpack.c.h.b16 %v3194
    %v3429 = vunpack.c.l.b16 %v3195
    %v3430 = vunpack.c.h.b16 %v3195
    %v3431 = vunpack.c.l.b16 %v3196
    %v3432 = vunpack.c.h.b16 %v3196
    %v3433 = vunpack.c.l.b16 %v3197
    %v3434 = vunpack.c.h.b16 %v3197
    %v3435 = vunpack.c.l.b16 %v3198
    %v3436 = vunpack.c.h.b16 %v3198
    %v3437 = vunpack.c.l.b16 %v3199
    %v3438 = vunpack.c.h.b16 %v3199
    %v3439 = vunpack.c.l.b16 %v3200
    %v3440 = vunpack.c.h.b16 %v3200
    %v3441 = vunpack.c.l.b16 %v3201
    %v3442 = vunpack.c.h.b16 %v3201
    %v3443 = vunpack.c.l.b16 %v3202
    %v3444 = vunpack.c.h.b16 %v3202
    %v3445 = vunpack.c.l.b16 %v3203
    %v3446 = vunpack.c.h.b16 %v3203
    %v3447 = vunpack.c.l.b16 %v3204
    %v3448 = vunpack.c.h.b16 %v3204
    %v3449 = vunpack.c.l.b16 %v3205
    %v3450 = vunpack.c.h.b16 %v3205
    %v3451 = vunpack.c.l.b16 %v3206
    %v3452 = vunpack.c.h.b16 %v3206
    %v3453 = vunpack.c.l.b16 %v3207
    %v3454 = vunpack.c.h.b16 %v3207
    %v3455 = vunpack.c.l.b16 %v3208
    %v3456 = vunpack.c.h.b16 %v3208
    %v3457 = vunpack.c.l.b16 %v3209
    %v3458 = vunpack.c.h.b16 %v3209
    %v3459 = vunpack.c.l.b16 %v3210
    %v3460 = vunpack.c.h.b16 %v3210
    %v3461 = vunpack.c.l.b16 %v3211
    %v3462 = vunpack.c.h.b16 %v3211
    %v3463 = vunpack.c.l.b16 %v3212
    %v3464 = vunpack.c.h.b16 %v3212
    %v3465 = vunpack.c.l.b16 %v3213
    %v3466 = vunpack.c.h.b16 %v3213
    %v3467 = vunpack.c.l.b16 %v3214
    %v3468 = vunpack.c.h.b16 %v3214
    %v3469 = vunpack.c.l.b16 %v3215
    %v3470 = vunpack.c.h.b16 %v3215
    %v3471 = vunpack.c.l.b16 %v3216
    %v3472 = vunpack.c.h.b16 %v3216
    %v3473 = vunpack.c.l.b16 %v3217
    %v3474 = vunpack.c.h.b16 %v3217
    %v3475 = vunpack.c.l.b16 %v3218
    %v3476 = vunpack.c.h.b16 %v3218
    %v3477 = vunpack.c.l.b16 %v3219
    %v3478 = vunpack.c.h.b16 %v3219
    %v3479 = vunpack.c.l.b16 %v3220
    %v3480 = vunpack.c.h.b16 %v3220
    %v3481 = vunpack.c.l.b16 %v3221
    %v3482 = vunpack.c.h.b16 %v3221
    %v3483 = vunpack.c.l.b16 %v3222
    %v3484 = vunpack.c.h.b16 %v3222
    %v3485 = vunpack.c.l.b16 %v3223
    %v3486 = vunpack.c.h.b16 %v3223
    %v3487 = vunpack.c.l.b16 %v3224
    %v3488 = vunpack.c.h.b16 %v3224
    %v3489 = vunpack.c.l.b16 %v3225
    %v3490 = vunpack.c.h.b16 %v3225
    %v3491 = vunpack.c.l.b16 %v3226
    %v3492 = vunpack.c.h.b16 %v3226
    %v3493 = vunpack.c.l.b16 %v3227
    %v3494 = vunpack.c.h.b16 %v3227
    %v3495 = vunpack.c.l.b16 %v3228
    %v3496 = vunpack.c.h.b16 %v3228
    %v3497 = vunpack.c.l.b16 %v3229
    %v3498 = vunpack.c.h.b16 %v3229
    %v3499 = vunpack.c.l.b16 %v3230
    %v3500 = vunpack.c.h.b16 %v3230
    %v3501 = vunpack.c.l.b16 %v3231
    %v3502 = vunpack.c.h.b16 %v3231
    %v3503 = vunpack.c.l.b16 %v3232
    %v3504 = vunpack.c.h.b16 %v3232
    %v3505 = vunpack.c.l.b16 %v3233
    %v3506 = vunpack.c.h.b16 %v3233
    %v3507 = vunpack.c.l.b16 %v3234
    %v3508 = vunpack.c.h.b16 %v3234
    %v3509 = vunpack.c.l.b16 %v3235
    %v3510 = vunpack.c.h.b16 %v3235
    %v3511 = vunpack.c.l.b16 %v3236
    %v3512 = vunpack.c.h.b16 %v3236
    %v3513 = vunpack.c.l.b16 %v3237
    %v3514 = vunpack.c.h.b16 %v3237
    %v3515 = vunpack.c.l.b16 %v3238
    %v3516 = vunpack.c.h.b16 %v3238
    %v3517 = vunpack.c.l.b16 %v3239
    %v3518 = vunpack.c.h.b16 %v3239
    %v3519 = vunpack.c.l.b16 %v3240
    %v3520 = vunpack.c.h.b16 %v3240
    %v3521 = vunpack.c.l.b16 %v3241
    %v3522 = vunpack.c.h.b16 %v3241
    %v3523 = vunpack.c.l.b16 %v3242
    %v3524 = vunpack.c.h.b16 %v3242
    %v3525 = vunpack.c.l.b16 %v3243
    %v3526 = vunpack.c.h.b16 %v3243
    %v3527 = vunpack.c.l.b16 %v3244
    %v3528 = vunpack.c.h.b16 %v3244
    %v3529 = vunpack.c.l.b16 %v3245
    %v3530 = vunpack.c.h.b16 %v3245
    %v3531 = vunpack.c.l.b16 %v3246
    %v3532 = vunpack.c.h.b16 %v3246
    %v3533 = vunpack.c.l.b16 %v3247
    %v3534 = vunpack.c.h.b16 %v3247
    %v3535 = vunpack.c.l.b16 %v3248
    %v3536 = vunpack.c.h.b16 %v3248
    %v3537 = vpack.c.b16 %v3347, %v3345
    %v3538 = vpack.c.b16 %v3348, %v3346
    %v3539 = vpack.c.b16 %v3351, %v3349
    %v3540 = vpack.c.b16 %v3352, %v3350
    %v3541 = vpack.c.b16 %v3355, %v3353
    %v3542 = vpack.c.b16 %v3356, %v3354
    %v3543 = vpack.c.b16 %v3359, %v3357
    %v3544 = vpack.c.b16 %v3360, %v3358
    %v3545 = vpack.c.b16 %v3363, %v3361
    %v3546 = vpack.c.b16 %v3364, %v3362
    %v3547 = vpack.c.b16 %v3367, %v3365
    %v3548 = vpack.c.b16 %v3368, %v3366
    %v3549 = vpack.c.b16 %v3371, %v3369
    %v3550 = vpack.c.b16 %v3372, %v3370
    %v3551 = vpack.c.b16 %v3375, %v3373
    %v3552 = vpack.c.b16 %v3376, %v3374
    %v3553 = vpack.c.b16 %v3379, %v3377
    %v3554 = vpack.c.b16 %v3380, %v3378
    %v3555 = vpack.c.b16 %v3383, %v3381
    %v3556 = vpack.c.b16 %v3384, %v3382
    %v3557 = vpack.c.b16 %v3387, %v3385
    %v3558 = vpack.c.b16 %v3388, %v3386
    %v3559 = vpack.c.b16 %v3391, %v3389
    %v3560 = vpack.c.b16 %v3392, %v3390
    %v3561 = vpack.c.b16 %v3395, %v3393
    %v3562 = vpack.c.b16 %v3396, %v3394
    %v3563 = vpack.c.b16 %v3399, %v3397
    %v3564 = vpack.c.b16 %v3400, %v3398
    %v3565 = vpack.c.b16 %v3403, %v3401
    %v3566 = vpack.c.b16 %v3404, %v3402
    %v3567 = vpack.c.b16 %v3407, %v3405
    %v3568 = vpack.c.b16 %v3408, %v3406
    %v3569 = vpack.c.b16 %v3411, %v3409
    %v3570 = vpack.c.b16 %v3412, %v3410
    %v3571 = vpack.c.b16 %v3415, %v3413
    %v3572 = vpack.c.b16 %v3416, %v3414
    %v3573 = vpack.c.b16 %v3419, %v3417
    %v3574 = vpack.c.b16 %v3420, %v3418
    %v3575 = vpack.c.b16 %v3423, %v3421
    %v3576 = vpack.c.b16 %v3424, %v3422
    %v3577 = vpack.c.b16 %v3427, %v3425
    %v3578 = vpack.c.b16 %v3428, %v3426
    %v3579 = vpack.c.b16 %v3431, %v3429
    %v3580 = vpack.c.b16 %v3432, %v3430
    %v3581 = vpack.c.b16 %v3435, %v3433
    %v3582 = vpack.c.b16 %v3436, %v3434
    %v3583 = vpack.c.b16 %v3439, %v3437
    %v3584 = vpack.c.b16 %v3440, %v3438
    %v3585 = vpack.c.b16 %v3443, %v3441
    %v3586 = vpack.c.b16 %v3444, %v3442
    %v3587 = vpack.c.b16 %v3447, %v3445
    %v3588 = vpack.c.b16 %v3448, %v3446
    %v3589 = vpack.c.b16 %v3451, %v3449
    %v3590 = vpack.c.b16 %v3452, %v3450
    %v3591 = vpack.c.b16 %v3455, %v3453
    %v3592 = vpack.c.b16 %v3456, %v3454
    %v3593 = vpack.c.b16 %v3459, %v3457
    %v3594 = vpack.c.b16 %v3460, %v3458
    %v3595 = vpack.c.b16 %v3463, %v3461
    %v3596 = vpack.c.b16 %v3464, %v3462
    %v3597 = vpack.c.b16 %v3467, %v3465
    %v3598 = vpack.c.b16 %v3468, %v3466
    %v3599 = vpack.c.b16 %v3471, %v3469
    %v3600 = vpack.c.b16 %v3472, %v3470
    %v3601 = vpack.c.b16 %v3475, %v3473
    %v3602 = vpack.c.b16 %v3476, %v3474
    %v3603 = vpack.c.b16 %v3479, %v3477
    %v3604 = vpack.c.b16 %v3480, %v3478
    %v3605 = vpack.c.b16 %v3483, %v3481
    %v3606 = vpack.c.b16 %v3484, %v3482
    %v3607 = vpack.c.b16 %v3487, %v3485
    %v3608 = vpack.c.b16 %v3488, %v3486
    %v3609 = vpack.c.b16 %v3491, %v3489
    %v3610 = vpack.c.b16 %v3492, %v3490
    %v3611 = vpack.c.b16 %v3495, %v3493
    %v3612 = vpack.c.b16 %v3496, %v3494
    %v3613 = vpack.c.b16 %v3499, %v3497
    %v3614 = vpack.c.b16 %v3500, %v3498
    %v3615 = vpack.c.b16 %v3503, %v3501
    %v3616 = vpack.c.b16 %v3504, %v3502
    %v3617 = vpack.c.b16 %v3507, %v3505
    %v3618 = vpack.c.b16 %v3508, %v3506
    %v3619 = vpack.c.b16 %v3511, %v3509
    %v3620 = vpack.c.b16 %v3512, %v3510
    %v3621 = vpack.c.b16 %v3515, %v3513
    %v3622 = vpack.c.b16 %v3516, %v3514
    %v3623 = vpack.c.b16 %v3519, %v3517
    %v3624 = vpack.c.b16 %v3520, %v3518
    %v3625 = vpack.c.b16 %v3523, %v3521
    %v3626 = vpack.c.b16 %v3524, %v3522
    %v3627 = vpack.c.b16 %v3527, %v3525
    %v3628 = vpack.c.b16 %v3528, %v3526
    %v3629 = vpack.c.b16 %v3531, %v3529
    %v3630 = vpack.c.b16 %v3532, %v3530
    %v3631 = vpack.c.b16 %v3535, %v3533
    %v3632 = vpack.c.b16 %v3536, %v3534
    %3729 = vmatpush.bf16.msra.mxu0 %v3551
    %3730 = vmatpush.bf16.msra.mxu0 %v3549
    %3731 = vmatpush.bf16.msra.mxu0 %v3547
    %3732 = vmatpush.bf16.msra.mxu0 %v3545
    %3733 = vmatpush.bf16.msra.mxu0 %v3543
    %3734 = vmatpush.bf16.msra.mxu0 %v3541
    %3735 = vmatpush.bf16.msra.mxu0 %v3539
    %3736 = vmatpush.bf16.msra.mxu0 %v3537
    %3737 = vmatmul.bf16.gmra.mxu0 %v3130
    %v3738 = vpop.f32.mrf.mxu0
    %v3739 = vadd.f32 0.0, %v3738
    %v3740 = vpop.f32.mrf.mxu0
    %v3741 = vadd.f32 0.0, %v3740
    %3742 = vmatmul.bf16.gmra.mxu0 %v3124
    %v3743 = vpop.f32.mrf.mxu0
    %v3744 = vadd.f32 0.0, %v3743
    %v3745 = vpop.f32.mrf.mxu0
    %v3746 = vadd.f32 0.0, %v3745
    %3747 = vdwg.mxu0
    %3748 = vmatpush.bf16.msra.mxu0 %v3567
    %3749 = vmatpush.bf16.msra.mxu0 %v3565
    %3750 = vmatpush.bf16.msra.mxu0 %v3563
    %3751 = vmatpush.bf16.msra.mxu0 %v3561
    %3752 = vmatpush.bf16.msra.mxu0 %v3559
    %3753 = vmatpush.bf16.msra.mxu0 %v3557
    %3754 = vmatpush.bf16.msra.mxu0 %v3555
    %3755 = vmatpush.bf16.msra.mxu0 %v3553
    %3756 = vmatmul.bf16.gmra.mxu0 %v3133
    %v3757 = vpop.f32.mrf.mxu0
    %v3758 = vadd.f32 %v3739, %v3757
    %v3759 = vpop.f32.mrf.mxu0
    %v3760 = vadd.f32 %v3741, %v3759
    %3761 = vmatmul.bf16.gmra.mxu0 %v3126
    %v3762 = vpop.f32.mrf.mxu0
    %v3763 = vadd.f32 %v3744, %v3762
    %v3764 = vpop.f32.mrf.mxu0
    %v3765 = vadd.f32 %v3746, %v3764
    %3766 = vdwg.mxu0
    %3767 = vmatpush.bf16.msra.mxu0 %v3583
    %3768 = vmatpush.bf16.msra.mxu0 %v3581
    %3769 = vmatpush.bf16.msra.mxu0 %v3579
    %3770 = vmatpush.bf16.msra.mxu0 %v3577
    %3771 = vmatpush.bf16.msra.mxu0 %v3575
    %3772 = vmatpush.bf16.msra.mxu0 %v3573
    %3773 = vmatpush.bf16.msra.mxu0 %v3571
    %3774 = vmatpush.bf16.msra.mxu0 %v3569
    %3775 = vmatmul.bf16.gmra.mxu0 %v3117
    %v3776 = vpop.f32.mrf.mxu0
    %v3777 = vadd.f32 %v3758, %v3776
    %v3778 = vpop.f32.mrf.mxu0
    %v3779 = vadd.f32 %v3760, %v3778
    %3780 = vmatmul.bf16.gmra.mxu0 %v3119
    %v3781 = vpop.f32.mrf.mxu0
    %v3782 = vadd.f32 %v3763, %v3781
    %v3783 = vpop.f32.mrf.mxu0
    %v3784 = vadd.f32 %v3765, %v3783
    %3785 = vdwg.mxu0
    %3786 = vmatpush.bf16.msra.mxu0 %v3599
    %3787 = vmatpush.bf16.msra.mxu0 %v3597
    %3788 = vmatpush.bf16.msra.mxu0 %v3595
    %3789 = vmatpush.bf16.msra.mxu0 %v3593
    %3790 = vmatpush.bf16.msra.mxu0 %v3591
    %3791 = vmatpush.bf16.msra.mxu0 %v3589
    %3792 = vmatpush.bf16.msra.mxu0 %v3587
    %3793 = vmatpush.bf16.msra.mxu0 %v3585
    %3794 = vmatmul.bf16.gmra.mxu0 %v3118
    %v3795 = vpop.f32.mrf.mxu0
    %v3796 = vadd.f32 %v3777, %v3795
    %v3797 = vpop.f32.mrf.mxu0
    %v3798 = vadd.f32 %v3779, %v3797
    %3799 = vmatmul.bf16.gmra.mxu0 %v3120
    %v3800 = vpop.f32.mrf.mxu0
    %v3801 = vadd.f32 %v3782, %v3800
    %v3802 = vpop.f32.mrf.mxu0
    %v3803 = vadd.f32 %v3784, %v3802
    %3804 = vdwg.mxu0
    %3805 = vmatpush.bf16.msra.mxu0 %v3615
    %3806 = vmatpush.bf16.msra.mxu0 %v3613
    %3807 = vmatpush.bf16.msra.mxu0 %v3611
    %3808 = vmatpush.bf16.msra.mxu0 %v3609
    %3809 = vmatpush.bf16.msra.mxu0 %v3607
    %3810 = vmatpush.bf16.msra.mxu0 %v3605
    %3811 = vmatpush.bf16.msra.mxu0 %v3603
    %3812 = vmatpush.bf16.msra.mxu0 %v3601
    %3813 = vmatmul.bf16.gmra.mxu0 %v3137
    %v3814 = vpop.f32.mrf.mxu0
    %v3815 = vadd.f32 %v3796, %v3814
    %v3816 = vpop.f32.mrf.mxu0
    %v3817 = vadd.f32 %v3798, %v3816
    %3818 = vmatmul.bf16.gmra.mxu0 %v3144
    %v3819 = vpop.f32.mrf.mxu0
    %v3820 = vadd.f32 %v3801, %v3819
    %v3821 = vpop.f32.mrf.mxu0
    %v3822 = vadd.f32 %v3803, %v3821
    %3823 = vdwg.mxu0
    %3824 = vmatpush.bf16.msra.mxu0 %v3631
    %3825 = vmatpush.bf16.msra.mxu0 %v3629
    %3826 = vmatpush.bf16.msra.mxu0 %v3627
    %3827 = vmatpush.bf16.msra.mxu0 %v3625
    %3828 = vmatpush.bf16.msra.mxu0 %v3623
    %3829 = vmatpush.bf16.msra.mxu0 %v3621
    %3830 = vmatpush.bf16.msra.mxu0 %v3619
    %3831 = vmatpush.bf16.msra.mxu0 %v3617
    %3832 = vmatmul.bf16.gmra.mxu0 %v3140
    %v3833 = vpop.f32.mrf.mxu0
    %v3834 = vadd.f32 %v3815, %v3833
    %v3835 = vpop.f32.mrf.mxu0
    %v3836 = vadd.f32 %v3817, %v3835
    %3837 = vmatmul.bf16.gmra.mxu0 %v3147
    %v3838 = vpop.f32.mrf.mxu0
    %v3839 = vadd.f32 %v3820, %v3838
    %v3840 = vpop.f32.mrf.mxu0
    %v3841 = vadd.f32 %v3822, %v3840
    %3842 = vdwg.mxu0
    %3843 = vmatpush.bf16.msra.mxu0 %v3552
    %3844 = vmatpush.bf16.msra.mxu0 %v3550
    %3845 = vmatpush.bf16.msra.mxu0 %v3548
    %3846 = vmatpush.bf16.msra.mxu0 %v3546
    %3847 = vmatpush.bf16.msra.mxu0 %v3544
    %3848 = vmatpush.bf16.msra.mxu0 %v3542
    %3849 = vmatpush.bf16.msra.mxu0 %v3540
    %3850 = vmatpush.bf16.msra.mxu0 %v3538
    %3851 = vmatmul.bf16.gmra.mxu0 %v3130
    %v3852 = vpop.f32.mrf.mxu0
    %v3853 = vadd.f32 0.0, %v3852
    %v3854 = vpop.f32.mrf.mxu0
    %v3855 = vadd.f32 0.0, %v3854
    %3856 = vmatmul.bf16.gmra.mxu0 %v3124
    %v3857 = vpop.f32.mrf.mxu0
    %v3858 = vadd.f32 0.0, %v3857
    %v3859 = vpop.f32.mrf.mxu0
    %v3860 = vadd.f32 0.0, %v3859
    %3861 = vdwg.mxu0
    %3862 = vmatpush.bf16.msra.mxu0 %v3568
    %3863 = vmatpush.bf16.msra.mxu0 %v3566
    %3864 = vmatpush.bf16.msra.mxu0 %v3564
    %3865 = vmatpush.bf16.msra.mxu0 %v3562
    %3866 = vmatpush.bf16.msra.mxu0 %v3560
    %3867 = vmatpush.bf16.msra.mxu0 %v3558
    %3868 = vmatpush.bf16.msra.mxu0 %v3556
    %3869 = vmatpush.bf16.msra.mxu0 %v3554
    %3870 = vmatmul.bf16.gmra.mxu0 %v3133
    %v3871 = vpop.f32.mrf.mxu0
    %v3872 = vadd.f32 %v3853, %v3871
    %v3873 = vpop.f32.mrf.mxu0
    %v3874 = vadd.f32 %v3855, %v3873
    %3875 = vmatmul.bf16.gmra.mxu0 %v3126
    %v3876 = vpop.f32.mrf.mxu0
    %v3877 = vadd.f32 %v3858, %v3876
    %v3878 = vpop.f32.mrf.mxu0
    %v3879 = vadd.f32 %v3860, %v3878
    %3880 = vdwg.mxu0
    %3881 = vmatpush.bf16.msra.mxu0 %v3584
    %3882 = vmatpush.bf16.msra.mxu0 %v3582
    %3883 = vmatpush.bf16.msra.mxu0 %v3580
    %3884 = vmatpush.bf16.msra.mxu0 %v3578
    %3885 = vmatpush.bf16.msra.mxu0 %v3576
    %3886 = vmatpush.bf16.msra.mxu0 %v3574
    %3887 = vmatpush.bf16.msra.mxu0 %v3572
    %3888 = vmatpush.bf16.msra.mxu0 %v3570
    %3889 = vmatmul.bf16.gmra.mxu0 %v3117
    %v3890 = vpop.f32.mrf.mxu0
    %v3891 = vadd.f32 %v3872, %v3890
    %v3892 = vpop.f32.mrf.mxu0
    %v3893 = vadd.f32 %v3874, %v3892
    %3894 = vmatmul.bf16.gmra.mxu0 %v3119
    %v3895 = vpop.f32.mrf.mxu0
    %v3896 = vadd.f32 %v3877, %v3895
    %v3897 = vpop.f32.mrf.mxu0
    %v3898 = vadd.f32 %v3879, %v3897
    %3899 = vdwg.mxu0
    %3900 = vmatpush.bf16.msra.mxu0 %v3600
    %3901 = vmatpush.bf16.msra.mxu0 %v3598
    %3902 = vmatpush.bf16.msra.mxu0 %v3596
    %3903 = vmatpush.bf16.msra.mxu0 %v3594
    %3904 = vmatpush.bf16.msra.mxu0 %v3592
    %3905 = vmatpush.bf16.msra.mxu0 %v3590
    %3906 = vmatpush.bf16.msra.mxu0 %v3588
    %3907 = vmatpush.bf16.msra.mxu0 %v3586
    %3908 = vmatmul.bf16.gmra.mxu0 %v3118
    %v3909 = vpop.f32.mrf.mxu0
    %v3910 = vadd.f32 %v3891, %v3909
    %v3911 = vpop.f32.mrf.mxu0
    %v3912 = vadd.f32 %v3893, %v3911
    %3913 = vmatmul.bf16.gmra.mxu0 %v3120
    %v3914 = vpop.f32.mrf.mxu0
    %v3915 = vadd.f32 %v3896, %v3914
    %v3916 = vpop.f32.mrf.mxu0
    %v3917 = vadd.f32 %v3898, %v3916
    %3918 = vdwg.mxu0
    %3919 = vmatpush.bf16.msra.mxu0 %v3616
    %3920 = vmatpush.bf16.msra.mxu0 %v3614
    %3921 = vmatpush.bf16.msra.mxu0 %v3612
    %3922 = vmatpush.bf16.msra.mxu0 %v3610
    %3923 = vmatpush.bf16.msra.mxu0 %v3608
    %3924 = vmatpush.bf16.msra.mxu0 %v3606
    %3925 = vmatpush.bf16.msra.mxu0 %v3604
    %3926 = vmatpush.bf16.msra.mxu0 %v3602
    %3927 = vmatmul.bf16.gmra.mxu0 %v3137
    %v3928 = vpop.f32.mrf.mxu0
    %v3929 = vadd.f32 %v3910, %v3928
    %v3930 = vpop.f32.mrf.mxu0
    %v3931 = vadd.f32 %v3912, %v3930
    %3932 = vmatmul.bf16.gmra.mxu0 %v3144
    %v3933 = vpop.f32.mrf.mxu0
    %v3934 = vadd.f32 %v3915, %v3933
    %v3935 = vpop.f32.mrf.mxu0
    %v3936 = vadd.f32 %v3917, %v3935
    %3937 = vdwg.mxu0
    %3938 = vmatpush.bf16.msra.mxu0 %v3632
    %3939 = vmatpush.bf16.msra.mxu0 %v3630
    %3940 = vmatpush.bf16.msra.mxu0 %v3628
    %3941 = vmatpush.bf16.msra.mxu0 %v3626
    %3942 = vmatpush.bf16.msra.mxu0 %v3624
    %3943 = vmatpush.bf16.msra.mxu0 %v3622
    %3944 = vmatpush.bf16.msra.mxu0 %v3620
    %3945 = vmatpush.bf16.msra.mxu0 %v3618
    %3946 = vmatmul.bf16.gmra.mxu0 %v3140
    %v3947 = vpop.f32.mrf.mxu0
    %v3948 = vadd.f32 %v3929, %v3947
    %v3949 = vpop.f32.mrf.mxu0
    %v3950 = vadd.f32 %v3931, %v3949
    %3951 = vmatmul.bf16.gmra.mxu0 %v3147
    %v3952 = vpop.f32.mrf.mxu0
    %v3953 = vadd.f32 %v3934, %v3952
    %v3954 = vpop.f32.mrf.mxu0
    %v3955 = vadd.f32 %v3936, %v3954
    %3956 = vdwg.mxu0
    %v3957 = vadd.f32 %v3834, %v3836
    %v3958 = vadd.f32 %v3957, %v3839
    %v3959 = vadd.f32 %v3958, %v3841
    %v3960 = vrot.slane %v3959, 4
    %v3961 = vadd.f32 %v3959, %v3960
    %v3962 = vrot.slane %v3961, 2
    %v3963 = vadd.f32 %v3961, %v3962
    %v3964 = vrot.slane %v3963, 1
    %v3965 = vadd.f32 %v3963, %v3964
    %v3966 = vadd.f32 %v3948, %v3950
    %v3967 = vadd.f32 %v3966, %v3953
    %v3968 = vadd.f32 %v3967, %v3955
    %v3969 = vrot.slane %v3968, 4
    %v3970 = vadd.f32 %v3968, %v3969
    %v3971 = vrot.slane %v3970, 2
    %v3972 = vadd.f32 %v3970, %v3971
    %v3973 = vrot.slane %v3972, 1
    %v3974 = vadd.f32 %v3972, %v3973
    %v3975 = vmul.f32 %v3834, %v3834
    %v3976 = vmul.f32 %v3948, %v3948
    %v3977 = vmul.f32 %v3836, %v3836
    %v3978 = vmul.f32 %v3950, %v3950
    %v3979 = vmul.f32 %v3839, %v3839
    %v3980 = vmul.f32 %v3953, %v3953
    %v3981 = vmul.f32 %v3841, %v3841
    %v3982 = vmul.f32 %v3955, %v3955
    %v3983 = vadd.f32 %v3975, %v3977
    %v3984 = vadd.f32 %v3983, %v3979
    %v3985 = vadd.f32 %v3984, %v3981
    %v3986 = vrot.slane %v3985, 4
    %v3987 = vadd.f32 %v3985, %v3986
    %v3988 = vrot.slane %v3987, 2
    %v3989 = vadd.f32 %v3987, %v3988
    %v3990 = vrot.slane %v3989, 1
    %v3991 = vadd.f32 %v3989, %v3990
    %v3992 = vadd.f32 %v3976, %v3978
    %v3993 = vadd.f32 %v3992, %v3980
    %v3994 = vadd.f32 %v3993, %v3982
    %v3995 = vrot.slane %v3994, 4
    %v3996 = vadd.f32 %v3994, %v3995
    %v3997 = vrot.slane %v3996, 2
    %v3998 = vadd.f32 %v3996, %v3997
    %v3999 = vrot.slane %v3998, 1
    %v4000 = vadd.f32 %v3998, %v3999
    %v4001 = vsel %vm172, %v3965, %v3991
    %v4002 = vsel %vm172, %v3974, %v4000
    %4003 = vmatpush.msra.mxu0 %v1893
    %4004 = vmatpush.msra.mxu0 %v1892
    %4005 = vmatpush.msra.mxu0 %v1891
    %4006 = vmatpush.msra.mxu0 %v1890
    %4007 = vmatpush.msra.mxu0 %v1889
    %4008 = vmatpush.msra.mxu0 %v1888
    %4009 = vmatpush.msra.mxu0 %v1887
    %4010 = vmatpush.msra.mxu0 %v1886
    %4011 = vmatpush.msra.mxu0 %v1885
    %4012 = vmatpush.msra.mxu0 %v1884
    %4013 = vmatpush.msra.mxu0 %v1883
    %4014 = vmatpush.msra.mxu0 %v1882
    %4015 = vmatpush.msra.mxu0 %v1881
    %4016 = vmatpush.msra.mxu0 %v1880
    %4017 = vmatpush.msra.mxu0 %v1879
    %4018 = vmatpush.msra.mxu0 %v1878
    %4019 = vmatmul.f32.gmra.mxu0 %v4001
    %v4020 = vpop.f32.mrf.mxu0
    %v4021 = vadd.f32 0.0, %v4020
    %4022 = vdwg.mxu0
    %4023 = vmatpush.msra.mxu0 %v1909
    %4024 = vmatpush.msra.mxu0 %v1908
    %4025 = vmatpush.msra.mxu0 %v1907
    %4026 = vmatpush.msra.mxu0 %v1906
    %4027 = vmatpush.msra.mxu0 %v1905
    %4028 = vmatpush.msra.mxu0 %v1904
    %4029 = vmatpush.msra.mxu0 %v1903
    %4030 = vmatpush.msra.mxu0 %v1902
    %4031 = vmatpush.msra.mxu0 %v1901
    %4032 = vmatpush.msra.mxu0 %v1900
    %4033 = vmatpush.msra.mxu0 %v1899
    %4034 = vmatpush.msra.mxu0 %v1898
    %4035 = vmatpush.msra.mxu0 %v1897
    %4036 = vmatpush.msra.mxu0 %v1896
    %4037 = vmatpush.msra.mxu0 %v1895
    %4038 = vmatpush.msra.mxu0 %v1894
    %4039 = vmatmul.f32.gmra.mxu0 %v4002
    %v4040 = vpop.f32.mrf.mxu0
    %v4041 = vadd.f32 %v4021, %v4040
    %4042 = vdwg.mxu0
    %v4043 = vmul.f32 %v4041, %v4041
    %v4045 = vrot.slane %v4043, 7
    %v4047 = vsub.f32 %v4041, %v4045
    %v4048 = vadd.f32 %v4047, 1e-05
    %v4049 = vrsqrt.pop %v4048
    %v4050 = vmul.f32 %v4049, %v4048
    %v4051 = vmul.f32 %v4050, %v4049
    %v4052 = vmul.f32 0.5, %v4051
    %v4053 = vsub.f32 1.5, %v4052
    %v4054 = vmul.f32 %v4049, %v4053
    %vm4055 = vweird.f32 %v4048
    %vm4056 = vweird.f32 %v4049
    %vm4057 = vmor %vm4055, %vm4056
    %v4058 = vsel %vm4057, %v4049, %v4054
    %v4059 = vld [vmem:[%s6] sm:$0x1]
    %v4061 = vrot.slane %v4059, 7
    %v4063 = vmul.f32 %v4058, %v4061
    %v4064 = vld [vmem:[%s6 + $0x1] sm:$0x1]
    %v4066 = vrot.slane %v4063, 1
    %v4068 = vmul.f32 %v4041, %v4066
    %v4069 = vsub.f32 %v4064, %v4068
    %v4071 = vrot.slane %v4069, 7
    %v4073 = vsel %vm172, %v4066, %v4071
    %v4075 = vsel %vm1985, %v4073, 0
    %4077 = vmatpush.msra.mxu0 0.0
    %4078 = vmatpush.msra.mxu0 0.0
    %4079 = vmatpush.msra.mxu0 0.0
    %4080 = vmatpush.msra.mxu0 0.0
    %4081 = vmatpush.msra.mxu0 0.0
    %4082 = vmatpush.msra.mxu0 0.0
    %4083 = vmatpush.msra.mxu0 0.0
    %4084 = vmatpush.msra.mxu0 0.0
    %4085 = vmatpush.msra.mxu0 0.0
    %4086 = vmatpush.msra.mxu0 0.0
    %4087 = vmatpush.msra.mxu0 0.0
    %4088 = vmatpush.msra.mxu0 0.0
    %4089 = vmatpush.msra.mxu0 0.0
    %4090 = vmatpush.msra.mxu0 0.0
    %4091 = vmatpush.msra.mxu0 %v1983
    %4092 = vmatpush.msra.mxu0 %v1981
    %4093 = vmatmul.f32.gmra.mxu0 %v4075
    %v4094 = vpop.f32.mrf.mxu0
    %v4095 = vadd.f32 0.0, %v4094
    %4096 = vdwg.mxu0
    %4097 = vmatpush.msra.mxu0 0.0
    %4098 = vmatpush.msra.mxu0 0.0
    %4099 = vmatpush.msra.mxu0 0.0
    %4100 = vmatpush.msra.mxu0 0.0
    %4101 = vmatpush.msra.mxu0 0.0
    %4102 = vmatpush.msra.mxu0 0.0
    %4103 = vmatpush.msra.mxu0 0.0
    %4104 = vmatpush.msra.mxu0 0.0
    %4105 = vmatpush.msra.mxu0 0.0
    %4106 = vmatpush.msra.mxu0 0.0
    %4107 = vmatpush.msra.mxu0 0.0
    %4108 = vmatpush.msra.mxu0 0.0
    %4109 = vmatpush.msra.mxu0 0.0
    %4110 = vmatpush.msra.mxu0 0.0
    %4111 = vmatpush.msra.mxu0 %v1984
    %4112 = vmatpush.msra.mxu0 %v1982
    %4113 = vmatmul.f32.gmra.mxu0 %v4075
    %v4114 = vpop.f32.mrf.mxu0
    %v4115 = vadd.f32 0.0, %v4114
    %4116 = vdwg.mxu0
    %v4117 = vperm.slane %v4095, 0
    %v4118 = vperm.slane %v4115, 0
    %v4119 = vmul.f32 %v3834, %v4117
    %v4120 = vmul.f32 %v3948, %v4118
    %v4121 = vmul.f32 %v3836, %v4117
    %v4122 = vmul.f32 %v3950, %v4118
    %v4123 = vmul.f32 %v3839, %v4117
    %v4124 = vmul.f32 %v3953, %v4118
    %v4125 = vmul.f32 %v3841, %v4117
    %v4126 = vmul.f32 %v3955, %v4118
    %v4127 = vperm.slane %v4095, 1
    %v4128 = vperm.slane %v4115, 1
    %v4129 = vadd.f32 %v4119, %v4127
    %v4130 = vadd.f32 %v4120, %v4128
    %v4131 = vadd.f32 %v4121, %v4127
    %v4132 = vadd.f32 %v4122, %v4128
    %v4133 = vadd.f32 %v4123, %v4127
    %v4134 = vadd.f32 %v4124, %v4128
    %v4135 = vadd.f32 %v4125, %v4127
    %v4136 = vadd.f32 %v4126, %v4128
    %v4137 = vpack.c.bf16 %v4131, %v4129
    %v4138 = vpack.c.bf16 %v4132, %v4130
    %v4139 = vpack.c.bf16 %v4135, %v4133
    %v4140 = vpack.c.bf16 %v4136, %v4134
    %v4141 = vld [vmem:[%s9] sm:$0xf]
    %v4142 = vld [vmem:[%s9 + $0x4] sm:$0xf]
    %v4143 = vld [vmem:[%s9 + $0x8] sm:$0xf]
    %v4144 = vld [vmem:[%s9 + $0xc] sm:$0xf]
    %v4145 = vld [vmem:[%s9 + $0x10] sm:$0xf]
    %v4146 = vld [vmem:[%s9 + $0x14] sm:$0xf]
    %v4147 = vld [vmem:[%s9 + $0x18] sm:$0xf]
    %v4148 = vld [vmem:[%s9 + $0x1c] sm:$0xf]
    %v4149 = vld [vmem:[%s9 + $0x20] sm:$0xf]
    %v4150 = vld [vmem:[%s9 + $0x24] sm:$0xf]
    %v4151 = vld [vmem:[%s9 + $0x28] sm:$0xf]
    %v4152 = vld [vmem:[%s9 + $0x2c] sm:$0xf]
    %v4153 = vld [vmem:[%s9 + $0x30] sm:$0xf]
    %v4154 = vld [vmem:[%s9 + $0x34] sm:$0xf]
    %v4155 = vld [vmem:[%s9 + $0x38] sm:$0xf]
    %v4156 = vld [vmem:[%s9 + $0x3c] sm:$0xf]
    %v4157 = vld [vmem:[%s9 + $0x40] sm:$0xf]
    %v4158 = vld [vmem:[%s9 + $0x44] sm:$0xf]
    %v4159 = vld [vmem:[%s9 + $0x48] sm:$0xf]
    %v4160 = vld [vmem:[%s9 + $0x4c] sm:$0xf]
    %v4161 = vld [vmem:[%s9 + $0x50] sm:$0xf]
    %v4162 = vld [vmem:[%s9 + $0x54] sm:$0xf]
    %v4163 = vld [vmem:[%s9 + $0x58] sm:$0xf]
    %v4164 = vld [vmem:[%s9 + $0x5c] sm:$0xf]
    %v4165 = vld [vmem:[%s9 + $0x60] sm:$0xf]
    %v4166 = vld [vmem:[%s9 + $0x64] sm:$0xf]
    %v4167 = vld [vmem:[%s9 + $0x68] sm:$0xf]
    %v4168 = vld [vmem:[%s9 + $0x6c] sm:$0xf]
    %v4169 = vld [vmem:[%s9 + $0x70] sm:$0xf]
    %v4170 = vld [vmem:[%s9 + $0x74] sm:$0xf]
    %v4171 = vld [vmem:[%s9 + $0x78] sm:$0xf]
    %v4172 = vld [vmem:[%s9 + $0x7c] sm:$0xf]
    %v4173 = vld [vmem:[%s10] sm:$0x1]
    %v4175 = vperm.slane %v4173, 0
    %v4209 = vunpack.c.l.b16 %v4141
    %v4210 = vunpack.c.l.b16 %v4142
    %v4211 = vunpack.c.l.b16 %v4143
    %v4212 = vunpack.c.l.b16 %v4144
    %v4213 = vunpack.c.l.b16 %v4145
    %v4214 = vunpack.c.l.b16 %v4146
    %v4215 = vunpack.c.l.b16 %v4147
    %v4216 = vunpack.c.l.b16 %v4148
    %v4217 = vunpack.c.l.b16 %v4149
    %v4218 = vunpack.c.l.b16 %v4150
    %v4219 = vunpack.c.l.b16 %v4151
    %v4220 = vunpack.c.l.b16 %v4152
    %v4221 = vunpack.c.l.b16 %v4153
    %v4222 = vunpack.c.l.b16 %v4154
    %v4223 = vunpack.c.l.b16 %v4155
    %v4224 = vunpack.c.l.b16 %v4156
    %v4225 = vunpack.c.l.b16 %v4157
    %v4226 = vunpack.c.l.b16 %v4158
    %v4227 = vunpack.c.l.b16 %v4159
    %v4228 = vunpack.c.l.b16 %v4160
    %v4229 = vunpack.c.l.b16 %v4161
    %v4230 = vunpack.c.l.b16 %v4162
    %v4231 = vunpack.c.l.b16 %v4163
    %v4232 = vunpack.c.l.b16 %v4164
    %v4233 = vunpack.c.l.b16 %v4165
    %v4234 = vunpack.c.l.b16 %v4166
    %v4235 = vunpack.c.l.b16 %v4167
    %v4236 = vunpack.c.l.b16 %v4168
    %v4237 = vunpack.c.l.b16 %v4169
    %v4238 = vunpack.c.l.b16 %v4170
    %v4239 = vunpack.c.l.b16 %v4171
    %v4240 = vunpack.c.l.b16 %v4172
    %v4241 = vpack.c.b16 %v4210, %v4209
    %v4242 = vpack.c.b16 %v4212, %v4211
    %v4243 = vpack.c.b16 %v4214, %v4213
    %v4244 = vpack.c.b16 %v4216, %v4215
    %v4245 = vpack.c.b16 %v4218, %v4217
    %v4246 = vpack.c.b16 %v4220, %v4219
    %v4247 = vpack.c.b16 %v4222, %v4221
    %v4248 = vpack.c.b16 %v4224, %v4223
    %v4249 = vpack.c.b16 %v4226, %v4225
    %v4250 = vpack.c.b16 %v4228, %v4227
    %v4251 = vpack.c.b16 %v4230, %v4229
    %v4252 = vpack.c.b16 %v4232, %v4231
    %v4253 = vpack.c.b16 %v4234, %v4233
    %v4254 = vpack.c.b16 %v4236, %v4235
    %v4255 = vpack.c.b16 %v4238, %v4237
    %v4256 = vpack.c.b16 %v4240, %v4239
    %4273 = vmatpush.bf16.msra.mxu0 %v4248
    %4274 = vmatpush.bf16.msra.mxu0 %v4247
    %4275 = vmatpush.bf16.msra.mxu0 %v4246
    %4276 = vmatpush.bf16.msra.mxu0 %v4245
    %4277 = vmatpush.bf16.msra.mxu0 %v4244
    %4278 = vmatpush.bf16.msra.mxu0 %v4243
    %4279 = vmatpush.bf16.msra.mxu0 %v4242
    %4280 = vmatpush.bf16.msra.mxu0 %v4241
    %4281 = vmatmul.bf16.gmra.mxu0 %v4137
    %v4282 = vpop.f32.mrf.mxu0
    %v4283 = vadd.f32 %v4175, %v4282
    %v4284 = vpop.f32.mrf.mxu0
    %v4285 = vadd.f32 %v4175, %v4284
    %4286 = vmatmul.bf16.gmra.mxu0 %v4139
    %v4287 = vpop.f32.mrf.mxu0
    %v4288 = vadd.f32 %v4175, %v4287
    %v4289 = vpop.f32.mrf.mxu0
    %v4290 = vadd.f32 %v4175, %v4289
    %4291 = vdwg.mxu0
    %4292 = vmatpush.bf16.msra.mxu0 %v4256
    %4293 = vmatpush.bf16.msra.mxu0 %v4255
    %4294 = vmatpush.bf16.msra.mxu0 %v4254
    %4295 = vmatpush.bf16.msra.mxu0 %v4253
    %4296 = vmatpush.bf16.msra.mxu0 %v4252
    %4297 = vmatpush.bf16.msra.mxu0 %v4251
    %4298 = vmatpush.bf16.msra.mxu0 %v4250
    %4299 = vmatpush.bf16.msra.mxu0 %v4249
    %4300 = vmatmul.bf16.gmra.mxu0 %v4138
    %v4301 = vpop.f32.mrf.mxu0
    %v4302 = vadd.f32 %v4283, %v4301
    %v4303 = vpop.f32.mrf.mxu0
    %v4304 = vadd.f32 %v4285, %v4303
    %4305 = vmatmul.bf16.gmra.mxu0 %v4140
    %v4306 = vpop.f32.mrf.mxu0
    %v4307 = vadd.f32 %v4288, %v4306
    %v4308 = vpop.f32.mrf.mxu0
    %v4309 = vadd.f32 %v4290, %v4308
    %4310 = vdwg.mxu0
    %v4311 = vmax.f32 %v4302, 0.0
    %v4312 = vmax.f32 %v4304, 0.0
    %v4313 = vmax.f32 %v4307, 0.0
    %v4314 = vmax.f32 %v4309, 0.0
    %v4315 = vpack.c.bf16 %v4312, %v4311
    %v4316 = vpack.c.bf16 %v4314, %v4313
    %v4317 = vld [vmem:[%s11] sm:$0xff]
    %v4318 = vld [vmem:[%s11 + $0x8] sm:$0xff]
    %v4319 = vld [vmem:[%s11 + $0x10] sm:$0xff]
    %v4320 = vld [vmem:[%s11 + $0x18] sm:$0xff]
    %v4321 = vld [vmem:[%s12] sm:$0x3]
    %v4323 = vperm.slane %v4321, 0
    %v4324 = vperm.slane %v4321, 1
    %v4331 = vunpack.c.l.b16 %v4317
    %v4332 = vunpack.c.h.b16 %v4317
    %v4333 = vunpack.c.l.b16 %v4318
    %v4334 = vunpack.c.h.b16 %v4318
    %v4335 = vunpack.c.l.b16 %v4319
    %v4336 = vunpack.c.h.b16 %v4319
    %v4337 = vunpack.c.l.b16 %v4320
    %v4338 = vunpack.c.h.b16 %v4320
    %v4339 = vpack.c.b16 %v4333, %v4331
    %v4340 = vpack.c.b16 %v4334, %v4332
    %v4341 = vpack.c.b16 %v4337, %v4335
    %v4342 = vpack.c.b16 %v4338, %v4336
    %vm4347 = vcmask 261120
    %v4349 = vsel %vm4347, %v4315, 0
    %v4352 = vsel %vm4347, %v4316, 0
    %4354 = vmatpush.bf16.msra.mxu0 0
    %4355 = vmatpush.bf16.msra.mxu0 0
    %4356 = vmatpush.bf16.msra.mxu0 0
    %4357 = vmatpush.bf16.msra.mxu0 0
    %4358 = vmatpush.bf16.msra.mxu0 0
    %4359 = vmatpush.bf16.msra.mxu0 0
    %4360 = vmatpush.bf16.msra.mxu0 %v4341
    %4361 = vmatpush.bf16.msra.mxu0 %v4339
    %4362 = vmatmul.bf16.gmra.mxu0 %v4349
    %v4363 = vpop.f32.mrf.mxu0
    %v4364 = vadd.f32 %v4323, %v4363
    %v4365 = vpop.f32.mrf.mxu0
    %v4366 = vadd.f32 %v4323, %v4365
    %4367 = vmatmul.bf16.gmra.mxu0 %v4352
    %v4368 = vpop.f32.mrf.mxu0
    %v4369 = vadd.f32 %v4323, %v4368
    %v4370 = vpop.f32.mrf.mxu0
    %v4371 = vadd.f32 %v4323, %v4370
    %4372 = vdwg.mxu0
    %4373 = vmatpush.bf16.msra.mxu0 0
    %4374 = vmatpush.bf16.msra.mxu0 0
    %4375 = vmatpush.bf16.msra.mxu0 0
    %4376 = vmatpush.bf16.msra.mxu0 0
    %4377 = vmatpush.bf16.msra.mxu0 0
    %4378 = vmatpush.bf16.msra.mxu0 0
    %4379 = vmatpush.bf16.msra.mxu0 %v4342
    %4380 = vmatpush.bf16.msra.mxu0 %v4340
    %4381 = vmatmul.bf16.gmra.mxu0 %v4349
    %v4382 = vpop.f32.mrf.mxu0
    %v4383 = vadd.f32 %v4324, %v4382
    %v4384 = vpop.f32.mrf.mxu0
    %v4385 = vadd.f32 %v4324, %v4384
    %4386 = vmatmul.bf16.gmra.mxu0 %v4352
    %v4387 = vpop.f32.mrf.mxu0
    %v4388 = vadd.f32 %v4324, %v4387
    %v4389 = vpop.f32.mrf.mxu0
    %v4390 = vadd.f32 %v4324, %v4389
    %4391 = vdwg.mxu0
    %v4392 = vxor.u32 %v4364, 2147483648
    %v4393 = vxor.u32 %v4383, 2147483648
    %v4394 = vxor.u32 %v4366, 2147483648
    %v4395 = vxor.u32 %v4385, 2147483648
    %v4396 = vxor.u32 %v4369, 2147483648
    %v4397 = vxor.u32 %v4388, 2147483648
    %v4398 = vxor.u32 %v4371, 2147483648
    %v4399 = vxor.u32 %v4390, 2147483648
    %v4400 = vmul.f32 %v4392, 1.442695
    %v4401 = vpow.pop %v4400
    %v4402 = vmul.f32 %v4393, 1.442695
    %v4403 = vpow.pop %v4402
    %v4404 = vmul.f32 %v4394, 1.442695
    %v4405 = vpow.pop %v4404
    %v4406 = vmul.f32 %v4395, 1.442695
    %v4407 = vpow.pop %v4406
    %v4408 = vmul.f32 %v4396, 1.442695
    %v4409 = vpow.pop %v4408
    %v4410 = vmul.f32 %v4397, 1.442695
    %v4411 = vpow.pop %v4410
    %v4412 = vmul.f32 %v4398, 1.442695
    %v4413 = vpow.pop %v4412
    %v4414 = vmul.f32 %v4399, 1.442695
    %v4415 = vpow.pop %v4414
    %v4416 = vadd.f32 %v4401, 1.0
    %v4417 = vadd.f32 %v4403, 1.0
    %v4418 = vadd.f32 %v4405, 1.0
    %v4419 = vadd.f32 %v4407, 1.0
    %v4420 = vadd.f32 %v4409, 1.0
    %v4421 = vadd.f32 %v4411, 1.0
    %v4422 = vadd.f32 %v4413, 1.0
    %v4423 = vadd.f32 %v4415, 1.0
    %v4424 = vrcp.pop %v4416
    %v4425 = vmul.f32 %v4416, %v4424
    %v4426 = vsub.f32 1.0, %v4425
    %v4427 = vmul.f32 %v4424, %v4426
    %v4428 = vadd.f32 %v4424, %v4427
    %vm4429 = vweird.f32 %v4416
    %vm4430 = vweird.f32 %v4424
    %vm4431 = vmor %vm4429, %vm4430
    %v4432 = vsel %vm4431, %v4424, %v4428
    %v4433 = vand.u32 2147483647, %v4416
    %vm4434 = vcmp.eq.f32.partialorder %v4433, 8.507059e+37
    %v4435 = vand.u32 %v4416, 2147483648
    %v4436 = vor.u32 1.1754944e-38, %v4435
    %v4437 = vsel %vm4434, %v4436, %v4432
    %v4438 = vmul.f32 1.0, %v4437
    %v4439 = vrcp.pop %v4417
    %v4440 = vmul.f32 %v4417, %v4439
    %v4441 = vsub.f32 1.0, %v4440
    %v4442 = vmul.f32 %v4439, %v4441
    %v4443 = vadd.f32 %v4439, %v4442
    %vm4444 = vweird.f32 %v4417
    %vm4445 = vweird.f32 %v4439
    %vm4446 = vmor %vm4444, %vm4445
    %v4447 = vsel %vm4446, %v4439, %v4443
    %v4448 = vand.u32 2147483647, %v4417
    %vm4449 = vcmp.eq.f32.partialorder %v4448, 8.507059e+37
    %v4450 = vand.u32 %v4417, 2147483648
    %v4451 = vor.u32 1.1754944e-38, %v4450
    %v4452 = vsel %vm4449, %v4451, %v4447
    %v4453 = vmul.f32 1.0, %v4452
    %v4454 = vrcp.pop %v4418
    %v4455 = vmul.f32 %v4418, %v4454
    %v4456 = vsub.f32 1.0, %v4455
    %v4457 = vmul.f32 %v4454, %v4456
    %v4458 = vadd.f32 %v4454, %v4457
    %vm4459 = vweird.f32 %v4418
    %vm4460 = vweird.f32 %v4454
    %vm4461 = vmor %vm4459, %vm4460
    %v4462 = vsel %vm4461, %v4454, %v4458
    %v4463 = vand.u32 2147483647, %v4418
    %vm4464 = vcmp.eq.f32.partialorder %v4463, 8.507059e+37
    %v4465 = vand.u32 %v4418, 2147483648
    %v4466 = vor.u32 1.1754944e-38, %v4465
    %v4467 = vsel %vm4464, %v4466, %v4462
    %v4468 = vmul.f32 1.0, %v4467
    %v4469 = vrcp.pop %v4419
    %v4470 = vmul.f32 %v4419, %v4469
    %v4471 = vsub.f32 1.0, %v4470
    %v4472 = vmul.f32 %v4469, %v4471
    %v4473 = vadd.f32 %v4469, %v4472
    %vm4474 = vweird.f32 %v4419
    %vm4475 = vweird.f32 %v4469
    %vm4476 = vmor %vm4474, %vm4475
    %v4477 = vsel %vm4476, %v4469, %v4473
    %v4478 = vand.u32 2147483647, %v4419
    %vm4479 = vcmp.eq.f32.partialorder %v4478, 8.507059e+37
    %v4480 = vand.u32 %v4419, 2147483648
    %v4481 = vor.u32 1.1754944e-38, %v4480
    %v4482 = vsel %vm4479, %v4481, %v4477
    %v4483 = vmul.f32 1.0, %v4482
    %v4484 = vrcp.pop %v4420
    %v4485 = vmul.f32 %v4420, %v4484
    %v4486 = vsub.f32 1.0, %v4485
    %v4487 = vmul.f32 %v4484, %v4486
    %v4488 = vadd.f32 %v4484, %v4487
    %vm4489 = vweird.f32 %v4420
    %vm4490 = vweird.f32 %v4484
    %vm4491 = vmor %vm4489, %vm4490
    %v4492 = vsel %vm4491, %v4484, %v4488
    %v4493 = vand.u32 2147483647, %v4420
    %vm4494 = vcmp.eq.f32.partialorder %v4493, 8.507059e+37
    %v4495 = vand.u32 %v4420, 2147483648
    %v4496 = vor.u32 1.1754944e-38, %v4495
    %v4497 = vsel %vm4494, %v4496, %v4492
    %v4498 = vmul.f32 1.0, %v4497
    %v4499 = vrcp.pop %v4421
    %v4500 = vmul.f32 %v4421, %v4499
    %v4501 = vsub.f32 1.0, %v4500
    %v4502 = vmul.f32 %v4499, %v4501
    %v4503 = vadd.f32 %v4499, %v4502
    %vm4504 = vweird.f32 %v4421
    %vm4505 = vweird.f32 %v4499
    %vm4506 = vmor %vm4504, %vm4505
    %v4507 = vsel %vm4506, %v4499, %v4503
    %v4508 = vand.u32 2147483647, %v4421
    %vm4509 = vcmp.eq.f32.partialorder %v4508, 8.507059e+37
    %v4510 = vand.u32 %v4421, 2147483648
    %v4511 = vor.u32 1.1754944e-38, %v4510
    %v4512 = vsel %vm4509, %v4511, %v4507
    %v4513 = vmul.f32 1.0, %v4512
    %v4514 = vrcp.pop %v4422
    %v4515 = vmul.f32 %v4422, %v4514
    %v4516 = vsub.f32 1.0, %v4515
    %v4517 = vmul.f32 %v4514, %v4516
    %v4518 = vadd.f32 %v4514, %v4517
    %vm4519 = vweird.f32 %v4422
    %vm4520 = vweird.f32 %v4514
    %vm4521 = vmor %vm4519, %vm4520
    %v4522 = vsel %vm4521, %v4514, %v4518
    %v4523 = vand.u32 2147483647, %v4422
    %vm4524 = vcmp.eq.f32.partialorder %v4523, 8.507059e+37
    %v4525 = vand.u32 %v4422, 2147483648
    %v4526 = vor.u32 1.1754944e-38, %v4525
    %v4527 = vsel %vm4524, %v4526, %v4522
    %v4528 = vmul.f32 1.0, %v4527
    %v4529 = vrcp.pop %v4423
    %v4530 = vmul.f32 %v4423, %v4529
    %v4531 = vsub.f32 1.0, %v4530
    %v4532 = vmul.f32 %v4529, %v4531
    %v4533 = vadd.f32 %v4529, %v4532
    %vm4534 = vweird.f32 %v4423
    %vm4535 = vweird.f32 %v4529
    %vm4536 = vmor %vm4534, %vm4535
    %v4537 = vsel %vm4536, %v4529, %v4533
    %v4538 = vand.u32 2147483647, %v4423
    %vm4539 = vcmp.eq.f32.partialorder %v4538, 8.507059e+37
    %v4540 = vand.u32 %v4423, 2147483648
    %v4541 = vor.u32 1.1754944e-38, %v4540
    %v4542 = vsel %vm4539, %v4541, %v4537
    %v4543 = vmul.f32 1.0, %v4542
    %v4544 = vld [vmem:[#allocation8] sm:$0xff]
    %v4545 = vld [vmem:[#allocation8 + $0x8] sm:$0xff]
    %v4546 = vld [vmem:[#allocation8 + $0x10] sm:$0xff]
    %v4547 = vld [vmem:[#allocation8 + $0x18] sm:$0xff]
    %v4548 = vld [vmem:[#allocation8 + $0x20] sm:$0xff]
    %v4549 = vld [vmem:[#allocation8 + $0x28] sm:$0xff]
    %v4550 = vld [vmem:[#allocation8 + $0x30] sm:$0xff]
    %v4551 = vld [vmem:[#allocation8 + $0x38] sm:$0xff]
    %v4552 = vld [vmem:[#allocation8 + $0x40] sm:$0xff]
    %v4553 = vld [vmem:[#allocation8 + $0x48] sm:$0xff]
    %v4554 = vld [vmem:[#allocation8 + $0x50] sm:$0xff]
    %v4555 = vld [vmem:[#allocation8 + $0x58] sm:$0xff]
    %v4556 = vld [vmem:[#allocation8 + $0x60] sm:$0xff]
    %v4557 = vld [vmem:[#allocation8 + $0x68] sm:$0xff]
    %v4558 = vld [vmem:[#allocation8 + $0x70] sm:$0xff]
    %v4559 = vld [vmem:[#allocation8 + $0x78] sm:$0xff]
    %v4560 = vld [vmem:[#allocation8 + $0x80] sm:$0xff]
    %v4561 = vld [vmem:[#allocation8 + $0x88] sm:$0xff]
    %v4562 = vld [vmem:[#allocation8 + $0x90] sm:$0xff]
    %v4563 = vld [vmem:[#allocation8 + $0x98] sm:$0xff]
    %v4564 = vld [vmem:[#allocation8 + $0xa0] sm:$0xff]
    %v4565 = vld [vmem:[#allocation8 + $0xa8] sm:$0xff]
    %v4566 = vld [vmem:[#allocation8 + $0xb0] sm:$0xff]
    %v4567 = vld [vmem:[#allocation8 + $0xb8] sm:$0xff]
    %v4568 = vld [vmem:[#allocation8 + $0xc0] sm:$0xff]
    %v4569 = vld [vmem:[#allocation8 + $0xc8] sm:$0xff]
    %v4570 = vld [vmem:[#allocation8 + $0xd0] sm:$0xff]
    %v4571 = vld [vmem:[#allocation8 + $0xd8] sm:$0xff]
    %v4572 = vld [vmem:[#allocation8 + $0xe0] sm:$0xff]
    %v4573 = vld [vmem:[#allocation8 + $0xe8] sm:$0xff]
    %v4574 = vld [vmem:[#allocation8 + $0xf0] sm:$0xff]
    %v4575 = vld [vmem:[#allocation8 + $0xf8] sm:$0xff]
    %v4576 = vld [vmem:[#allocation8 + $0x100] sm:$0xff]
    %v4577 = vld [vmem:[#allocation8 + $0x108] sm:$0xff]
    %v4578 = vld [vmem:[#allocation8 + $0x110] sm:$0xff]
    %v4579 = vld [vmem:[#allocation8 + $0x118] sm:$0xff]
    %v4580 = vld [vmem:[#allocation8 + $0x120] sm:$0xff]
    %v4581 = vld [vmem:[#allocation8 + $0x128] sm:$0xff]
    %v4582 = vld [vmem:[#allocation8 + $0x130] sm:$0xff]
    %v4583 = vld [vmem:[#allocation8 + $0x138] sm:$0xff]
    %v4584 = vld [vmem:[#allocation8 + $0x140] sm:$0xff]
    %v4585 = vld [vmem:[#allocation8 + $0x148] sm:$0xff]
    %v4586 = vld [vmem:[#allocation8 + $0x150] sm:$0xff]
    %v4587 = vld [vmem:[#allocation8 + $0x158] sm:$0xff]
    %v4588 = vld [vmem:[#allocation8 + $0x160] sm:$0xff]
    %v4589 = vld [vmem:[#allocation8 + $0x168] sm:$0xff]
    %v4590 = vld [vmem:[#allocation8 + $0x170] sm:$0xff]
    %v4591 = vld [vmem:[#allocation8 + $0x178] sm:$0xff]
    %v4592 = vld [vmem:[#allocation8 + $0x180] sm:$0xff]
    %v4593 = vld [vmem:[#allocation8 + $0x188] sm:$0xff]
    %v4594 = vld [vmem:[#allocation8 + $0x190] sm:$0xff]
    %v4595 = vld [vmem:[#allocation8 + $0x198] sm:$0xff]
    %v4596 = vld [vmem:[#allocation8 + $0x1a0] sm:$0xff]
    %v4597 = vld [vmem:[#allocation8 + $0x1a8] sm:$0xff]
    %v4598 = vld [vmem:[#allocation8 + $0x1b0] sm:$0xff]
    %v4599 = vld [vmem:[#allocation8 + $0x1b8] sm:$0xff]
    %v4600 = vld [vmem:[#allocation8 + $0x1c0] sm:$0xff]
    %v4601 = vld [vmem:[#allocation8 + $0x1c8] sm:$0xff]
    %v4602 = vld [vmem:[#allocation8 + $0x1d0] sm:$0xff]
    %v4603 = vld [vmem:[#allocation8 + $0x1d8] sm:$0xff]
    %v4604 = vld [vmem:[#allocation8 + $0x1e0] sm:$0xff]
    %v4605 = vld [vmem:[#allocation8 + $0x1e8] sm:$0xff]
    %v4606 = vld [vmem:[#allocation8 + $0x1f0] sm:$0xff]
    %v4607 = vld [vmem:[#allocation8 + $0x1f8] sm:$0xff]
    %v4608 = vld [vmem:[%s8] sm:$0x3]
    %v4610 = vperm.slane %v4608, 0
    %v4611 = vperm.slane %v4608, 1
    %v4678 = vunpack.c.l.b16 %v4544
    %v4679 = vunpack.c.h.b16 %v4544
    %v4680 = vunpack.c.l.b16 %v4545
    %v4681 = vunpack.c.h.b16 %v4545
    %v4682 = vunpack.c.l.b16 %v4546
    %v4683 = vunpack.c.h.b16 %v4546
    %v4684 = vunpack.c.l.b16 %v4547
    %v4685 = vunpack.c.h.b16 %v4547
    %v4686 = vunpack.c.l.b16 %v4548
    %v4687 = vunpack.c.h.b16 %v4548
    %v4688 = vunpack.c.l.b16 %v4549
    %v4689 = vunpack.c.h.b16 %v4549
    %v4690 = vunpack.c.l.b16 %v4550
    %v4691 = vunpack.c.h.b16 %v4550
    %v4692 = vunpack.c.l.b16 %v4551
    %v4693 = vunpack.c.h.b16 %v4551
    %v4694 = vunpack.c.l.b16 %v4552
    %v4695 = vunpack.c.h.b16 %v4552
    %v4696 = vunpack.c.l.b16 %v4553
    %v4697 = vunpack.c.h.b16 %v4553
    %v4698 = vunpack.c.l.b16 %v4554
    %v4699 = vunpack.c.h.b16 %v4554
    %v4700 = vunpack.c.l.b16 %v4555
    %v4701 = vunpack.c.h.b16 %v4555
    %v4702 = vunpack.c.l.b16 %v4556
    %v4703 = vunpack.c.h.b16 %v4556
    %v4704 = vunpack.c.l.b16 %v4557
    %v4705 = vunpack.c.h.b16 %v4557
    %v4706 = vunpack.c.l.b16 %v4558
    %v4707 = vunpack.c.h.b16 %v4558
    %v4708 = vunpack.c.l.b16 %v4559
    %v4709 = vunpack.c.h.b16 %v4559
    %v4710 = vunpack.c.l.b16 %v4560
    %v4711 = vunpack.c.h.b16 %v4560
    %v4712 = vunpack.c.l.b16 %v4561
    %v4713 = vunpack.c.h.b16 %v4561
    %v4714 = vunpack.c.l.b16 %v4562
    %v4715 = vunpack.c.h.b16 %v4562
    %v4716 = vunpack.c.l.b16 %v4563
    %v4717 = vunpack.c.h.b16 %v4563
    %v4718 = vunpack.c.l.b16 %v4564
    %v4719 = vunpack.c.h.b16 %v4564
    %v4720 = vunpack.c.l.b16 %v4565
    %v4721 = vunpack.c.h.b16 %v4565
    %v4722 = vunpack.c.l.b16 %v4566
    %v4723 = vunpack.c.h.b16 %v4566
    %v4724 = vunpack.c.l.b16 %v4567
    %v4725 = vunpack.c.h.b16 %v4567
    %v4726 = vunpack.c.l.b16 %v4568
    %v4727 = vunpack.c.h.b16 %v4568
    %v4728 = vunpack.c.l.b16 %v4569
    %v4729 = vunpack.c.h.b16 %v4569
    %v4730 = vunpack.c.l.b16 %v4570
    %v4731 = vunpack.c.h.b16 %v4570
    %v4732 = vunpack.c.l.b16 %v4571
    %v4733 = vunpack.c.h.b16 %v4571
    %v4734 = vunpack.c.l.b16 %v4572
    %v4735 = vunpack.c.h.b16 %v4572
    %v4736 = vunpack.c.l.b16 %v4573
    %v4737 = vunpack.c.h.b16 %v4573
    %v4738 = vunpack.c.l.b16 %v4574
    %v4739 = vunpack.c.h.b16 %v4574
    %v4740 = vunpack.c.l.b16 %v4575
    %v4741 = vunpack.c.h.b16 %v4575
    %v4742 = vunpack.c.l.b16 %v4576
    %v4743 = vunpack.c.h.b16 %v4576
    %v4744 = vunpack.c.l.b16 %v4577
    %v4745 = vunpack.c.h.b16 %v4577
    %v4746 = vunpack.c.l.b16 %v4578
    %v4747 = vunpack.c.h.b16 %v4578
    %v4748 = vunpack.c.l.b16 %v4579
    %v4749 = vunpack.c.h.b16 %v4579
    %v4750 = vunpack.c.l.b16 %v4580
    %v4751 = vunpack.c.h.b16 %v4580
    %v4752 = vunpack.c.l.b16 %v4581
    %v4753 = vunpack.c.h.b16 %v4581
    %v4754 = vunpack.c.l.b16 %v4582
    %v4755 = vunpack.c.h.b16 %v4582
    %v4756 = vunpack.c.l.b16 %v4583
    %v4757 = vunpack.c.h.b16 %v4583
    %v4758 = vunpack.c.l.b16 %v4584
    %v4759 = vunpack.c.h.b16 %v4584
    %v4760 = vunpack.c.l.b16 %v4585
    %v4761 = vunpack.c.h.b16 %v4585
    %v4762 = vunpack.c.l.b16 %v4586
    %v4763 = vunpack.c.h.b16 %v4586
    %v4764 = vunpack.c.l.b16 %v4587
    %v4765 = vunpack.c.h.b16 %v4587
    %v4766 = vunpack.c.l.b16 %v4588
    %v4767 = vunpack.c.h.b16 %v4588
    %v4768 = vunpack.c.l.b16 %v4589
    %v4769 = vunpack.c.h.b16 %v4589
    %v4770 = vunpack.c.l.b16 %v4590
    %v4771 = vunpack.c.h.b16 %v4590
    %v4772 = vunpack.c.l.b16 %v4591
    %v4773 = vunpack.c.h.b16 %v4591
    %v4774 = vunpack.c.l.b16 %v4592
    %v4775 = vunpack.c.h.b16 %v4592
    %v4776 = vunpack.c.l.b16 %v4593
    %v4777 = vunpack.c.h.b16 %v4593
    %v4778 = vunpack.c.l.b16 %v4594
    %v4779 = vunpack.c.h.b16 %v4594
    %v4780 = vunpack.c.l.b16 %v4595
    %v4781 = vunpack.c.h.b16 %v4595
    %v4782 = vunpack.c.l.b16 %v4596
    %v4783 = vunpack.c.h.b16 %v4596
    %v4784 = vunpack.c.l.b16 %v4597
    %v4785 = vunpack.c.h.b16 %v4597
    %v4786 = vunpack.c.l.b16 %v4598
    %v4787 = vunpack.c.h.b16 %v4598
    %v4788 = vunpack.c.l.b16 %v4599
    %v4789 = vunpack.c.h.b16 %v4599
    %v4790 = vunpack.c.l.b16 %v4600
    %v4791 = vunpack.c.h.b16 %v4600
    %v4792 = vunpack.c.l.b16 %v4601
    %v4793 = vunpack.c.h.b16 %v4601
    %v4794 = vunpack.c.l.b16 %v4602
    %v4795 = vunpack.c.h.b16 %v4602
    %v4796 = vunpack.c.l.b16 %v4603
    %v4797 = vunpack.c.h.b16 %v4603
    %v4798 = vunpack.c.l.b16 %v4604
    %v4799 = vunpack.c.h.b16 %v4604
    %v4800 = vunpack.c.l.b16 %v4605
    %v4801 = vunpack.c.h.b16 %v4605
    %v4802 = vunpack.c.l.b16 %v4606
    %v4803 = vunpack.c.h.b16 %v4606
    %v4804 = vunpack.c.l.b16 %v4607
    %v4805 = vunpack.c.h.b16 %v4607
    %v4806 = vpack.c.b16 %v4680, %v4678
    %v4807 = vpack.c.b16 %v4681, %v4679
    %v4808 = vpack.c.b16 %v4684, %v4682
    %v4809 = vpack.c.b16 %v4685, %v4683
    %v4810 = vpack.c.b16 %v4688, %v4686
    %v4811 = vpack.c.b16 %v4689, %v4687
    %v4812 = vpack.c.b16 %v4692, %v4690
    %v4813 = vpack.c.b16 %v4693, %v4691
    %v4814 = vpack.c.b16 %v4696, %v4694
    %v4815 = vpack.c.b16 %v4697, %v4695
    %v4816 = vpack.c.b16 %v4700, %v4698
    %v4817 = vpack.c.b16 %v4701, %v4699
    %v4818 = vpack.c.b16 %v4704, %v4702
    %v4819 = vpack.c.b16 %v4705, %v4703
    %v4820 = vpack.c.b16 %v4708, %v4706
    %v4821 = vpack.c.b16 %v4709, %v4707
    %v4822 = vpack.c.b16 %v4712, %v4710
    %v4823 = vpack.c.b16 %v4713, %v4711
    %v4824 = vpack.c.b16 %v4716, %v4714
    %v4825 = vpack.c.b16 %v4717, %v4715
    %v4826 = vpack.c.b16 %v4720, %v4718
    %v4827 = vpack.c.b16 %v4721, %v4719
    %v4828 = vpack.c.b16 %v4724, %v4722
    %v4829 = vpack.c.b16 %v4725, %v4723
    %v4830 = vpack.c.b16 %v4728, %v4726
    %v4831 = vpack.c.b16 %v4729, %v4727
    %v4832 = vpack.c.b16 %v4732, %v4730
    %v4833 = vpack.c.b16 %v4733, %v4731
    %v4834 = vpack.c.b16 %v4736, %v4734
    %v4835 = vpack.c.b16 %v4737, %v4735
    %v4836 = vpack.c.b16 %v4740, %v4738
    %v4837 = vpack.c.b16 %v4741, %v4739
    %v4838 = vpack.c.b16 %v4744, %v4742
    %v4839 = vpack.c.b16 %v4745, %v4743
    %v4840 = vpack.c.b16 %v4748, %v4746
    %v4841 = vpack.c.b16 %v4749, %v4747
    %v4842 = vpack.c.b16 %v4752, %v4750
    %v4843 = vpack.c.b16 %v4753, %v4751
    %v4844 = vpack.c.b16 %v4756, %v4754
    %v4845 = vpack.c.b16 %v4757, %v4755
    %v4846 = vpack.c.b16 %v4760, %v4758
    %v4847 = vpack.c.b16 %v4761, %v4759
    %v4848 = vpack.c.b16 %v4764, %v4762
    %v4849 = vpack.c.b16 %v4765, %v4763
    %v4850 = vpack.c.b16 %v4768, %v4766
    %v4851 = vpack.c.b16 %v4769, %v4767
    %v4852 = vpack.c.b16 %v4772, %v4770
    %v4853 = vpack.c.b16 %v4773, %v4771
    %v4854 = vpack.c.b16 %v4776, %v4774
    %v4855 = vpack.c.b16 %v4777, %v4775
    %v4856 = vpack.c.b16 %v4780, %v4778
    %v4857 = vpack.c.b16 %v4781, %v4779
    %v4858 = vpack.c.b16 %v4784, %v4782
    %v4859 = vpack.c.b16 %v4785, %v4783
    %v4860 = vpack.c.b16 %v4788, %v4786
    %v4861 = vpack.c.b16 %v4789, %v4787
    %v4862 = vpack.c.b16 %v4792, %v4790
    %v4863 = vpack.c.b16 %v4793, %v4791
    %v4864 = vpack.c.b16 %v4796, %v4794
    %v4865 = vpack.c.b16 %v4797, %v4795
    %v4866 = vpack.c.b16 %v4800, %v4798
    %v4867 = vpack.c.b16 %v4801, %v4799
    %v4868 = vpack.c.b16 %v4804, %v4802
    %v4869 = vpack.c.b16 %v4805, %v4803
    %4934 = vmatpush.bf16.msra.mxu0 %v4820
    %4935 = vmatpush.bf16.msra.mxu0 %v4818
    %4936 = vmatpush.bf16.msra.mxu0 %v4816
    %4937 = vmatpush.bf16.msra.mxu0 %v4814
    %4938 = vmatpush.bf16.msra.mxu0 %v4812
    %4939 = vmatpush.bf16.msra.mxu0 %v4810
    %4940 = vmatpush.bf16.msra.mxu0 %v4808
    %4941 = vmatpush.bf16.msra.mxu0 %v4806
    %4942 = vmatmul.bf16.gmra.mxu0 %v147
    %v4943 = vpop.f32.mrf.mxu0
    %v4944 = vadd.f32 %v4610, %v4943
    %v4945 = vpop.f32.mrf.mxu0
    %v4946 = vadd.f32 %v4610, %v4945
    %4947 = vmatmul.bf16.gmra.mxu0 %v151
    %v4948 = vpop.f32.mrf.mxu0
    %v4949 = vadd.f32 %v4610, %v4948
    %v4950 = vpop.f32.mrf.mxu0
    %v4951 = vadd.f32 %v4610, %v4950
    %4952 = vdwg.mxu0
    %4953 = vmatpush.bf16.msra.mxu0 %v4836
    %4954 = vmatpush.bf16.msra.mxu0 %v4834
    %4955 = vmatpush.bf16.msra.mxu0 %v4832
    %4956 = vmatpush.bf16.msra.mxu0 %v4830
    %4957 = vmatpush.bf16.msra.mxu0 %v4828
    %4958 = vmatpush.bf16.msra.mxu0 %v4826
    %4959 = vmatpush.bf16.msra.mxu0 %v4824
    %4960 = vmatpush.bf16.msra.mxu0 %v4822
    %4961 = vmatmul.bf16.gmra.mxu0 %v148
    %v4962 = vpop.f32.mrf.mxu0
    %v4963 = vadd.f32 %v4944, %v4962
    %v4964 = vpop.f32.mrf.mxu0
    %v4965 = vadd.f32 %v4946, %v4964
    %4966 = vmatmul.bf16.gmra.mxu0 %v152
    %v4967 = vpop.f32.mrf.mxu0
    %v4968 = vadd.f32 %v4949, %v4967
    %v4969 = vpop.f32.mrf.mxu0
    %v4970 = vadd.f32 %v4951, %v4969
    %4971 = vdwg.mxu0
    %4972 = vmatpush.bf16.msra.mxu0 %v4852
    %4973 = vmatpush.bf16.msra.mxu0 %v4850
    %4974 = vmatpush.bf16.msra.mxu0 %v4848
    %4975 = vmatpush.bf16.msra.mxu0 %v4846
    %4976 = vmatpush.bf16.msra.mxu0 %v4844
    %4977 = vmatpush.bf16.msra.mxu0 %v4842
    %4978 = vmatpush.bf16.msra.mxu0 %v4840
    %4979 = vmatpush.bf16.msra.mxu0 %v4838
    %4980 = vmatmul.bf16.gmra.mxu0 %v149
    %v4981 = vpop.f32.mrf.mxu0
    %v4982 = vadd.f32 %v4963, %v4981
    %v4983 = vpop.f32.mrf.mxu0
    %v4984 = vadd.f32 %v4965, %v4983
    %4985 = vmatmul.bf16.gmra.mxu0 %v153
    %v4986 = vpop.f32.mrf.mxu0
    %v4987 = vadd.f32 %v4968, %v4986
    %v4988 = vpop.f32.mrf.mxu0
    %v4989 = vadd.f32 %v4970, %v4988
    %4990 = vdwg.mxu0
    %4991 = vmatpush.bf16.msra.mxu0 %v4868
    %4992 = vmatpush.bf16.msra.mxu0 %v4866
    %4993 = vmatpush.bf16.msra.mxu0 %v4864
    %4994 = vmatpush.bf16.msra.mxu0 %v4862
    %4995 = vmatpush.bf16.msra.mxu0 %v4860
    %4996 = vmatpush.bf16.msra.mxu0 %v4858
    %4997 = vmatpush.bf16.msra.mxu0 %v4856
    %4998 = vmatpush.bf16.msra.mxu0 %v4854
    %4999 = vmatmul.bf16.gmra.mxu0 %v150
    %v5000 = vpop.f32.mrf.mxu0
    %v5001 = vadd.f32 %v4982, %v5000
    %v5002 = vpop.f32.mrf.mxu0
    %v5003 = vadd.f32 %v4984, %v5002
    %5004 = vmatmul.bf16.gmra.mxu0 %v154
    %v5005 = vpop.f32.mrf.mxu0
    %v5006 = vadd.f32 %v4987, %v5005
    %v5007 = vpop.f32.mrf.mxu0
    %v5008 = vadd.f32 %v4989, %v5007
    %5009 = vdwg.mxu0
    %5010 = vmatpush.bf16.msra.mxu0 %v4821
    %5011 = vmatpush.bf16.msra.mxu0 %v4819
    %5012 = vmatpush.bf16.msra.mxu0 %v4817
    %5013 = vmatpush.bf16.msra.mxu0 %v4815
    %5014 = vmatpush.bf16.msra.mxu0 %v4813
    %5015 = vmatpush.bf16.msra.mxu0 %v4811
    %5016 = vmatpush.bf16.msra.mxu0 %v4809
    %5017 = vmatpush.bf16.msra.mxu0 %v4807
    %5018 = vmatmul.bf16.gmra.mxu0 %v147
    %v5019 = vpop.f32.mrf.mxu0
    %v5020 = vadd.f32 %v4611, %v5019
    %v5021 = vpop.f32.mrf.mxu0
    %v5022 = vadd.f32 %v4611, %v5021
    %5023 = vmatmul.bf16.gmra.mxu0 %v151
    %v5024 = vpop.f32.mrf.mxu0
    %v5025 = vadd.f32 %v4611, %v5024
    %v5026 = vpop.f32.mrf.mxu0
    %v5027 = vadd.f32 %v4611, %v5026
    %5028 = vdwg.mxu0
    %5029 = vmatpush.bf16.msra.mxu0 %v4837
    %5030 = vmatpush.bf16.msra.mxu0 %v4835
    %5031 = vmatpush.bf16.msra.mxu0 %v4833
    %5032 = vmatpush.bf16.msra.mxu0 %v4831
    %5033 = vmatpush.bf16.msra.mxu0 %v4829
    %5034 = vmatpush.bf16.msra.mxu0 %v4827
    %5035 = vmatpush.bf16.msra.mxu0 %v4825
    %5036 = vmatpush.bf16.msra.mxu0 %v4823
    %5037 = vmatmul.bf16.gmra.mxu0 %v148
    %v5038 = vpop.f32.mrf.mxu0
    %v5039 = vadd.f32 %v5020, %v5038
    %v5040 = vpop.f32.mrf.mxu0
    %v5041 = vadd.f32 %v5022, %v5040
    %5042 = vmatmul.bf16.gmra.mxu0 %v152
    %v5043 = vpop.f32.mrf.mxu0
    %v5044 = vadd.f32 %v5025, %v5043
    %v5045 = vpop.f32.mrf.mxu0
    %v5046 = vadd.f32 %v5027, %v5045
    %5047 = vdwg.mxu0
    %5048 = vmatpush.bf16.msra.mxu0 %v4853
    %5049 = vmatpush.bf16.msra.mxu0 %v4851
    %5050 = vmatpush.bf16.msra.mxu0 %v4849
    %5051 = vmatpush.bf16.msra.mxu0 %v4847
    %5052 = vmatpush.bf16.msra.mxu0 %v4845
    %5053 = vmatpush.bf16.msra.mxu0 %v4843
    %5054 = vmatpush.bf16.msra.mxu0 %v4841
    %5055 = vmatpush.bf16.msra.mxu0 %v4839
    %5056 = vmatmul.bf16.gmra.mxu0 %v149
    %v5057 = vpop.f32.mrf.mxu0
    %v5058 = vadd.f32 %v5039, %v5057
    %v5059 = vpop.f32.mrf.mxu0
    %v5060 = vadd.f32 %v5041, %v5059
    %5061 = vmatmul.bf16.gmra.mxu0 %v153
    %v5062 = vpop.f32.mrf.mxu0
    %v5063 = vadd.f32 %v5044, %v5062
    %v5064 = vpop.f32.mrf.mxu0
    %v5065 = vadd.f32 %v5046, %v5064
    %5066 = vdwg.mxu0
    %5067 = vmatpush.bf16.msra.mxu0 %v4869
    %5068 = vmatpush.bf16.msra.mxu0 %v4867
    %5069 = vmatpush.bf16.msra.mxu0 %v4865
    %5070 = vmatpush.bf16.msra.mxu0 %v4863
    %5071 = vmatpush.bf16.msra.mxu0 %v4861
    %5072 = vmatpush.bf16.msra.mxu0 %v4859
    %5073 = vmatpush.bf16.msra.mxu0 %v4857
    %5074 = vmatpush.bf16.msra.mxu0 %v4855
    %5075 = vmatmul.bf16.gmra.mxu0 %v150
    %v5076 = vpop.f32.mrf.mxu0
    %v5077 = vadd.f32 %v5058, %v5076
    %v5078 = vpop.f32.mrf.mxu0
    %v5079 = vadd.f32 %v5060, %v5078
    %5080 = vmatmul.bf16.gmra.mxu0 %v154
    %v5081 = vpop.f32.mrf.mxu0
    %v5082 = vadd.f32 %v5063, %v5081
    %v5083 = vpop.f32.mrf.mxu0
    %v5084 = vadd.f32 %v5065, %v5083
    %5085 = vdwg.mxu0
    %v5086 = vmul.f32 %v4129, %v4438
    %v5087 = vmul.f32 %v4130, %v4453
    %v5088 = vmul.f32 %v4131, %v4468
    %v5089 = vmul.f32 %v4132, %v4483
    %v5090 = vmul.f32 %v4133, %v4498
    %v5091 = vmul.f32 %v4134, %v4513
    %v5092 = vmul.f32 %v4135, %v4528
    %v5093 = vmul.f32 %v4136, %v4543
    %v5094 = vadd.f32 %v5086, %v5001
    %v5095 = vadd.f32 %v5087, %v5077
    %v5096 = vadd.f32 %v5088, %v5003
    %v5097 = vadd.f32 %v5089, %v5079
    %v5098 = vadd.f32 %v5090, %v5006
    %v5099 = vadd.f32 %v5091, %v5082
    %v5100 = vadd.f32 %v5092, %v5008
    %v5101 = vadd.f32 %v5093, %v5084
    %v5102 = vmax.f32 %v5094, 0.0
    %v5103 = vmax.f32 %v5095, 0.0
    %v5104 = vmax.f32 %v5096, 0.0
    %v5105 = vmax.f32 %v5097, 0.0
    %v5106 = vmax.f32 %v5098, 0.0
    %v5107 = vmax.f32 %v5099, 0.0
    %v5108 = vmax.f32 %v5100, 0.0
    %v5109 = vmax.f32 %v5101, 0.0
    %5110 = vst [vmem:[#allocation10] sm:$0xff] %v5102
    %5111 = vst [vmem:[#allocation10 + $0x8] sm:$0xff] %v5103
    %5112 = vst [vmem:[#allocation10 + $0x10] sm:$0xff] %v5104
    %5113 = vst [vmem:[#allocation10 + $0x18] sm:$0xff] %v5105
    %5114 = vst [vmem:[#allocation10 + $0x20] sm:$0xff] %v5106
    %5115 = vst [vmem:[#allocation10 + $0x28] sm:$0xff] %v5107
    %5116 = vst [vmem:[#allocation10 + $0x30] sm:$0xff] %v5108
    %5117 = vst [vmem:[#allocation10 + $0x38] sm:$0xff] %v5109
    // Predicated region
    $region78: #{tpu_custom_call.1} parent=1 // pred_check
      _
    $region79: #{tpu_custom_call.1} parent=1 // pred_check_branch
      %5119 = sbr.rel (0) target = $region81
    $region80: #{tpu_custom_call.1} parent=1 // pred_region
      %5121 = vsyncadd [#allocation4], 0
      %s5122 = sshll.u32 [#allocation10], 4
      %s5123 = int_to_ptr.vmem [resolvable:$true] %s5122
      %s5124 = sshll.u32 %s15, 4
      %s5125 = int_to_ptr.hbm [resolvable:$true] %s5124
      %5130 = dma.vmem_to_hbm [thread:$0]  %s5123, 1024, %s5125, [#allocation4], 256, 256, 16
    $region81: #{tpu_custom_call.1} parent=1 // pred_fallthru
      _
    // Predicated region
    $region82: #{tpu_custom_call.1} parent=1 // pred_check
      _
    $region83: #{tpu_custom_call.1} parent=1 // pred_check_branch
      %5132 = sbr.rel (0) target = $region85
    $region84: #{tpu_custom_call.1} parent=1 // pred_region
      %5134 = dma.done [#allocation4], 1024
    $region85: #{tpu_custom_call.1} parent=1 // pred_fallthru
      _
    %5135 = vsyncpa [#allocation3], 1
    %5136 = vsyncpa [#allocation6], 1
    %5137 = vsyncpa [#allocation9], 1
    %5138 = vsyncpa [#allocation4], 1

</llo_original>
